<compile_context>
chip_gen: v5e
topology: v5e:2x2
jax: 0.10.0
libtpu: 0.0.40
codegen_flags: <defaults>
</compile_context>

<pallas_src>
import jax
import jax.numpy as jnp
from jax.experimental import pallas as pl
from jax.experimental.pallas import tpu as pltpu


# ---------------------------------------------------------------------------
# helpers
# ---------------------------------------------------------------------------
def _round_up(x: int, m: int) -> int:
    return ((x + m - 1) // m) * m


def _vmem_capacity_bytes() -> int:
    """Physical VMEM per TensorCore; conservative fallback = v7x (64 MiB)."""
    try:
        return int(pltpu.get_tpu_info().vmem_capacity_bytes)
    except Exception:  # pragma: no cover - off-TPU / older jax
        return 64 * 1024 * 1024


def _stage2_footprint(tm: int, tk: int, dp: int, a_bytes: int) -> int:
    """Stage-2 VMEM working set (the larger of the two tiled stages)."""
    a = 2 * 2 * tm * tk * a_bytes          # A_p + A_n tiles, double-buffered
    yk = 2 * tk * 3 * dp * 4               # Y1(K) + Y2(K), f32, double-buffered
    ym = 2 * tm * 3 * dp * 4               # Y1(M) + x_p(M), f32, double-buffered
    out = 2 * tm * 2 * dp * 4              # feat output, double-buffered
    acc = tm * 3 * dp * 4                  # f32 accumulators
    return a + yk + ym + out + acc


def _fused_footprint(np_: int, dp: int, a_bytes: int) -> int:
    a = 2 * np_ * np_ * a_bytes            # A_p + A_n resident in VMEM
    x = np_ * 2 * dp * a_bytes + np_ * dp * 4
    out = np_ * 2 * dp * 4
    tmp = 10 * np_ * dp * 4                # in-kernel intermediates (generous)
    return a + x + out + tmp


def _select_tiles(np_: int, dp: int, a_bytes: int, budget: int):
    """Pick (tm, tk): prefer even gm (v7x megacore), then large tk, then tm."""
    best = None
    for tm in (512, 256, 128):
        if np_ % tm:
            continue
        for tk in (1024, 512, 256, 128):
            if np_ % tk:
                continue
            fp = _stage2_footprint(tm, tk, dp, a_bytes)
            if fp > budget:
                continue
            key = ((np_ // tm) % 2 == 0, tk, tm)
            if best is None or key > best[0]:
                best = (key, tm, tk, fp)
    if best is None:
        tm = tk = 128
        return tm, tk, _stage2_footprint(tm, tk, dp, a_bytes)
    return best[1], best[2], best[3]


# ---------------------------------------------------------------------------
# Fused kernel (small N: A_p, A_n VMEM-resident, read from HBM once)
# ---------------------------------------------------------------------------
def _fused_kernel(ap_ref, an_ref, x2_ref, xp_ref, wp_ref, wn_ref, feat_ref):
    d = xp_ref.shape[-1]
    ap = ap_ref[...]
    an = an_ref[...]
    cdt = ap.dtype

    # First hop: A_p @ [x_p | x_n]  and  A_n @ x_n.
    y_a = jnp.dot(ap, x2_ref[...], preferred_element_type=jnp.float32)
    anxn = jnp.dot(an, x2_ref[:, d:], preferred_element_type=jnp.float32)

    # Second hop (wide RHS for MXU lane fill): A_p @ [A_p@x_p | A_n@x_n].
    y1 = jnp.concatenate([y_a[:, :d], anxn], axis=1).astype(cdt)
    z_a = jnp.dot(ap, y1, preferred_element_type=jnp.float32)
    z_b = jnp.dot(an, y_a[:, d:].astype(cdt), preferred_element_type=jnp.float32)

    wp0, wp1, wp2 = wp_ref[0], wp_ref[1], wp_ref[2]
    wn0, wn1, wn2 = wn_ref[0], wn_ref[1], wn_ref[2]
    xp = xp_ref[...].astype(jnp.float32)

    feat_ref[:, :d] = (wp2 * z_a[:, :d] + wp1 * y_a[:, :d]
                       + wp0 * xp).astype(feat_ref.dtype)
    feat_ref[:, d:] = (wn2 * z_a[:, d:] + wn1 * z_b
                       + wn0 * anxn).astype(feat_ref.dtype)


# ---------------------------------------------------------------------------
# Tiled stage 1: Y1 = [A_p@x_p | A_n@x_n]  (N, 2D),  Y2 = A_p@x_n  (N, D)
# ---------------------------------------------------------------------------
def _stage1_kernel(ap_ref, an_ref, x2_ref, y1_ref, y2_ref, acc_a, acc_b):
    k = pl.program_id(1)

    @pl.when(k == 0)
    def _init():
        acc_a[...] = jnp.zeros_like(acc_a)
        acc_b[...] = jnp.zeros_like(acc_b)

    d = acc_b.shape[-1]
    # A_p tile @ [x_p | x_n] -> [A_p@x_p | A_p@x_n]   (tm, 2D)
    acc_a[...] += jnp.dot(ap_ref[...], x2_ref[...],
                          preferred_element_type=jnp.float32)
    # A_n tile @ x_n (sliced out of the packed RHS)   (tm, D)
    acc_b[...] += jnp.dot(an_ref[...], x2_ref[:, d:],
                          preferred_element_type=jnp.float32)

    @pl.when(k == pl.num_programs(1) - 1)
    def _finalize():
        # Direct lane-aligned slice stores (D padded to a multiple of 128).
        y1_ref[:, :d] = acc_a[:, :d].astype(y1_ref.dtype)
        y1_ref[:, d:] = acc_b[...].astype(y1_ref.dtype)
        y2_ref[...] = acc_a[:, d:].astype(y2_ref.dtype)


# ---------------------------------------------------------------------------
# Tiled stage 2: feat = [w_p2*A_p@Y1[:, :D] + w_p1*Y1[:, :D] + w_p0*x_p |
#                        w_n2*A_p@Y1[:, D:] + w_n1*A_n@Y2   + w_n0*Y1[:, D:]]
# ---------------------------------------------------------------------------
def _stage2_kernel(ap_ref, an_ref, y1k_ref, y2k_ref, y1m_ref, xpm_ref,
                   wp_ref, wn_ref, feat_ref, acc_a, acc_b):
    k = pl.program_id(1)

    @pl.when(k == 0)
    def _init():
        acc_a[...] = jnp.zeros_like(acc_a)
        acc_b[...] = jnp.zeros_like(acc_b)

    cdt = ap_ref.dtype
    # A_p tile @ [A_p@x_p | A_n@x_n] -> [A_p@A_p@x_p | A_p@A_n@x_n]  (tm, 2D)
    acc_a[...] += jnp.dot(ap_ref[...], y1k_ref[...].astype(cdt),
                          preferred_element_type=jnp.float32)
    # A_n tile @ (A_p@x_n)           ->  A_n@A_p@x_n                 (tm, D)
    acc_b[...] += jnp.dot(an_ref[...], y2k_ref[...].astype(cdt),
                          preferred_element_type=jnp.float32)

    @pl.when(k == pl.num_programs(1) - 1)
    def _finalize():
        d = acc_b.shape[-1]
        y1m = y1m_ref[...]                     # f32 row tile [A_p@x_p | A_n@x_n]
        xp = xpm_ref[...]                      # f32 row tile of x_p
        wp0, wp1, wp2 = wp_ref[0], wp_ref[1], wp_ref[2]
        wn0, wn1, wn2 = wn_ref[0], wn_ref[1], wn_ref[2]
        feat_ref[:, :d] = (wp2 * acc_a[:, :d] + wp1 * y1m[:, :d]
                           + wp0 * xp).astype(feat_ref.dtype)
        feat_ref[:, d:] = (wn2 * acc_a[:, d:] + wn1 * acc_b[...]
                           + wn0 * y1m[:, d:]).astype(feat_ref.dtype)


# ---------------------------------------------------------------------------
# Module
# ---------------------------------------------------------------------------
class CONVOL:
    """JAX/Pallas port of the undirected CONVOL module."""

    def __init__(self, hop: int, directed: bool = False,
                 compute_dtype=jnp.float32, allow_fused: bool = True):
        assert not directed, "only the undirected branch is implemented here"
        self._hop_p = hop + 1
        self._hop_n = hop + 1
        self._compute_dtype = compute_dtype    # dtype fed to the MXU (f32/bf16)
        self._allow_fused = allow_fused
        # Parameters (undirected reset: fill(1.0)); forward only uses w[0..2].
        self._w_p = jnp.ones((self._hop_p + 2,), dtype=jnp.float32)
        self._w_n = jnp.ones((self._hop_n + 3,), dtype=jnp.float32)
        # Present in the torch module but unused in forward; kept for parity.
        self._w_p_all = jnp.zeros((32, 32), dtype=jnp.float32)
        self._w_n_all = jnp.zeros((32, 32), dtype=jnp.float32)
        # Cache for cast/padded adjacency (avoid per-call N^2 re-cast traffic).
        self._A_src = None
        self._A_prep = None

    # -- adjacency preparation (cast + pad), cached across calls -------------
    def _prepare_adjacency(self, A_p, A_n, Np):
        if (self._A_src is not None
                and A_p is self._A_src[0] and A_n is self._A_src[1]
                and self._A_prep[0].shape[0] == Np):
            return self._A_prep
        cdt = self._compute_dtype
        N = A_p.shape[0]
        Ap, An = A_p, A_n
        if Np != N:
            pad = ((0, Np - N), (0, Np - N))
            Ap = jnp.pad(Ap, pad)
            An = jnp.pad(An, pad)
        if Ap.dtype != cdt:
            Ap = Ap.astype(cdt)
            An = An.astype(cdt)
        self._A_src = (A_p, A_n)
        self._A_prep = (Ap, An)
        return Ap, An

    # -- forward --------------------------------------------------------------
    def __call__(self, A_p, A_n, x_p, x_n):
        N, D = x_p.shape
        cdt = self._compute_dtype
        a_bytes = jnp.dtype(cdt).itemsize
        Np = _round_up(N, 128)
        Dp = _round_up(D, 128)

        Ap, An = self._prepare_adjacency(A_p, A_n, Np)

        # Pad / cast features (small: N x D, cheap per call).
        xp_f = x_p.astype(jnp.float32)
        xn_f = x_n.astype(jnp.float32)
        if Np != N or Dp != D:
            xp_f = jnp.pad(xp_f, ((0, Np - N), (0, Dp - D)))
            xn_f = jnp.pad(xn_f, ((0, Np - N), (0, Dp - D)))
        x2 = jnp.concatenate([xp_f, xn_f], axis=1).astype(cdt)   # (Np, 2Dp)

        capacity = _vmem_capacity_bytes()
        fused_fp = _fused_footprint(Np, Dp, a_bytes)
        use_fused = self._allow_fused and fused_fp <= int(0.6 * capacity)

        if use_fused:
            feat_full = self._call_fused(Ap, An, x2, xp_f, Np, Dp, fused_fp,
                                         capacity)
        else:
            feat_full = self._call_tiled(Ap, An, x2, xp_f, Np, Dp, a_bytes,
                                         capacity)

        feat_full = feat_full[:N]
        if Dp == D:
            feat = feat_full
            feat_p = feat[:, :D]
            feat_n = feat[:, D:]
        else:
            feat_p = feat_full[:, :D]
            feat_n = feat_full[:, Dp:Dp + D]
            feat = jnp.concatenate([feat_p, feat_n], axis=1)
        return feat, feat_p, feat_n

    # -- fused small-graph path (A read from HBM once) ------------------------
    def _call_fused(self, Ap, An, x2, xp_f, Np, Dp, fused_fp, capacity):
        vmem_limit = min(capacity, max(16 << 20, int(fused_fp * 1.5) + (4 << 20)))
        vspec = pl.BlockSpec(memory_space=pltpu.MemorySpace.VMEM)
        sspec = pl.BlockSpec(memory_space=pltpu.MemorySpace.SMEM)
        return pl.pallas_call(
            _fused_kernel,
            out_shape=jax.ShapeDtypeStruct((Np, 2 * Dp), jnp.float32),
            in_specs=[vspec, vspec, vspec, vspec, sspec, sspec],
            out_specs=vspec,
            compiler_params=pltpu.CompilerParams(vmem_limit_bytes=vmem_limit),
        )(Ap, An, x2, xp_f, self._w_p, self._w_n)

    # -- tiled two-stage path (large graphs) -----------------------------------
    def _call_tiled(self, Ap, An, x2, xp_f, Np, Dp, a_bytes, capacity):
        budget = int(0.7 * capacity)
        tm, tk, footprint = _select_tiles(Np, Dp, a_bytes, budget)
        gm, gk = Np // tm, Np // tk
        vmem_limit = min(capacity,
                         max(32 << 20, int(footprint * 1.4) + (2 << 20)))

        cparams = pltpu.CompilerParams(
            dimension_semantics=("parallel", "arbitrary"),
            vmem_limit_bytes=vmem_limit,
        )
        sspec = pl.BlockSpec(memory_space=pltpu.MemorySpace.SMEM)

        # ----- stage 1: first-hop products ---------------------------------
        y1, y2 = pl.pallas_call(
            _stage1_kernel,
            grid=(gm, gk),
            out_shape=(
                jax.ShapeDtypeStruct((Np, 2 * Dp), jnp.float32),   # [ApXp|AnXn]
                jax.ShapeDtypeStruct((Np, Dp), jnp.float32),       # ApXn
            ),
            in_specs=[
                pl.BlockSpec((tm, tk), lambda m, k: (m, k)),       # A_p
                pl.BlockSpec((tm, tk), lambda m, k: (m, k)),       # A_n
                pl.BlockSpec((tk, 2 * Dp), lambda m, k: (k, 0)),   # [x_p|x_n]
            ],
            out_specs=(
                pl.BlockSpec((tm, 2 * Dp), lambda m, k: (m, 0)),
                pl.BlockSpec((tm, Dp), lambda m, k: (m, 0)),
            ),
            scratch_shapes=[
                pltpu.VMEM((tm, 2 * Dp), jnp.float32),
                pltpu.VMEM((tm, Dp), jnp.float32),
            ],
            compiler_params=cparams,
        )(Ap, An, x2)

        # ----- stage 2: second-hop products + weighted combine -------------
        feat_full = pl.pallas_call(
            _stage2_kernel,
            grid=(gm, gk),
            out_shape=jax.ShapeDtypeStruct((Np, 2 * Dp), jnp.float32),
            in_specs=[
                pl.BlockSpec((tm, tk), lambda m, k: (m, k)),       # A_p
                pl.BlockSpec((tm, tk), lambda m, k: (m, k)),       # A_n
                pl.BlockSpec((tk, 2 * Dp), lambda m, k: (k, 0)),   # Y1 (K tile)
                pl.BlockSpec((tk, Dp), lambda m, k: (k, 0)),       # Y2 (K tile)
                pl.BlockSpec((tm, 2 * Dp), lambda m, k: (m, 0)),   # Y1 (M tile)
                pl.BlockSpec((tm, Dp), lambda m, k: (m, 0)),       # x_p (M tile)
                sspec,                                             # w_p
                sspec,                                             # w_n
            ],
            out_specs=pl.BlockSpec((tm, 2 * Dp), lambda m, k: (m, 0)),
            scratch_shapes=[
                pltpu.VMEM((tm, 2 * Dp), jnp.float32),
                pltpu.VMEM((tm, Dp), jnp.float32),
            ],
            compiler_params=cparams,
        )(Ap, An, y1, y2, y1, xp_f, self._w_p, self._w_n)

        return feat_full


if __name__ == "__main__":
    key = jax.random.PRNGKey(0)
    k1, k2, k3, k4 = jax.random.split(key, 4)

    N, D, hop = 384, 128, 2

    # Row-normalized non-negative adjacency parts.
    A_p_raw = jax.random.uniform(k1, (N, N), dtype=jnp.float32)
    A_n_raw = jax.random.uniform(k2, (N, N), dtype=jnp.float32)
    A_p = A_p_raw / jnp.sum(A_p_raw, axis=1, keepdims=True)
    A_n = A_n_raw / jnp.sum(A_n_raw, axis=1, keepdims=True)

    x_p = jax.random.normal(k3, (N, D), dtype=jnp.float32)
    x_n = jax.random.normal(k4, (N, D), dtype=jnp.float32)

    # Plain-JAX reference (same math, outside Pallas).
    model = CONVOL(hop=hop, directed=False)
    wp, wn = model._w_p, model._w_n
    ref_p = wp[2] * (A_p @ (A_p @ x_p)) + wp[1] * (A_p @ x_p) + wp[0] * x_p
    ref_n = (wn[2] * (A_p @ (A_n @ x_n))
             + wn[1] * (A_n @ (A_p @ x_n))
             + wn[0] * (A_n @ x_n))
    ref_feat = jnp.concatenate([ref_p, ref_n], axis=1)

    # 1) fused small-graph path (A streamed from HBM once), f32: exact math.
    feat, feat_p, feat_n = model(A_p, A_n, x_p, x_n)
    jax.block_until_ready((feat, feat_p, feat_n))
    assert feat.shape == (N, 2 * D)
    assert jnp.allclose(feat_p, ref_p, atol=1e-4, rtol=1e-4)
    assert jnp.allclose(feat_n, ref_n, atol=1e-4, rtol=1e-4)
    assert jnp.allclose(feat, ref_feat, atol=1e-4, rtol=1e-4)

    # 2) tiled two-stage path (forced), f32: same math via the streaming kernels.
    model_tiled = CONVOL(hop=hop, directed=False, allow_fused=False)
    feat_t, feat_pt, feat_nt = model_tiled(A_p, A_n, x_p, x_n)
    jax.block_until_ready((feat_t, feat_pt, feat_nt))
    assert jnp.allclose(feat_t, ref_feat, atol=1e-4, rtol=1e-4)

    # 3) bf16 adjacency / MXU path (f32 accumulation + combine, f32 Y1/Y2).
    model_bf16 = CONVOL(hop=hop, directed=False,
                        compute_dtype=jnp.bfloat16, allow_fused=False)
    feat_b, _, _ = model_bf16(A_p, A_n, x_p, x_n)
    jax.block_until_ready(feat_b)
    assert jnp.allclose(feat_b, ref_feat, atol=5e-2, rtol=5e-2)

    print("KERNEL_OK")
</pallas_src>

<mosaic_0001>
module attributes {stable_mosaic.version = 11 : i64} {
  func.func @_fused_kernel(%arg0: memref<384x384xf32, #tpu.memory_space<vmem>>, %arg1: memref<384x384xf32, #tpu.memory_space<vmem>>, %arg2: memref<384x256xf32, #tpu.memory_space<vmem>>, %arg3: memref<384x128xf32, #tpu.memory_space<vmem>>, %arg4: memref<5xf32, #tpu.memory_space<smem>>, %arg5: memref<6xf32, #tpu.memory_space<smem>>, %arg6: memref<384x256xf32, #tpu.memory_space<vmem>>) attributes {dimension_semantics = [], scalar_prefetch = 0 : i64, scratch_operands = 0 : i64, tpu.core_type = #tpu.core_type<tc>} {
    %c0 = arith.constant 0 : index
    %c0_0 = arith.constant 0 : index
    %0 = vector.load %arg0[%c0, %c0_0] : memref<384x384xf32, #tpu.memory_space<vmem>>, vector<384x384xf32>
    %c0_1 = arith.constant 0 : index
    %c0_2 = arith.constant 0 : index
    %1 = vector.load %arg1[%c0_1, %c0_2] : memref<384x384xf32, #tpu.memory_space<vmem>>, vector<384x384xf32>
    %c0_3 = arith.constant 0 : index
    %c0_4 = arith.constant 0 : index
    %2 = vector.load %arg2[%c0_3, %c0_4] : memref<384x256xf32, #tpu.memory_space<vmem>>, vector<384x256xf32>
    %cst = arith.constant dense<0.000000e+00> : vector<384x256xf32>
    %3 = tpu.matmul %0, %2, %cst {dimension_numbers = #tpu.dot_dimension_numbers<[1], [0], [0], [1], [0, 0, 1, 1], [], []>} : vector<384x384xf32>, vector<384x256xf32>, vector<384x256xf32> -> vector<384x256xf32>
    %c0_5 = arith.constant 0 : index
    %c128 = arith.constant 128 : index
    %4 = vector.load %arg2[%c0_5, %c128] : memref<384x256xf32, #tpu.memory_space<vmem>>, vector<384x128xf32>
    %cst_6 = arith.constant dense<0.000000e+00> : vector<384x128xf32>
    %5 = tpu.matmul %1, %4, %cst_6 {dimension_numbers = #tpu.dot_dimension_numbers<[1], [0], [0], [1], [0, 0, 1, 1], [], []>} : vector<384x384xf32>, vector<384x128xf32>, vector<384x128xf32> -> vector<384x128xf32>
    %6 = vector.extract_strided_slice %3 {offsets = [0, 0], sizes = [384, 128], strides = [1, 1]} : vector<384x256xf32> to vector<384x128xf32>
    %7 = tpu.concatenate %6, %5 in 1 : vector<384x128xf32>, vector<384x128xf32> -> vector<384x256xf32>
    %cst_7 = arith.constant dense<0.000000e+00> : vector<384x256xf32>
    %8 = tpu.matmul %0, %7, %cst_7 {dimension_numbers = #tpu.dot_dimension_numbers<[1], [0], [0], [1], [0, 0, 1, 1], [], []>} : vector<384x384xf32>, vector<384x256xf32>, vector<384x256xf32> -> vector<384x256xf32>
    %9 = vector.extract_strided_slice %3 {offsets = [0, 128], sizes = [384, 128], strides = [1, 1]} : vector<384x256xf32> to vector<384x128xf32>
    %cst_8 = arith.constant dense<0.000000e+00> : vector<384x128xf32>
    %10 = tpu.matmul %1, %9, %cst_8 {dimension_numbers = #tpu.dot_dimension_numbers<[1], [0], [0], [1], [0, 0, 1, 1], [], []>} : vector<384x384xf32>, vector<384x128xf32>, vector<384x128xf32> -> vector<384x128xf32>
    %c0_9 = arith.constant 0 : index
    %11 = memref.load %arg4[%c0_9] : memref<5xf32, #tpu.memory_space<smem>>
    %c1 = arith.constant 1 : index
    %12 = memref.load %arg4[%c1] : memref<5xf32, #tpu.memory_space<smem>>
    %c2 = arith.constant 2 : index
    %13 = memref.load %arg4[%c2] : memref<5xf32, #tpu.memory_space<smem>>
    %c0_10 = arith.constant 0 : index
    %14 = memref.load %arg5[%c0_10] : memref<6xf32, #tpu.memory_space<smem>>
    %c1_11 = arith.constant 1 : index
    %15 = memref.load %arg5[%c1_11] : memref<6xf32, #tpu.memory_space<smem>>
    %c2_12 = arith.constant 2 : index
    %16 = memref.load %arg5[%c2_12] : memref<6xf32, #tpu.memory_space<smem>>
    %c0_13 = arith.constant 0 : index
    %c0_14 = arith.constant 0 : index
    %17 = vector.load %arg3[%c0_13, %c0_14] : memref<384x128xf32, #tpu.memory_space<vmem>>, vector<384x128xf32>
    %18 = vector.extract_strided_slice %8 {offsets = [0, 0], sizes = [384, 128], strides = [1, 1]} : vector<384x256xf32> to vector<384x128xf32>
    %19 = vector.broadcast %13 : f32 to vector<384x128xf32>
    %20 = arith.mulf %19, %18 : vector<384x128xf32>
    %21 = vector.extract_strided_slice %3 {offsets = [0, 0], sizes = [384, 128], strides = [1, 1]} : vector<384x256xf32> to vector<384x128xf32>
    %22 = vector.broadcast %12 : f32 to vector<384x128xf32>
    %23 = arith.mulf %22, %21 : vector<384x128xf32>
    %24 = arith.addf %20, %23 : vector<384x128xf32>
    %25 = vector.broadcast %11 : f32 to vector<384x128xf32>
    %26 = arith.mulf %25, %17 : vector<384x128xf32>
    %27 = arith.addf %24, %26 : vector<384x128xf32>
    %c0_15 = arith.constant 0 : index
    %c0_16 = arith.constant 0 : index
    %28 = vector.load %arg6[%c0_15, %c0_16] : memref<384x256xf32, #tpu.memory_space<vmem>>, vector<384x128xf32>
    tpu.vector_store %arg6[%c0_15, %c0_16], %27 {strides = array<i32>} : memref<384x256xf32, #tpu.memory_space<vmem>>, vector<384x128xf32>,
    %29 = vector.extract_strided_slice %8 {offsets = [0, 128], sizes = [384, 128], strides = [1, 1]} : vector<384x256xf32> to vector<384x128xf32>
    %30 = vector.broadcast %16 : f32 to vector<384x128xf32>
    %31 = arith.mulf %30, %29 : vector<384x128xf32>
    %32 = vector.broadcast %15 : f32 to vector<384x128xf32>
    %33 = arith.mulf %32, %10 : vector<384x128xf32>
    %34 = arith.addf %31, %33 : vector<384x128xf32>
    %35 = vector.broadcast %14 : f32 to vector<384x128xf32>
    %36 = arith.mulf %35, %5 : vector<384x128xf32>
    %37 = arith.addf %34, %36 : vector<384x128xf32>
    %c0_17 = arith.constant 0 : index
    %c128_18 = arith.constant 128 : index
    %38 = vector.load %arg6[%c0_17, %c128_18] : memref<384x256xf32, #tpu.memory_space<vmem>>, vector<384x128xf32>
    tpu.vector_store %arg6[%c0_17, %c128_18], %37 {strides = array<i32>} : memref<384x256xf32, #tpu.memory_space<vmem>>, vector<384x128xf32>,
    return
  }
}

</mosaic_0001>

<llo_original>
// kernel: tpu_custom_call.1
$region0: #{tpu_custom_call.1}
  #allocation0 [shape = 'u32[]', space=smem, size = 0x4, offset = 0x4, fixed_abs, tag = 'smem constant byte address 0x4 - core index']
  #allocation1 [shape = 'u32[72,128]{1,0:T(1,128)}', space=vmem, size = 0x9000, scoped, tag = 'internal scratch']
  %s0 = inlined_call_operand.hbm [shape: f32[384,384], index: 0, kind: input, shape index: {}]
  %s1 = inlined_call_operand.hbm [shape: f32[384,384], index: 1, kind: input, shape index: {}]
  %s2 = inlined_call_operand.hbm [shape: f32[384,256], index: 2, kind: input, shape index: {}]
  %s3 = inlined_call_operand.hbm [shape: f32[384,128], index: 3, kind: input, shape index: {}]
  %s4 = inlined_call_operand.vmem [shape: f32[5], index: 4, kind: input, shape index: {}]
  %s5 = inlined_call_operand.vmem [shape: f32[6], index: 5, kind: input, shape index: {}]
  %s6 = inlined_call_operand.hbm [shape: f32[384,256], index: 6, kind: output, shape index: {}]
  %s7 = sld [smem:[#allocation0]]
  $region58: #{tpu_custom_call.1} parent=0
    _
  %s9 = ssub.s32 1, %s7
  %s10 = scalar_select 0, %s9, %s7
  $region1: #{tpu_custom_call.1} parent=0
    #allocation2 [shape = 'u8[589824]{0}', space=vmem, size = 0x90000, scoped, tag = 'input window, operand 0, single buffered']
    #allocation3 [shape = 's32[1]{0}', space=sflag, size = 0x4, scoped, tag = 'scoped memory for tpu_custom_call.1']
    #allocation4 [shape = 's32[1]{0}', space=sflag, size = 0x4, scoped, tag = 'scoped memory for tpu_custom_call.1']
    #allocation5 [shape = 's32[1]{0}', space=sflag, size = 0x4, scoped, tag = 'scoped memory for tpu_custom_call.1']
    #allocation6 [shape = 'u8[589824]{0}', space=vmem, size = 0x90000, scoped, tag = 'input window, operand 1, single buffered']
    #allocation7 [shape = 's32[1]{0}', space=sflag, size = 0x4, scoped, tag = 'scoped memory for tpu_custom_call.1']
    #allocation8 [shape = 'u8[393216]{0}', space=vmem, size = 0x60000, scoped, tag = 'input window, operand 2, single buffered']
    #allocation9 [shape = 'u8[196608]{0}', space=vmem, size = 0x30000, scoped, tag = 'input window, operand 3, single buffered']
    #allocation10 [shape = 's32[1]{0}', space=sflag, size = 0x4, scoped, tag = 'scoped memory for tpu_custom_call.1']
    #allocation11 [shape = 'u8[512]{0}', space=smem, size = 0x200, scoped, tag = 'input window, operand 4, single buffered']
    #allocation12 [shape = 'u8[512]{0}', space=smem, size = 0x200, scoped, tag = 'input window, operand 5, single buffered']
    #allocation13 [shape = 's32[1]{0}', space=sflag, size = 0x4, scoped, tag = 'scoped memory for tpu_custom_call.1']
    #allocation14 [shape = 'u8[393216]{0}', space=vmem, size = 0x60000, scoped, tag = 'output window, operand 0, single buffered']
    %11 = vsyncpa [#allocation3], 0
    %12 = vsyncpa [#allocation7], 0
    %13 = vsyncpa [#allocation10], 0
    %14 = vsyncpa [#allocation5], 0
    %15 = vsyncpa [#allocation13], 0
    %16 = vsyncpa [#allocation4], 0
    // Predicated region
    $region2: #{tpu_custom_call.1} parent=1 // pred_check
      _
    $region3: #{tpu_custom_call.1} parent=1 // pred_check_branch
      %18 = sbr.rel (0) target = $region5
    $region4: #{tpu_custom_call.1} parent=1 // pred_region
      %20 = vsyncadd [#allocation3], 0
      %s21 = sshll.u32 %s0, 4
      %s22 = int_to_ptr.hbm [resolvable:$true] %s21
      %s23 = sshll.u32 [#allocation2], 4
      %s24 = int_to_ptr.vmem [resolvable:$true] %s23
      %29 = dma.hbm_to_vmem [thread:$0]  %s22, 18432, %s24, [#allocation3], 384, 384, 24
    $region5: #{tpu_custom_call.1} parent=1 // pred_fallthru
      _
    // Predicated region
    $region6: #{tpu_custom_call.1} parent=1 // pred_check
      _
    $region7: #{tpu_custom_call.1} parent=1 // pred_check_branch
      %31 = sbr.rel (0) target = $region9
    $region8: #{tpu_custom_call.1} parent=1 // pred_region
      %33 = vsyncadd [#allocation7], 0
      %s34 = sshll.u32 %s1, 4
      %s35 = int_to_ptr.hbm [resolvable:$true] %s34
      %s36 = sshll.u32 [#allocation6], 4
      %s37 = int_to_ptr.vmem [resolvable:$true] %s36
      %42 = dma.hbm_to_vmem [thread:$0]  %s35, 18432, %s37, [#allocation7], 384, 384, 24
    $region9: #{tpu_custom_call.1} parent=1 // pred_fallthru
      _
    // Predicated region
    $region10: #{tpu_custom_call.1} parent=1 // pred_check
      _
    $region11: #{tpu_custom_call.1} parent=1 // pred_check_branch
      %44 = sbr.rel (0) target = $region13
    $region12: #{tpu_custom_call.1} parent=1 // pred_region
      %46 = vsyncadd [#allocation7], 0
      %s47 = sshll.u32 %s2, 4
      %s48 = int_to_ptr.hbm [resolvable:$true] %s47
      %s49 = sshll.u32 [#allocation8], 4
      %s50 = int_to_ptr.vmem [resolvable:$true] %s49
      %55 = dma.hbm_to_vmem [thread:$0]  %s48, 12288, %s50, [#allocation7], 256, 256, 16
    $region13: #{tpu_custom_call.1} parent=1 // pred_fallthru
      _
    // Predicated region
    $region14: #{tpu_custom_call.1} parent=1 // pred_check
      _
    $region15: #{tpu_custom_call.1} parent=1 // pred_check_branch
      %57 = sbr.rel (0) target = $region17
    $region16: #{tpu_custom_call.1} parent=1 // pred_region
      %59 = vsyncadd [#allocation10], 0
      %s60 = sshll.u32 %s3, 4
      %s61 = int_to_ptr.hbm [resolvable:$true] %s60
      %s62 = sshll.u32 [#allocation9], 4
      %s63 = int_to_ptr.vmem [resolvable:$true] %s62
      %68 = dma.hbm_to_vmem [thread:$0]  %s61, 6144, %s63, [#allocation10], 128, 128, 8
    $region17: #{tpu_custom_call.1} parent=1 // pred_fallthru
      _
    // Predicated region
    $region18: #{tpu_custom_call.1} parent=1 // pred_check
      _
    $region19: #{tpu_custom_call.1} parent=1 // pred_check_branch
      %70 = sbr.rel (0) target = $region21
    $region20: #{tpu_custom_call.1} parent=1 // pred_region
      %72 = vsyncadd [#allocation5], 0
      %s74 = sshll.u32 %s4, 4
      %s75 = int_to_ptr.vmem [resolvable:$true] %s74
      %77 = dma.vmem_to_smem %s75, 16, [#allocation11], [#allocation5]
    $region21: #{tpu_custom_call.1} parent=1 // pred_fallthru
      _
    // Predicated region
    $region22: #{tpu_custom_call.1} parent=1 // pred_check
      _
    $region23: #{tpu_custom_call.1} parent=1 // pred_check_branch
      %79 = sbr.rel (0) target = $region25
    $region24: #{tpu_custom_call.1} parent=1 // pred_region
      %81 = vsyncadd [#allocation13], 0
      %s83 = sshll.u32 %s5, 4
      %s84 = int_to_ptr.vmem [resolvable:$true] %s83
      %86 = dma.vmem_to_smem %s84, 16, [#allocation12], [#allocation13]
    $region25: #{tpu_custom_call.1} parent=1 // pred_fallthru
      _
    // Predicated region
    $region26: #{tpu_custom_call.1} parent=1 // pred_check
      _
    $region27: #{tpu_custom_call.1} parent=1 // pred_check_branch
      %88 = sbr.rel (0) target = $region29
    $region28: #{tpu_custom_call.1} parent=1 // pred_region
      %90 = dma.done [#allocation3], 18432
    $region29: #{tpu_custom_call.1} parent=1 // pred_fallthru
      _
    // Predicated region
    $region30: #{tpu_custom_call.1} parent=1 // pred_check
      _
    $region31: #{tpu_custom_call.1} parent=1 // pred_check_branch
      %92 = sbr.rel (0) target = $region33
    $region32: #{tpu_custom_call.1} parent=1 // pred_region
      %94 = dma.done [#allocation7], 18432
    $region33: #{tpu_custom_call.1} parent=1 // pred_fallthru
      _
    // Predicated region
    $region34: #{tpu_custom_call.1} parent=1 // pred_check
      _
    $region35: #{tpu_custom_call.1} parent=1 // pred_check_branch
      %96 = sbr.rel (0) target = $region37
    $region36: #{tpu_custom_call.1} parent=1 // pred_region
      %98 = dma.done [#allocation7], 12288
    $region37: #{tpu_custom_call.1} parent=1 // pred_fallthru
      _
    // Predicated region
    $region38: #{tpu_custom_call.1} parent=1 // pred_check
      _
    $region39: #{tpu_custom_call.1} parent=1 // pred_check_branch
      %100 = sbr.rel (0) target = $region41
    $region40: #{tpu_custom_call.1} parent=1 // pred_region
      %102 = dma.done [#allocation10], 6144
    $region41: #{tpu_custom_call.1} parent=1 // pred_fallthru
      _
    // Predicated region
    $region42: #{tpu_custom_call.1} parent=1 // pred_check
      _
    $region43: #{tpu_custom_call.1} parent=1 // pred_check_branch
      %104 = sbr.rel (0) target = $region45
    $region44: #{tpu_custom_call.1} parent=1 // pred_region
      %106 = dma.done [#allocation5], 16
    $region45: #{tpu_custom_call.1} parent=1 // pred_fallthru
      _
    // Predicated region
    $region46: #{tpu_custom_call.1} parent=1 // pred_check
      _
    $region47: #{tpu_custom_call.1} parent=1 // pred_check_branch
      %108 = sbr.rel (0) target = $region49
    $region48: #{tpu_custom_call.1} parent=1 // pred_region
      %110 = dma.done [#allocation13], 16
    $region49: #{tpu_custom_call.1} parent=1 // pred_fallthru
      _
    %111 = sfence
    %v112 = vld [vmem:[#allocation2] sm:$0xff]
    %v113 = vld [vmem:[#allocation2 + $0x8] sm:$0xff]
    %v114 = vld [vmem:[#allocation2 + $0x10] sm:$0xff]
    %v115 = vld [vmem:[#allocation2 + $0x18] sm:$0xff]
    %v116 = vld [vmem:[#allocation2 + $0x20] sm:$0xff]
    %v117 = vld [vmem:[#allocation2 + $0x28] sm:$0xff]
    %v118 = vld [vmem:[#allocation2 + $0x30] sm:$0xff]
    %v119 = vld [vmem:[#allocation2 + $0x38] sm:$0xff]
    %v120 = vld [vmem:[#allocation2 + $0x40] sm:$0xff]
    %v121 = vld [vmem:[#allocation2 + $0x48] sm:$0xff]
    %v122 = vld [vmem:[#allocation2 + $0x50] sm:$0xff]
    %v123 = vld [vmem:[#allocation2 + $0x58] sm:$0xff]
    %v124 = vld [vmem:[#allocation2 + $0x60] sm:$0xff]
    %v125 = vld [vmem:[#allocation2 + $0x68] sm:$0xff]
    %v126 = vld [vmem:[#allocation2 + $0x70] sm:$0xff]
    %v127 = vld [vmem:[#allocation2 + $0x78] sm:$0xff]
    %v128 = vld [vmem:[#allocation2 + $0x80] sm:$0xff]
    %v129 = vld [vmem:[#allocation2 + $0x88] sm:$0xff]
    %v130 = vld [vmem:[#allocation2 + $0x90] sm:$0xff]
    %v131 = vld [vmem:[#allocation2 + $0x98] sm:$0xff]
    %v132 = vld [vmem:[#allocation2 + $0xa0] sm:$0xff]
    %v133 = vld [vmem:[#allocation2 + $0xa8] sm:$0xff]
    %v134 = vld [vmem:[#allocation2 + $0xb0] sm:$0xff]
    %v135 = vld [vmem:[#allocation2 + $0xb8] sm:$0xff]
    %v136 = vld [vmem:[#allocation2 + $0xc0] sm:$0xff]
    %v137 = vld [vmem:[#allocation2 + $0xc8] sm:$0xff]
    %v138 = vld [vmem:[#allocation2 + $0xd0] sm:$0xff]
    %v139 = vld [vmem:[#allocation2 + $0xd8] sm:$0xff]
    %v140 = vld [vmem:[#allocation2 + $0xe0] sm:$0xff]
    %v141 = vld [vmem:[#allocation2 + $0xe8] sm:$0xff]
    %v142 = vld [vmem:[#allocation2 + $0xf0] sm:$0xff]
    %v143 = vld [vmem:[#allocation2 + $0xf8] sm:$0xff]
    %v144 = vld [vmem:[#allocation2 + $0x100] sm:$0xff]
    %v145 = vld [vmem:[#allocation2 + $0x108] sm:$0xff]
    %v146 = vld [vmem:[#allocation2 + $0x110] sm:$0xff]
    %v147 = vld [vmem:[#allocation2 + $0x118] sm:$0xff]
    %v148 = vld [vmem:[#allocation2 + $0x120] sm:$0xff]
    %v149 = vld [vmem:[#allocation2 + $0x128] sm:$0xff]
    %v150 = vld [vmem:[#allocation2 + $0x130] sm:$0xff]
    %v151 = vld [vmem:[#allocation2 + $0x138] sm:$0xff]
    %v152 = vld [vmem:[#allocation2 + $0x140] sm:$0xff]
    %v153 = vld [vmem:[#allocation2 + $0x148] sm:$0xff]
    %v154 = vld [vmem:[#allocation2 + $0x150] sm:$0xff]
    %v155 = vld [vmem:[#allocation2 + $0x158] sm:$0xff]
    %v156 = vld [vmem:[#allocation2 + $0x160] sm:$0xff]
    %v157 = vld [vmem:[#allocation2 + $0x168] sm:$0xff]
    %v158 = vld [vmem:[#allocation2 + $0x170] sm:$0xff]
    %v159 = vld [vmem:[#allocation2 + $0x178] sm:$0xff]
    %v160 = vld [vmem:[#allocation2 + $0x180] sm:$0xff]
    %v161 = vld [vmem:[#allocation2 + $0x188] sm:$0xff]
    %v162 = vld [vmem:[#allocation2 + $0x190] sm:$0xff]
    %v163 = vld [vmem:[#allocation2 + $0x198] sm:$0xff]
    %v164 = vld [vmem:[#allocation2 + $0x1a0] sm:$0xff]
    %v165 = vld [vmem:[#allocation2 + $0x1a8] sm:$0xff]
    %v166 = vld [vmem:[#allocation2 + $0x1b0] sm:$0xff]
    %v167 = vld [vmem:[#allocation2 + $0x1b8] sm:$0xff]
    %v168 = vld [vmem:[#allocation2 + $0x1c0] sm:$0xff]
    %v169 = vld [vmem:[#allocation2 + $0x1c8] sm:$0xff]
    %v170 = vld [vmem:[#allocation2 + $0x1d0] sm:$0xff]
    %v171 = vld [vmem:[#allocation2 + $0x1d8] sm:$0xff]
    %v172 = vld [vmem:[#allocation2 + $0x1e0] sm:$0xff]
    %v173 = vld [vmem:[#allocation2 + $0x1e8] sm:$0xff]
    %v174 = vld [vmem:[#allocation2 + $0x1f0] sm:$0xff]
    %v175 = vld [vmem:[#allocation2 + $0x1f8] sm:$0xff]
    %v176 = vld [vmem:[#allocation2 + $0x200] sm:$0xff]
    %v177 = vld [vmem:[#allocation2 + $0x208] sm:$0xff]
    %v178 = vld [vmem:[#allocation2 + $0x210] sm:$0xff]
    %v179 = vld [vmem:[#allocation2 + $0x218] sm:$0xff]
    %v180 = vld [vmem:[#allocation2 + $0x220] sm:$0xff]
    %v181 = vld [vmem:[#allocation2 + $0x228] sm:$0xff]
    %v182 = vld [vmem:[#allocation2 + $0x230] sm:$0xff]
    %v183 = vld [vmem:[#allocation2 + $0x238] sm:$0xff]
    %v184 = vld [vmem:[#allocation2 + $0x240] sm:$0xff]
    %v185 = vld [vmem:[#allocation2 + $0x248] sm:$0xff]
    %v186 = vld [vmem:[#allocation2 + $0x250] sm:$0xff]
    %v187 = vld [vmem:[#allocation2 + $0x258] sm:$0xff]
    %v188 = vld [vmem:[#allocation2 + $0x260] sm:$0xff]
    %v189 = vld [vmem:[#allocation2 + $0x268] sm:$0xff]
    %v190 = vld [vmem:[#allocation2 + $0x270] sm:$0xff]
    %v191 = vld [vmem:[#allocation2 + $0x278] sm:$0xff]
    %v192 = vld [vmem:[#allocation2 + $0x280] sm:$0xff]
    %v193 = vld [vmem:[#allocation2 + $0x288] sm:$0xff]
    %v194 = vld [vmem:[#allocation2 + $0x290] sm:$0xff]
    %v195 = vld [vmem:[#allocation2 + $0x298] sm:$0xff]
    %v196 = vld [vmem:[#allocation2 + $0x2a0] sm:$0xff]
    %v197 = vld [vmem:[#allocation2 + $0x2a8] sm:$0xff]
    %v198 = vld [vmem:[#allocation2 + $0x2b0] sm:$0xff]
    %v199 = vld [vmem:[#allocation2 + $0x2b8] sm:$0xff]
    %v200 = vld [vmem:[#allocation2 + $0x2c0] sm:$0xff]
    %v201 = vld [vmem:[#allocation2 + $0x2c8] sm:$0xff]
    %v202 = vld [vmem:[#allocation2 + $0x2d0] sm:$0xff]
    %v203 = vld [vmem:[#allocation2 + $0x2d8] sm:$0xff]
    %v204 = vld [vmem:[#allocation2 + $0x2e0] sm:$0xff]
    %v205 = vld [vmem:[#allocation2 + $0x2e8] sm:$0xff]
    %v206 = vld [vmem:[#allocation2 + $0x2f0] sm:$0xff]
    %v207 = vld [vmem:[#allocation2 + $0x2f8] sm:$0xff]
    %v208 = vld [vmem:[#allocation2 + $0x300] sm:$0xff]
    %v209 = vld [vmem:[#allocation2 + $0x308] sm:$0xff]
    %v210 = vld [vmem:[#allocation2 + $0x310] sm:$0xff]
    %v211 = vld [vmem:[#allocation2 + $0x318] sm:$0xff]
    %v212 = vld [vmem:[#allocation2 + $0x320] sm:$0xff]
    %v213 = vld [vmem:[#allocation2 + $0x328] sm:$0xff]
    %v214 = vld [vmem:[#allocation2 + $0x330] sm:$0xff]
    %v215 = vld [vmem:[#allocation2 + $0x338] sm:$0xff]
    %v216 = vld [vmem:[#allocation2 + $0x340] sm:$0xff]
    %v217 = vld [vmem:[#allocation2 + $0x348] sm:$0xff]
    %v218 = vld [vmem:[#allocation2 + $0x350] sm:$0xff]
    %v219 = vld [vmem:[#allocation2 + $0x358] sm:$0xff]
    %v220 = vld [vmem:[#allocation2 + $0x360] sm:$0xff]
    %v221 = vld [vmem:[#allocation2 + $0x368] sm:$0xff]
    %v222 = vld [vmem:[#allocation2 + $0x370] sm:$0xff]
    %v223 = vld [vmem:[#allocation2 + $0x378] sm:$0xff]
    %v224 = vld [vmem:[#allocation2 + $0x380] sm:$0xff]
    %v225 = vld [vmem:[#allocation2 + $0x388] sm:$0xff]
    %v226 = vld [vmem:[#allocation2 + $0x390] sm:$0xff]
    %v227 = vld [vmem:[#allocation2 + $0x398] sm:$0xff]
    %v228 = vld [vmem:[#allocation2 + $0x3a0] sm:$0xff]
    %v229 = vld [vmem:[#allocation2 + $0x3a8] sm:$0xff]
    %v230 = vld [vmem:[#allocation2 + $0x3b0] sm:$0xff]
    %v231 = vld [vmem:[#allocation2 + $0x3b8] sm:$0xff]
    %v232 = vld [vmem:[#allocation2 + $0x3c0] sm:$0xff]
    %v233 = vld [vmem:[#allocation2 + $0x3c8] sm:$0xff]
    %v234 = vld [vmem:[#allocation2 + $0x3d0] sm:$0xff]
    %v235 = vld [vmem:[#allocation2 + $0x3d8] sm:$0xff]
    %v236 = vld [vmem:[#allocation2 + $0x3e0] sm:$0xff]
    %v237 = vld [vmem:[#allocation2 + $0x3e8] sm:$0xff]
    %v238 = vld [vmem:[#allocation2 + $0x3f0] sm:$0xff]
    %v239 = vld [vmem:[#allocation2 + $0x3f8] sm:$0xff]
    %v240 = vld [vmem:[#allocation2 + $0x400] sm:$0xff]
    %v241 = vld [vmem:[#allocation2 + $0x408] sm:$0xff]
    %v242 = vld [vmem:[#allocation2 + $0x410] sm:$0xff]
    %v243 = vld [vmem:[#allocation2 + $0x418] sm:$0xff]
    %v244 = vld [vmem:[#allocation2 + $0x420] sm:$0xff]
    %v245 = vld [vmem:[#allocation2 + $0x428] sm:$0xff]
    %v246 = vld [vmem:[#allocation2 + $0x430] sm:$0xff]
    %v247 = vld [vmem:[#allocation2 + $0x438] sm:$0xff]
    %v248 = vld [vmem:[#allocation2 + $0x440] sm:$0xff]
    %v249 = vld [vmem:[#allocation2 + $0x448] sm:$0xff]
    %v250 = vld [vmem:[#allocation2 + $0x450] sm:$0xff]
    %v251 = vld [vmem:[#allocation2 + $0x458] sm:$0xff]
    %v252 = vld [vmem:[#allocation2 + $0x460] sm:$0xff]
    %v253 = vld [vmem:[#allocation2 + $0x468] sm:$0xff]
    %v254 = vld [vmem:[#allocation2 + $0x470] sm:$0xff]
    %v255 = vld [vmem:[#allocation2 + $0x478] sm:$0xff]
    %v256 = vld [vmem:[#allocation6] sm:$0xff]
    %v257 = vld [vmem:[#allocation6 + $0x8] sm:$0xff]
    %v258 = vld [vmem:[#allocation6 + $0x10] sm:$0xff]
    %v259 = vld [vmem:[#allocation6 + $0x18] sm:$0xff]
    %v260 = vld [vmem:[#allocation6 + $0x20] sm:$0xff]
    %v261 = vld [vmem:[#allocation6 + $0x28] sm:$0xff]
    %v262 = vld [vmem:[#allocation6 + $0x30] sm:$0xff]
    %v263 = vld [vmem:[#allocation6 + $0x38] sm:$0xff]
    %v264 = vld [vmem:[#allocation6 + $0x40] sm:$0xff]
    %v265 = vld [vmem:[#allocation6 + $0x48] sm:$0xff]
    %v266 = vld [vmem:[#allocation6 + $0x50] sm:$0xff]
    %v267 = vld [vmem:[#allocation6 + $0x58] sm:$0xff]
    %v268 = vld [vmem:[#allocation6 + $0x60] sm:$0xff]
    %v269 = vld [vmem:[#allocation6 + $0x68] sm:$0xff]
    %v270 = vld [vmem:[#allocation6 + $0x70] sm:$0xff]
    %v271 = vld [vmem:[#allocation6 + $0x78] sm:$0xff]
    %v272 = vld [vmem:[#allocation6 + $0x80] sm:$0xff]
    %v273 = vld [vmem:[#allocation6 + $0x88] sm:$0xff]
    %v274 = vld [vmem:[#allocation6 + $0x90] sm:$0xff]
    %v275 = vld [vmem:[#allocation6 + $0x98] sm:$0xff]
    %v276 = vld [vmem:[#allocation6 + $0xa0] sm:$0xff]
    %v277 = vld [vmem:[#allocation6 + $0xa8] sm:$0xff]
    %v278 = vld [vmem:[#allocation6 + $0xb0] sm:$0xff]
    %v279 = vld [vmem:[#allocation6 + $0xb8] sm:$0xff]
    %v280 = vld [vmem:[#allocation6 + $0xc0] sm:$0xff]
    %v281 = vld [vmem:[#allocation6 + $0xc8] sm:$0xff]
    %v282 = vld [vmem:[#allocation6 + $0xd0] sm:$0xff]
    %v283 = vld [vmem:[#allocation6 + $0xd8] sm:$0xff]
    %v284 = vld [vmem:[#allocation6 + $0xe0] sm:$0xff]
    %v285 = vld [vmem:[#allocation6 + $0xe8] sm:$0xff]
    %v286 = vld [vmem:[#allocation6 + $0xf0] sm:$0xff]
    %v287 = vld [vmem:[#allocation6 + $0xf8] sm:$0xff]
    %v288 = vld [vmem:[#allocation6 + $0x100] sm:$0xff]
    %v289 = vld [vmem:[#allocation6 + $0x108] sm:$0xff]
    %v290 = vld [vmem:[#allocation6 + $0x110] sm:$0xff]
    %v291 = vld [vmem:[#allocation6 + $0x118] sm:$0xff]
    %v292 = vld [vmem:[#allocation6 + $0x120] sm:$0xff]
    %v293 = vld [vmem:[#allocation6 + $0x128] sm:$0xff]
    %v294 = vld [vmem:[#allocation6 + $0x130] sm:$0xff]
    %v295 = vld [vmem:[#allocation6 + $0x138] sm:$0xff]
    %v296 = vld [vmem:[#allocation6 + $0x140] sm:$0xff]
    %v297 = vld [vmem:[#allocation6 + $0x148] sm:$0xff]
    %v298 = vld [vmem:[#allocation6 + $0x150] sm:$0xff]
    %v299 = vld [vmem:[#allocation6 + $0x158] sm:$0xff]
    %v300 = vld [vmem:[#allocation6 + $0x160] sm:$0xff]
    %v301 = vld [vmem:[#allocation6 + $0x168] sm:$0xff]
    %v302 = vld [vmem:[#allocation6 + $0x170] sm:$0xff]
    %v303 = vld [vmem:[#allocation6 + $0x178] sm:$0xff]
    %v304 = vld [vmem:[#allocation6 + $0x180] sm:$0xff]
    %v305 = vld [vmem:[#allocation6 + $0x188] sm:$0xff]
    %v306 = vld [vmem:[#allocation6 + $0x190] sm:$0xff]
    %v307 = vld [vmem:[#allocation6 + $0x198] sm:$0xff]
    %v308 = vld [vmem:[#allocation6 + $0x1a0] sm:$0xff]
    %v309 = vld [vmem:[#allocation6 + $0x1a8] sm:$0xff]
    %v310 = vld [vmem:[#allocation6 + $0x1b0] sm:$0xff]
    %v311 = vld [vmem:[#allocation6 + $0x1b8] sm:$0xff]
    %v312 = vld [vmem:[#allocation6 + $0x1c0] sm:$0xff]
    %v313 = vld [vmem:[#allocation6 + $0x1c8] sm:$0xff]
    %v314 = vld [vmem:[#allocation6 + $0x1d0] sm:$0xff]
    %v315 = vld [vmem:[#allocation6 + $0x1d8] sm:$0xff]
    %v316 = vld [vmem:[#allocation6 + $0x1e0] sm:$0xff]
    %v317 = vld [vmem:[#allocation6 + $0x1e8] sm:$0xff]
    %v318 = vld [vmem:[#allocation6 + $0x1f0] sm:$0xff]
    %v319 = vld [vmem:[#allocation6 + $0x1f8] sm:$0xff]
    %v320 = vld [vmem:[#allocation6 + $0x200] sm:$0xff]
    %v321 = vld [vmem:[#allocation6 + $0x208] sm:$0xff]
    %v322 = vld [vmem:[#allocation6 + $0x210] sm:$0xff]
    %v323 = vld [vmem:[#allocation6 + $0x218] sm:$0xff]
    %v324 = vld [vmem:[#allocation6 + $0x220] sm:$0xff]
    %v325 = vld [vmem:[#allocation6 + $0x228] sm:$0xff]
    %v326 = vld [vmem:[#allocation6 + $0x230] sm:$0xff]
    %v327 = vld [vmem:[#allocation6 + $0x238] sm:$0xff]
    %v328 = vld [vmem:[#allocation6 + $0x240] sm:$0xff]
    %v329 = vld [vmem:[#allocation6 + $0x248] sm:$0xff]
    %v330 = vld [vmem:[#allocation6 + $0x250] sm:$0xff]
    %v331 = vld [vmem:[#allocation6 + $0x258] sm:$0xff]
    %v332 = vld [vmem:[#allocation6 + $0x260] sm:$0xff]
    %v333 = vld [vmem:[#allocation6 + $0x268] sm:$0xff]
    %v334 = vld [vmem:[#allocation6 + $0x270] sm:$0xff]
    %v335 = vld [vmem:[#allocation6 + $0x278] sm:$0xff]
    %v336 = vld [vmem:[#allocation6 + $0x280] sm:$0xff]
    %v337 = vld [vmem:[#allocation6 + $0x288] sm:$0xff]
    %v338 = vld [vmem:[#allocation6 + $0x290] sm:$0xff]
    %v339 = vld [vmem:[#allocation6 + $0x298] sm:$0xff]
    %v340 = vld [vmem:[#allocation6 + $0x2a0] sm:$0xff]
    %v341 = vld [vmem:[#allocation6 + $0x2a8] sm:$0xff]
    %v342 = vld [vmem:[#allocation6 + $0x2b0] sm:$0xff]
    %v343 = vld [vmem:[#allocation6 + $0x2b8] sm:$0xff]
    %v344 = vld [vmem:[#allocation6 + $0x2c0] sm:$0xff]
    %v345 = vld [vmem:[#allocation6 + $0x2c8] sm:$0xff]
    %v346 = vld [vmem:[#allocation6 + $0x2d0] sm:$0xff]
    %v347 = vld [vmem:[#allocation6 + $0x2d8] sm:$0xff]
    %v348 = vld [vmem:[#allocation6 + $0x2e0] sm:$0xff]
    %v349 = vld [vmem:[#allocation6 + $0x2e8] sm:$0xff]
    %v350 = vld [vmem:[#allocation6 + $0x2f0] sm:$0xff]
    %v351 = vld [vmem:[#allocation6 + $0x2f8] sm:$0xff]
    %v352 = vld [vmem:[#allocation6 + $0x300] sm:$0xff]
    %v353 = vld [vmem:[#allocation6 + $0x308] sm:$0xff]
    %v354 = vld [vmem:[#allocation6 + $0x310] sm:$0xff]
    %v355 = vld [vmem:[#allocation6 + $0x318] sm:$0xff]
    %v356 = vld [vmem:[#allocation6 + $0x320] sm:$0xff]
    %v357 = vld [vmem:[#allocation6 + $0x328] sm:$0xff]
    %v358 = vld [vmem:[#allocation6 + $0x330] sm:$0xff]
    %v359 = vld [vmem:[#allocation6 + $0x338] sm:$0xff]
    %v360 = vld [vmem:[#allocation6 + $0x340] sm:$0xff]
    %v361 = vld [vmem:[#allocation6 + $0x348] sm:$0xff]
    %v362 = vld [vmem:[#allocation6 + $0x350] sm:$0xff]
    %v363 = vld [vmem:[#allocation6 + $0x358] sm:$0xff]
    %v364 = vld [vmem:[#allocation6 + $0x360] sm:$0xff]
    %v365 = vld [vmem:[#allocation6 + $0x368] sm:$0xff]
    %v366 = vld [vmem:[#allocation6 + $0x370] sm:$0xff]
    %v367 = vld [vmem:[#allocation6 + $0x378] sm:$0xff]
    %v368 = vld [vmem:[#allocation6 + $0x380] sm:$0xff]
    %v369 = vld [vmem:[#allocation6 + $0x388] sm:$0xff]
    %v370 = vld [vmem:[#allocation6 + $0x390] sm:$0xff]
    %v371 = vld [vmem:[#allocation6 + $0x398] sm:$0xff]
    %v372 = vld [vmem:[#allocation6 + $0x3a0] sm:$0xff]
    %v373 = vld [vmem:[#allocation6 + $0x3a8] sm:$0xff]
    %v374 = vld [vmem:[#allocation6 + $0x3b0] sm:$0xff]
    %v375 = vld [vmem:[#allocation6 + $0x3b8] sm:$0xff]
    %v376 = vld [vmem:[#allocation6 + $0x3c0] sm:$0xff]
    %v377 = vld [vmem:[#allocation6 + $0x3c8] sm:$0xff]
    %v378 = vld [vmem:[#allocation6 + $0x3d0] sm:$0xff]
    %v379 = vld [vmem:[#allocation6 + $0x3d8] sm:$0xff]
    %v380 = vld [vmem:[#allocation6 + $0x3e0] sm:$0xff]
    %v381 = vld [vmem:[#allocation6 + $0x3e8] sm:$0xff]
    %v382 = vld [vmem:[#allocation6 + $0x3f0] sm:$0xff]
    %v383 = vld [vmem:[#allocation6 + $0x3f8] sm:$0xff]
    %v384 = vld [vmem:[#allocation6 + $0x400] sm:$0xff]
    %v385 = vld [vmem:[#allocation6 + $0x408] sm:$0xff]
    %v386 = vld [vmem:[#allocation6 + $0x410] sm:$0xff]
    %v387 = vld [vmem:[#allocation6 + $0x418] sm:$0xff]
    %v388 = vld [vmem:[#allocation6 + $0x420] sm:$0xff]
    %v389 = vld [vmem:[#allocation6 + $0x428] sm:$0xff]
    %v390 = vld [vmem:[#allocation6 + $0x430] sm:$0xff]
    %v391 = vld [vmem:[#allocation6 + $0x438] sm:$0xff]
    %v392 = vld [vmem:[#allocation6 + $0x440] sm:$0xff]
    %v393 = vld [vmem:[#allocation6 + $0x448] sm:$0xff]
    %v394 = vld [vmem:[#allocation6 + $0x450] sm:$0xff]
    %v395 = vld [vmem:[#allocation6 + $0x458] sm:$0xff]
    %v396 = vld [vmem:[#allocation6 + $0x460] sm:$0xff]
    %v397 = vld [vmem:[#allocation6 + $0x468] sm:$0xff]
    %v398 = vld [vmem:[#allocation6 + $0x470] sm:$0xff]
    %v399 = vld [vmem:[#allocation6 + $0x478] sm:$0xff]
    %v400 = vld [vmem:[#allocation8] sm:$0xff]
    %v401 = vld [vmem:[#allocation8 + $0x8] sm:$0xff]
    %v402 = vld [vmem:[#allocation8 + $0x10] sm:$0xff]
    %v403 = vld [vmem:[#allocation8 + $0x18] sm:$0xff]
    %v404 = vld [vmem:[#allocation8 + $0x20] sm:$0xff]
    %v405 = vld [vmem:[#allocation8 + $0x28] sm:$0xff]
    %v406 = vld [vmem:[#allocation8 + $0x30] sm:$0xff]
    %v407 = vld [vmem:[#allocation8 + $0x38] sm:$0xff]
    %v408 = vld [vmem:[#allocation8 + $0x40] sm:$0xff]
    %v409 = vld [vmem:[#allocation8 + $0x48] sm:$0xff]
    %v410 = vld [vmem:[#allocation8 + $0x50] sm:$0xff]
    %v411 = vld [vmem:[#allocation8 + $0x58] sm:$0xff]
    %v412 = vld [vmem:[#allocation8 + $0x60] sm:$0xff]
    %v413 = vld [vmem:[#allocation8 + $0x68] sm:$0xff]
    %v414 = vld [vmem:[#allocation8 + $0x70] sm:$0xff]
    %v415 = vld [vmem:[#allocation8 + $0x78] sm:$0xff]
    %v416 = vld [vmem:[#allocation8 + $0x80] sm:$0xff]
    %v417 = vld [vmem:[#allocation8 + $0x88] sm:$0xff]
    %v418 = vld [vmem:[#allocation8 + $0x90] sm:$0xff]
    %v419 = vld [vmem:[#allocation8 + $0x98] sm:$0xff]
    %v420 = vld [vmem:[#allocation8 + $0xa0] sm:$0xff]
    %v421 = vld [vmem:[#allocation8 + $0xa8] sm:$0xff]
    %v422 = vld [vmem:[#allocation8 + $0xb0] sm:$0xff]
    %v423 = vld [vmem:[#allocation8 + $0xb8] sm:$0xff]
    %v424 = vld [vmem:[#allocation8 + $0xc0] sm:$0xff]
    %v425 = vld [vmem:[#allocation8 + $0xc8] sm:$0xff]
    %v426 = vld [vmem:[#allocation8 + $0xd0] sm:$0xff]
    %v427 = vld [vmem:[#allocation8 + $0xd8] sm:$0xff]
    %v428 = vld [vmem:[#allocation8 + $0xe0] sm:$0xff]
    %v429 = vld [vmem:[#allocation8 + $0xe8] sm:$0xff]
    %v430 = vld [vmem:[#allocation8 + $0xf0] sm:$0xff]
    %v431 = vld [vmem:[#allocation8 + $0xf8] sm:$0xff]
    %v432 = vld [vmem:[#allocation8 + $0x100] sm:$0xff]
    %v433 = vld [vmem:[#allocation8 + $0x108] sm:$0xff]
    %v434 = vld [vmem:[#allocation8 + $0x110] sm:$0xff]
    %v435 = vld [vmem:[#allocation8 + $0x118] sm:$0xff]
    %v436 = vld [vmem:[#allocation8 + $0x120] sm:$0xff]
    %v437 = vld [vmem:[#allocation8 + $0x128] sm:$0xff]
    %v438 = vld [vmem:[#allocation8 + $0x130] sm:$0xff]
    %v439 = vld [vmem:[#allocation8 + $0x138] sm:$0xff]
    %v440 = vld [vmem:[#allocation8 + $0x140] sm:$0xff]
    %v441 = vld [vmem:[#allocation8 + $0x148] sm:$0xff]
    %v442 = vld [vmem:[#allocation8 + $0x150] sm:$0xff]
    %v443 = vld [vmem:[#allocation8 + $0x158] sm:$0xff]
    %v444 = vld [vmem:[#allocation8 + $0x160] sm:$0xff]
    %v445 = vld [vmem:[#allocation8 + $0x168] sm:$0xff]
    %v446 = vld [vmem:[#allocation8 + $0x170] sm:$0xff]
    %v447 = vld [vmem:[#allocation8 + $0x178] sm:$0xff]
    %v448 = vld [vmem:[#allocation8 + $0x180] sm:$0xff]
    %v449 = vld [vmem:[#allocation8 + $0x188] sm:$0xff]
    %v450 = vld [vmem:[#allocation8 + $0x190] sm:$0xff]
    %v451 = vld [vmem:[#allocation8 + $0x198] sm:$0xff]
    %v452 = vld [vmem:[#allocation8 + $0x1a0] sm:$0xff]
    %v453 = vld [vmem:[#allocation8 + $0x1a8] sm:$0xff]
    %v454 = vld [vmem:[#allocation8 + $0x1b0] sm:$0xff]
    %v455 = vld [vmem:[#allocation8 + $0x1b8] sm:$0xff]
    %v456 = vld [vmem:[#allocation8 + $0x1c0] sm:$0xff]
    %v457 = vld [vmem:[#allocation8 + $0x1c8] sm:$0xff]
    %v458 = vld [vmem:[#allocation8 + $0x1d0] sm:$0xff]
    %v459 = vld [vmem:[#allocation8 + $0x1d8] sm:$0xff]
    %v460 = vld [vmem:[#allocation8 + $0x1e0] sm:$0xff]
    %v461 = vld [vmem:[#allocation8 + $0x1e8] sm:$0xff]
    %v462 = vld [vmem:[#allocation8 + $0x1f0] sm:$0xff]
    %v463 = vld [vmem:[#allocation8 + $0x1f8] sm:$0xff]
    %v464 = vld [vmem:[#allocation8 + $0x200] sm:$0xff]
    %v465 = vld [vmem:[#allocation8 + $0x208] sm:$0xff]
    %v466 = vld [vmem:[#allocation8 + $0x210] sm:$0xff]
    %v467 = vld [vmem:[#allocation8 + $0x218] sm:$0xff]
    %v468 = vld [vmem:[#allocation8 + $0x220] sm:$0xff]
    %v469 = vld [vmem:[#allocation8 + $0x228] sm:$0xff]
    %v470 = vld [vmem:[#allocation8 + $0x230] sm:$0xff]
    %v471 = vld [vmem:[#allocation8 + $0x238] sm:$0xff]
    %v472 = vld [vmem:[#allocation8 + $0x240] sm:$0xff]
    %v473 = vld [vmem:[#allocation8 + $0x248] sm:$0xff]
    %v474 = vld [vmem:[#allocation8 + $0x250] sm:$0xff]
    %v475 = vld [vmem:[#allocation8 + $0x258] sm:$0xff]
    %v476 = vld [vmem:[#allocation8 + $0x260] sm:$0xff]
    %v477 = vld [vmem:[#allocation8 + $0x268] sm:$0xff]
    %v478 = vld [vmem:[#allocation8 + $0x270] sm:$0xff]
    %v479 = vld [vmem:[#allocation8 + $0x278] sm:$0xff]
    %v480 = vld [vmem:[#allocation8 + $0x280] sm:$0xff]
    %v481 = vld [vmem:[#allocation8 + $0x288] sm:$0xff]
    %v482 = vld [vmem:[#allocation8 + $0x290] sm:$0xff]
    %v483 = vld [vmem:[#allocation8 + $0x298] sm:$0xff]
    %v484 = vld [vmem:[#allocation8 + $0x2a0] sm:$0xff]
    %v485 = vld [vmem:[#allocation8 + $0x2a8] sm:$0xff]
    %v486 = vld [vmem:[#allocation8 + $0x2b0] sm:$0xff]
    %v487 = vld [vmem:[#allocation8 + $0x2b8] sm:$0xff]
    %v488 = vld [vmem:[#allocation8 + $0x2c0] sm:$0xff]
    %v489 = vld [vmem:[#allocation8 + $0x2c8] sm:$0xff]
    %v490 = vld [vmem:[#allocation8 + $0x2d0] sm:$0xff]
    %v491 = vld [vmem:[#allocation8 + $0x2d8] sm:$0xff]
    %v492 = vld [vmem:[#allocation8 + $0x2e0] sm:$0xff]
    %v493 = vld [vmem:[#allocation8 + $0x2e8] sm:$0xff]
    %v494 = vld [vmem:[#allocation8 + $0x2f0] sm:$0xff]
    %v495 = vld [vmem:[#allocation8 + $0x2f8] sm:$0xff]
    %496 = vmatpush.msra.mxu0 %v430
    %497 = vmatpush.msra.mxu0 %v428
    %498 = vmatpush.msra.mxu0 %v426
    %499 = vmatpush.msra.mxu0 %v424
    %500 = vmatpush.msra.mxu0 %v422
    %501 = vmatpush.msra.mxu0 %v420
    %502 = vmatpush.msra.mxu0 %v418
    %503 = vmatpush.msra.mxu0 %v416
    %504 = vmatpush.msra.mxu0 %v414
    %505 = vmatpush.msra.mxu0 %v412
    %506 = vmatpush.msra.mxu0 %v410
    %507 = vmatpush.msra.mxu0 %v408
    %508 = vmatpush.msra.mxu0 %v406
    %509 = vmatpush.msra.mxu0 %v404
    %510 = vmatpush.msra.mxu0 %v402
    %511 = vmatpush.msra.mxu0 %v400
    %512 = vmatmul.f32.gmra.mxu0 %v112
    %v513 = vpop.f32.mrf.mxu0
    %v514 = vadd.f32 0.0, %v513
    %515 = vmatmul.f32.gmra.mxu0 %v115
    %v516 = vpop.f32.mrf.mxu0
    %v517 = vadd.f32 0.0, %v516
    %518 = vmatmul.f32.gmra.mxu0 %v118
    %v519 = vpop.f32.mrf.mxu0
    %v520 = vadd.f32 0.0, %v519
    %521 = vmatmul.f32.gmra.mxu0 %v121
    %v522 = vpop.f32.mrf.mxu0
    %v523 = vadd.f32 0.0, %v522
    %524 = vmatmul.f32.gmra.mxu0 %v124
    %v525 = vpop.f32.mrf.mxu0
    %v526 = vadd.f32 0.0, %v525
    %527 = vmatmul.f32.gmra.mxu0 %v127
    %v528 = vpop.f32.mrf.mxu0
    %v529 = vadd.f32 0.0, %v528
    %530 = vmatmul.f32.gmra.mxu0 %v130
    %v531 = vpop.f32.mrf.mxu0
    %v532 = vadd.f32 0.0, %v531
    %533 = vmatmul.f32.gmra.mxu0 %v133
    %v534 = vpop.f32.mrf.mxu0
    %v535 = vadd.f32 0.0, %v534
    %536 = vmatmul.f32.gmra.mxu0 %v136
    %v537 = vpop.f32.mrf.mxu0
    %v538 = vadd.f32 0.0, %v537
    %539 = vmatmul.f32.gmra.mxu0 %v139
    %v540 = vpop.f32.mrf.mxu0
    %v541 = vadd.f32 0.0, %v540
    %542 = vmatmul.f32.gmra.mxu0 %v142
    %v543 = vpop.f32.mrf.mxu0
    %v544 = vadd.f32 0.0, %v543
    %545 = vmatmul.f32.gmra.mxu0 %v145
    %v546 = vpop.f32.mrf.mxu0
    %v547 = vadd.f32 0.0, %v546
    %548 = vmatmul.f32.gmra.mxu0 %v148
    %v549 = vpop.f32.mrf.mxu0
    %v550 = vadd.f32 0.0, %v549
    %551 = vmatmul.f32.gmra.mxu0 %v151
    %v552 = vpop.f32.mrf.mxu0
    %v553 = vadd.f32 0.0, %v552
    %554 = vmatmul.f32.gmra.mxu0 %v154
    %v555 = vpop.f32.mrf.mxu0
    %v556 = vadd.f32 0.0, %v555
    %557 = vmatmul.f32.gmra.mxu0 %v157
    %v558 = vpop.f32.mrf.mxu0
    %v559 = vadd.f32 0.0, %v558
    %560 = vmatmul.f32.gmra.mxu0 %v160
    %v561 = vpop.f32.mrf.mxu0
    %v562 = vadd.f32 0.0, %v561
    %563 = vmatmul.f32.gmra.mxu0 %v163
    %v564 = vpop.f32.mrf.mxu0
    %v565 = vadd.f32 0.0, %v564
    %566 = vmatmul.f32.gmra.mxu0 %v166
    %v567 = vpop.f32.mrf.mxu0
    %v568 = vadd.f32 0.0, %v567
    %569 = vmatmul.f32.gmra.mxu0 %v169
    %v570 = vpop.f32.mrf.mxu0
    %v571 = vadd.f32 0.0, %v570
    %572 = vmatmul.f32.gmra.mxu0 %v172
    %v573 = vpop.f32.mrf.mxu0
    %v574 = vadd.f32 0.0, %v573
    %575 = vmatmul.f32.gmra.mxu0 %v175
    %v576 = vpop.f32.mrf.mxu0
    %v577 = vadd.f32 0.0, %v576
    %578 = vmatmul.f32.gmra.mxu0 %v178
    %v579 = vpop.f32.mrf.mxu0
    %v580 = vadd.f32 0.0, %v579
    %581 = vmatmul.f32.gmra.mxu0 %v181
    %v582 = vpop.f32.mrf.mxu0
    %v583 = vadd.f32 0.0, %v582
    %584 = vmatmul.f32.gmra.mxu0 %v184
    %v585 = vpop.f32.mrf.mxu0
    %v586 = vadd.f32 0.0, %v585
    %587 = vmatmul.f32.gmra.mxu0 %v187
    %v588 = vpop.f32.mrf.mxu0
    %v589 = vadd.f32 0.0, %v588
    %590 = vmatmul.f32.gmra.mxu0 %v190
    %v591 = vpop.f32.mrf.mxu0
    %v592 = vadd.f32 0.0, %v591
    %593 = vmatmul.f32.gmra.mxu0 %v193
    %v594 = vpop.f32.mrf.mxu0
    %v595 = vadd.f32 0.0, %v594
    %596 = vmatmul.f32.gmra.mxu0 %v196
    %v597 = vpop.f32.mrf.mxu0
    %v598 = vadd.f32 0.0, %v597
    %599 = vmatmul.f32.gmra.mxu0 %v199
    %v600 = vpop.f32.mrf.mxu0
    %v601 = vadd.f32 0.0, %v600
    %602 = vmatmul.f32.gmra.mxu0 %v202
    %v603 = vpop.f32.mrf.mxu0
    %v604 = vadd.f32 0.0, %v603
    %605 = vmatmul.f32.gmra.mxu0 %v205
    %v606 = vpop.f32.mrf.mxu0
    %v607 = vadd.f32 0.0, %v606
    %608 = vmatmul.f32.gmra.mxu0 %v208
    %v609 = vpop.f32.mrf.mxu0
    %v610 = vadd.f32 0.0, %v609
    %611 = vmatmul.f32.gmra.mxu0 %v211
    %v612 = vpop.f32.mrf.mxu0
    %v613 = vadd.f32 0.0, %v612
    %614 = vmatmul.f32.gmra.mxu0 %v214
    %v615 = vpop.f32.mrf.mxu0
    %v616 = vadd.f32 0.0, %v615
    %617 = vmatmul.f32.gmra.mxu0 %v217
    %v618 = vpop.f32.mrf.mxu0
    %v619 = vadd.f32 0.0, %v618
    %620 = vmatmul.f32.gmra.mxu0 %v220
    %v621 = vpop.f32.mrf.mxu0
    %v622 = vadd.f32 0.0, %v621
    %623 = vmatmul.f32.gmra.mxu0 %v223
    %v624 = vpop.f32.mrf.mxu0
    %v625 = vadd.f32 0.0, %v624
    %626 = vmatmul.f32.gmra.mxu0 %v226
    %v627 = vpop.f32.mrf.mxu0
    %v628 = vadd.f32 0.0, %v627
    %629 = vmatmul.f32.gmra.mxu0 %v229
    %v630 = vpop.f32.mrf.mxu0
    %v631 = vadd.f32 0.0, %v630
    %632 = vmatmul.f32.gmra.mxu0 %v232
    %v633 = vpop.f32.mrf.mxu0
    %v634 = vadd.f32 0.0, %v633
    %635 = vmatmul.f32.gmra.mxu0 %v235
    %v636 = vpop.f32.mrf.mxu0
    %v637 = vadd.f32 0.0, %v636
    %638 = vmatmul.f32.gmra.mxu0 %v238
    %v639 = vpop.f32.mrf.mxu0
    %v640 = vadd.f32 0.0, %v639
    %641 = vmatmul.f32.gmra.mxu0 %v241
    %v642 = vpop.f32.mrf.mxu0
    %v643 = vadd.f32 0.0, %v642
    %644 = vmatmul.f32.gmra.mxu0 %v244
    %v645 = vpop.f32.mrf.mxu0
    %v646 = vadd.f32 0.0, %v645
    %647 = vmatmul.f32.gmra.mxu0 %v247
    %v648 = vpop.f32.mrf.mxu0
    %v649 = vadd.f32 0.0, %v648
    %650 = vmatmul.f32.gmra.mxu0 %v250
    %v651 = vpop.f32.mrf.mxu0
    %v652 = vadd.f32 0.0, %v651
    %653 = vmatmul.f32.gmra.mxu0 %v253
    %v654 = vpop.f32.mrf.mxu0
    %v655 = vadd.f32 0.0, %v654
    %656 = vdwg.mxu0
    %657 = vmatpush.msra.mxu0 %v462
    %658 = vmatpush.msra.mxu0 %v460
    %659 = vmatpush.msra.mxu0 %v458
    %660 = vmatpush.msra.mxu0 %v456
    %661 = vmatpush.msra.mxu0 %v454
    %662 = vmatpush.msra.mxu0 %v452
    %663 = vmatpush.msra.mxu0 %v450
    %664 = vmatpush.msra.mxu0 %v448
    %665 = vmatpush.msra.mxu0 %v446
    %666 = vmatpush.msra.mxu0 %v444
    %667 = vmatpush.msra.mxu0 %v442
    %668 = vmatpush.msra.mxu0 %v440
    %669 = vmatpush.msra.mxu0 %v438
    %670 = vmatpush.msra.mxu0 %v436
    %671 = vmatpush.msra.mxu0 %v434
    %672 = vmatpush.msra.mxu0 %v432
    %673 = vmatmul.f32.gmra.mxu0 %v113
    %v674 = vpop.f32.mrf.mxu0
    %v675 = vadd.f32 %v514, %v674
    %676 = vmatmul.f32.gmra.mxu0 %v116
    %v677 = vpop.f32.mrf.mxu0
    %v678 = vadd.f32 %v517, %v677
    %679 = vmatmul.f32.gmra.mxu0 %v119
    %v680 = vpop.f32.mrf.mxu0
    %v681 = vadd.f32 %v520, %v680
    %682 = vmatmul.f32.gmra.mxu0 %v122
    %v683 = vpop.f32.mrf.mxu0
    %v684 = vadd.f32 %v523, %v683
    %685 = vmatmul.f32.gmra.mxu0 %v125
    %v686 = vpop.f32.mrf.mxu0
    %v687 = vadd.f32 %v526, %v686
    %688 = vmatmul.f32.gmra.mxu0 %v128
    %v689 = vpop.f32.mrf.mxu0
    %v690 = vadd.f32 %v529, %v689
    %691 = vmatmul.f32.gmra.mxu0 %v131
    %v692 = vpop.f32.mrf.mxu0
    %v693 = vadd.f32 %v532, %v692
    %694 = vmatmul.f32.gmra.mxu0 %v134
    %v695 = vpop.f32.mrf.mxu0
    %v696 = vadd.f32 %v535, %v695
    %697 = vmatmul.f32.gmra.mxu0 %v137
    %v698 = vpop.f32.mrf.mxu0
    %v699 = vadd.f32 %v538, %v698
    %700 = vmatmul.f32.gmra.mxu0 %v140
    %v701 = vpop.f32.mrf.mxu0
    %v702 = vadd.f32 %v541, %v701
    %703 = vmatmul.f32.gmra.mxu0 %v143
    %v704 = vpop.f32.mrf.mxu0
    %v705 = vadd.f32 %v544, %v704
    %706 = vmatmul.f32.gmra.mxu0 %v146
    %v707 = vpop.f32.mrf.mxu0
    %v708 = vadd.f32 %v547, %v707
    %709 = vmatmul.f32.gmra.mxu0 %v149
    %v710 = vpop.f32.mrf.mxu0
    %v711 = vadd.f32 %v550, %v710
    %712 = vmatmul.f32.gmra.mxu0 %v152
    %v713 = vpop.f32.mrf.mxu0
    %v714 = vadd.f32 %v553, %v713
    %715 = vmatmul.f32.gmra.mxu0 %v155
    %v716 = vpop.f32.mrf.mxu0
    %v717 = vadd.f32 %v556, %v716
    %718 = vmatmul.f32.gmra.mxu0 %v158
    %v719 = vpop.f32.mrf.mxu0
    %v720 = vadd.f32 %v559, %v719
    %721 = vmatmul.f32.gmra.mxu0 %v161
    %v722 = vpop.f32.mrf.mxu0
    %v723 = vadd.f32 %v562, %v722
    %724 = vmatmul.f32.gmra.mxu0 %v164
    %v725 = vpop.f32.mrf.mxu0
    %v726 = vadd.f32 %v565, %v725
    %727 = vmatmul.f32.gmra.mxu0 %v167
    %v728 = vpop.f32.mrf.mxu0
    %v729 = vadd.f32 %v568, %v728
    %730 = vmatmul.f32.gmra.mxu0 %v170
    %v731 = vpop.f32.mrf.mxu0
    %v732 = vadd.f32 %v571, %v731
    %733 = vmatmul.f32.gmra.mxu0 %v173
    %v734 = vpop.f32.mrf.mxu0
    %v735 = vadd.f32 %v574, %v734
    %736 = vmatmul.f32.gmra.mxu0 %v176
    %v737 = vpop.f32.mrf.mxu0
    %v738 = vadd.f32 %v577, %v737
    %739 = vmatmul.f32.gmra.mxu0 %v179
    %v740 = vpop.f32.mrf.mxu0
    %v741 = vadd.f32 %v580, %v740
    %742 = vmatmul.f32.gmra.mxu0 %v182
    %v743 = vpop.f32.mrf.mxu0
    %v744 = vadd.f32 %v583, %v743
    %745 = vmatmul.f32.gmra.mxu0 %v185
    %v746 = vpop.f32.mrf.mxu0
    %v747 = vadd.f32 %v586, %v746
    %748 = vmatmul.f32.gmra.mxu0 %v188
    %v749 = vpop.f32.mrf.mxu0
    %v750 = vadd.f32 %v589, %v749
    %751 = vmatmul.f32.gmra.mxu0 %v191
    %v752 = vpop.f32.mrf.mxu0
    %v753 = vadd.f32 %v592, %v752
    %754 = vmatmul.f32.gmra.mxu0 %v194
    %v755 = vpop.f32.mrf.mxu0
    %v756 = vadd.f32 %v595, %v755
    %757 = vmatmul.f32.gmra.mxu0 %v197
    %v758 = vpop.f32.mrf.mxu0
    %v759 = vadd.f32 %v598, %v758
    %760 = vmatmul.f32.gmra.mxu0 %v200
    %v761 = vpop.f32.mrf.mxu0
    %v762 = vadd.f32 %v601, %v761
    %763 = vmatmul.f32.gmra.mxu0 %v203
    %v764 = vpop.f32.mrf.mxu0
    %v765 = vadd.f32 %v604, %v764
    %766 = vmatmul.f32.gmra.mxu0 %v206
    %v767 = vpop.f32.mrf.mxu0
    %v768 = vadd.f32 %v607, %v767
    %769 = vmatmul.f32.gmra.mxu0 %v209
    %v770 = vpop.f32.mrf.mxu0
    %v771 = vadd.f32 %v610, %v770
    %772 = vmatmul.f32.gmra.mxu0 %v212
    %v773 = vpop.f32.mrf.mxu0
    %v774 = vadd.f32 %v613, %v773
    %775 = vmatmul.f32.gmra.mxu0 %v215
    %v776 = vpop.f32.mrf.mxu0
    %v777 = vadd.f32 %v616, %v776
    %778 = vmatmul.f32.gmra.mxu0 %v218
    %v779 = vpop.f32.mrf.mxu0
    %v780 = vadd.f32 %v619, %v779
    %781 = vmatmul.f32.gmra.mxu0 %v221
    %v782 = vpop.f32.mrf.mxu0
    %v783 = vadd.f32 %v622, %v782
    %784 = vmatmul.f32.gmra.mxu0 %v224
    %v785 = vpop.f32.mrf.mxu0
    %v786 = vadd.f32 %v625, %v785
    %787 = vmatmul.f32.gmra.mxu0 %v227
    %v788 = vpop.f32.mrf.mxu0
    %v789 = vadd.f32 %v628, %v788
    %790 = vmatmul.f32.gmra.mxu0 %v230
    %v791 = vpop.f32.mrf.mxu0
    %v792 = vadd.f32 %v631, %v791
    %793 = vmatmul.f32.gmra.mxu0 %v233
    %v794 = vpop.f32.mrf.mxu0
    %v795 = vadd.f32 %v634, %v794
    %796 = vmatmul.f32.gmra.mxu0 %v236
    %v797 = vpop.f32.mrf.mxu0
    %v798 = vadd.f32 %v637, %v797
    %799 = vmatmul.f32.gmra.mxu0 %v239
    %v800 = vpop.f32.mrf.mxu0
    %v801 = vadd.f32 %v640, %v800
    %802 = vmatmul.f32.gmra.mxu0 %v242
    %v803 = vpop.f32.mrf.mxu0
    %v804 = vadd.f32 %v643, %v803
    %805 = vmatmul.f32.gmra.mxu0 %v245
    %v806 = vpop.f32.mrf.mxu0
    %v807 = vadd.f32 %v646, %v806
    %808 = vmatmul.f32.gmra.mxu0 %v248
    %v809 = vpop.f32.mrf.mxu0
    %v810 = vadd.f32 %v649, %v809
    %811 = vmatmul.f32.gmra.mxu0 %v251
    %v812 = vpop.f32.mrf.mxu0
    %v813 = vadd.f32 %v652, %v812
    %814 = vmatmul.f32.gmra.mxu0 %v254
    %v815 = vpop.f32.mrf.mxu0
    %v816 = vadd.f32 %v655, %v815
    %817 = vdwg.mxu0
    %818 = vmatpush.msra.mxu0 %v494
    %819 = vmatpush.msra.mxu0 %v492
    %820 = vmatpush.msra.mxu0 %v490
    %821 = vmatpush.msra.mxu0 %v488
    %822 = vmatpush.msra.mxu0 %v486
    %823 = vmatpush.msra.mxu0 %v484
    %824 = vmatpush.msra.mxu0 %v482
    %825 = vmatpush.msra.mxu0 %v480
    %826 = vmatpush.msra.mxu0 %v478
    %827 = vmatpush.msra.mxu0 %v476
    %828 = vmatpush.msra.mxu0 %v474
    %829 = vmatpush.msra.mxu0 %v472
    %830 = vmatpush.msra.mxu0 %v470
    %831 = vmatpush.msra.mxu0 %v468
    %832 = vmatpush.msra.mxu0 %v466
    %833 = vmatpush.msra.mxu0 %v464
    %834 = vmatmul.f32.gmra.mxu0 %v114
    %v835 = vpop.f32.mrf.mxu0
    %v836 = vadd.f32 %v675, %v835
    %837 = vmatmul.f32.gmra.mxu0 %v117
    %v838 = vpop.f32.mrf.mxu0
    %v839 = vadd.f32 %v678, %v838
    %840 = vmatmul.f32.gmra.mxu0 %v120
    %v841 = vpop.f32.mrf.mxu0
    %v842 = vadd.f32 %v681, %v841
    %843 = vmatmul.f32.gmra.mxu0 %v123
    %v844 = vpop.f32.mrf.mxu0
    %v845 = vadd.f32 %v684, %v844
    %846 = vmatmul.f32.gmra.mxu0 %v126
    %v847 = vpop.f32.mrf.mxu0
    %v848 = vadd.f32 %v687, %v847
    %849 = vmatmul.f32.gmra.mxu0 %v129
    %v850 = vpop.f32.mrf.mxu0
    %v851 = vadd.f32 %v690, %v850
    %852 = vmatmul.f32.gmra.mxu0 %v132
    %v853 = vpop.f32.mrf.mxu0
    %v854 = vadd.f32 %v693, %v853
    %855 = vmatmul.f32.gmra.mxu0 %v135
    %v856 = vpop.f32.mrf.mxu0
    %v857 = vadd.f32 %v696, %v856
    %858 = vmatmul.f32.gmra.mxu0 %v138
    %v859 = vpop.f32.mrf.mxu0
    %v860 = vadd.f32 %v699, %v859
    %861 = vmatmul.f32.gmra.mxu0 %v141
    %v862 = vpop.f32.mrf.mxu0
    %v863 = vadd.f32 %v702, %v862
    %864 = vmatmul.f32.gmra.mxu0 %v144
    %v865 = vpop.f32.mrf.mxu0
    %v866 = vadd.f32 %v705, %v865
    %867 = vmatmul.f32.gmra.mxu0 %v147
    %v868 = vpop.f32.mrf.mxu0
    %v869 = vadd.f32 %v708, %v868
    %870 = vmatmul.f32.gmra.mxu0 %v150
    %v871 = vpop.f32.mrf.mxu0
    %v872 = vadd.f32 %v711, %v871
    %873 = vmatmul.f32.gmra.mxu0 %v153
    %v874 = vpop.f32.mrf.mxu0
    %v875 = vadd.f32 %v714, %v874
    %876 = vmatmul.f32.gmra.mxu0 %v156
    %v877 = vpop.f32.mrf.mxu0
    %v878 = vadd.f32 %v717, %v877
    %879 = vmatmul.f32.gmra.mxu0 %v159
    %v880 = vpop.f32.mrf.mxu0
    %v881 = vadd.f32 %v720, %v880
    %882 = vmatmul.f32.gmra.mxu0 %v162
    %v883 = vpop.f32.mrf.mxu0
    %v884 = vadd.f32 %v723, %v883
    %885 = vmatmul.f32.gmra.mxu0 %v165
    %v886 = vpop.f32.mrf.mxu0
    %v887 = vadd.f32 %v726, %v886
    %888 = vmatmul.f32.gmra.mxu0 %v168
    %v889 = vpop.f32.mrf.mxu0
    %v890 = vadd.f32 %v729, %v889
    %891 = vmatmul.f32.gmra.mxu0 %v171
    %v892 = vpop.f32.mrf.mxu0
    %v893 = vadd.f32 %v732, %v892
    %894 = vmatmul.f32.gmra.mxu0 %v174
    %v895 = vpop.f32.mrf.mxu0
    %v896 = vadd.f32 %v735, %v895
    %897 = vmatmul.f32.gmra.mxu0 %v177
    %v898 = vpop.f32.mrf.mxu0
    %v899 = vadd.f32 %v738, %v898
    %900 = vmatmul.f32.gmra.mxu0 %v180
    %v901 = vpop.f32.mrf.mxu0
    %v902 = vadd.f32 %v741, %v901
    %903 = vmatmul.f32.gmra.mxu0 %v183
    %v904 = vpop.f32.mrf.mxu0
    %v905 = vadd.f32 %v744, %v904
    %906 = vmatmul.f32.gmra.mxu0 %v186
    %v907 = vpop.f32.mrf.mxu0
    %v908 = vadd.f32 %v747, %v907
    %909 = vmatmul.f32.gmra.mxu0 %v189
    %v910 = vpop.f32.mrf.mxu0
    %v911 = vadd.f32 %v750, %v910
    %912 = vmatmul.f32.gmra.mxu0 %v192
    %v913 = vpop.f32.mrf.mxu0
    %v914 = vadd.f32 %v753, %v913
    %915 = vmatmul.f32.gmra.mxu0 %v195
    %v916 = vpop.f32.mrf.mxu0
    %v917 = vadd.f32 %v756, %v916
    %918 = vmatmul.f32.gmra.mxu0 %v198
    %v919 = vpop.f32.mrf.mxu0
    %v920 = vadd.f32 %v759, %v919
    %921 = vmatmul.f32.gmra.mxu0 %v201
    %v922 = vpop.f32.mrf.mxu0
    %v923 = vadd.f32 %v762, %v922
    %924 = vmatmul.f32.gmra.mxu0 %v204
    %v925 = vpop.f32.mrf.mxu0
    %v926 = vadd.f32 %v765, %v925
    %927 = vmatmul.f32.gmra.mxu0 %v207
    %v928 = vpop.f32.mrf.mxu0
    %v929 = vadd.f32 %v768, %v928
    %930 = vmatmul.f32.gmra.mxu0 %v210
    %v931 = vpop.f32.mrf.mxu0
    %v932 = vadd.f32 %v771, %v931
    %933 = vmatmul.f32.gmra.mxu0 %v213
    %v934 = vpop.f32.mrf.mxu0
    %v935 = vadd.f32 %v774, %v934
    %936 = vmatmul.f32.gmra.mxu0 %v216
    %v937 = vpop.f32.mrf.mxu0
    %v938 = vadd.f32 %v777, %v937
    %939 = vmatmul.f32.gmra.mxu0 %v219
    %v940 = vpop.f32.mrf.mxu0
    %v941 = vadd.f32 %v780, %v940
    %942 = vmatmul.f32.gmra.mxu0 %v222
    %v943 = vpop.f32.mrf.mxu0
    %v944 = vadd.f32 %v783, %v943
    %945 = vmatmul.f32.gmra.mxu0 %v225
    %v946 = vpop.f32.mrf.mxu0
    %v947 = vadd.f32 %v786, %v946
    %948 = vmatmul.f32.gmra.mxu0 %v228
    %v949 = vpop.f32.mrf.mxu0
    %v950 = vadd.f32 %v789, %v949
    %951 = vmatmul.f32.gmra.mxu0 %v231
    %v952 = vpop.f32.mrf.mxu0
    %v953 = vadd.f32 %v792, %v952
    %954 = vmatmul.f32.gmra.mxu0 %v234
    %v955 = vpop.f32.mrf.mxu0
    %v956 = vadd.f32 %v795, %v955
    %957 = vmatmul.f32.gmra.mxu0 %v237
    %v958 = vpop.f32.mrf.mxu0
    %v959 = vadd.f32 %v798, %v958
    %960 = vmatmul.f32.gmra.mxu0 %v240
    %v961 = vpop.f32.mrf.mxu0
    %v962 = vadd.f32 %v801, %v961
    %963 = vmatmul.f32.gmra.mxu0 %v243
    %v964 = vpop.f32.mrf.mxu0
    %v965 = vadd.f32 %v804, %v964
    %966 = vmatmul.f32.gmra.mxu0 %v246
    %v967 = vpop.f32.mrf.mxu0
    %v968 = vadd.f32 %v807, %v967
    %969 = vmatmul.f32.gmra.mxu0 %v249
    %v970 = vpop.f32.mrf.mxu0
    %v971 = vadd.f32 %v810, %v970
    %972 = vmatmul.f32.gmra.mxu0 %v252
    %v973 = vpop.f32.mrf.mxu0
    %v974 = vadd.f32 %v813, %v973
    %975 = vmatmul.f32.gmra.mxu0 %v255
    %v976 = vpop.f32.mrf.mxu0
    %v977 = vadd.f32 %v816, %v976
    %978 = vdwg.mxu0
    %979 = vmatpush.msra.mxu0 %v431
    %980 = vmatpush.msra.mxu0 %v429
    %981 = vmatpush.msra.mxu0 %v427
    %982 = vmatpush.msra.mxu0 %v425
    %983 = vmatpush.msra.mxu0 %v423
    %984 = vmatpush.msra.mxu0 %v421
    %985 = vmatpush.msra.mxu0 %v419
    %986 = vmatpush.msra.mxu0 %v417
    %987 = vmatpush.msra.mxu0 %v415
    %988 = vmatpush.msra.mxu0 %v413
    %989 = vmatpush.msra.mxu0 %v411
    %990 = vmatpush.msra.mxu0 %v409
    %991 = vmatpush.msra.mxu0 %v407
    %992 = vmatpush.msra.mxu0 %v405
    %993 = vmatpush.msra.mxu0 %v403
    %994 = vmatpush.msra.mxu0 %v401
    %995 = vmatmul.f32.gmra.mxu0 %v112
    %v996 = vpop.f32.mrf.mxu0
    %v997 = vadd.f32 0.0, %v996
    %998 = vmatmul.f32.gmra.mxu0 %v115
    %v999 = vpop.f32.mrf.mxu0
    %v1000 = vadd.f32 0.0, %v999
    %1001 = vmatmul.f32.gmra.mxu0 %v118
    %v1002 = vpop.f32.mrf.mxu0
    %v1003 = vadd.f32 0.0, %v1002
    %1004 = vmatmul.f32.gmra.mxu0 %v121
    %v1005 = vpop.f32.mrf.mxu0
    %v1006 = vadd.f32 0.0, %v1005
    %1007 = vmatmul.f32.gmra.mxu0 %v124
    %v1008 = vpop.f32.mrf.mxu0
    %v1009 = vadd.f32 0.0, %v1008
    %1010 = vmatmul.f32.gmra.mxu0 %v127
    %v1011 = vpop.f32.mrf.mxu0
    %v1012 = vadd.f32 0.0, %v1011
    %1013 = vmatmul.f32.gmra.mxu0 %v130
    %v1014 = vpop.f32.mrf.mxu0
    %v1015 = vadd.f32 0.0, %v1014
    %1016 = vmatmul.f32.gmra.mxu0 %v133
    %v1017 = vpop.f32.mrf.mxu0
    %v1018 = vadd.f32 0.0, %v1017
    %1019 = vmatmul.f32.gmra.mxu0 %v136
    %v1020 = vpop.f32.mrf.mxu0
    %v1021 = vadd.f32 0.0, %v1020
    %1022 = vmatmul.f32.gmra.mxu0 %v139
    %v1023 = vpop.f32.mrf.mxu0
    %v1024 = vadd.f32 0.0, %v1023
    %1025 = vmatmul.f32.gmra.mxu0 %v142
    %v1026 = vpop.f32.mrf.mxu0
    %v1027 = vadd.f32 0.0, %v1026
    %1028 = vmatmul.f32.gmra.mxu0 %v145
    %v1029 = vpop.f32.mrf.mxu0
    %v1030 = vadd.f32 0.0, %v1029
    %1031 = vmatmul.f32.gmra.mxu0 %v148
    %v1032 = vpop.f32.mrf.mxu0
    %v1033 = vadd.f32 0.0, %v1032
    %1034 = vmatmul.f32.gmra.mxu0 %v151
    %v1035 = vpop.f32.mrf.mxu0
    %v1036 = vadd.f32 0.0, %v1035
    %1037 = vmatmul.f32.gmra.mxu0 %v154
    %v1038 = vpop.f32.mrf.mxu0
    %v1039 = vadd.f32 0.0, %v1038
    %1040 = vmatmul.f32.gmra.mxu0 %v157
    %v1041 = vpop.f32.mrf.mxu0
    %v1042 = vadd.f32 0.0, %v1041
    %1043 = vmatmul.f32.gmra.mxu0 %v160
    %v1044 = vpop.f32.mrf.mxu0
    %v1045 = vadd.f32 0.0, %v1044
    %1046 = vmatmul.f32.gmra.mxu0 %v163
    %v1047 = vpop.f32.mrf.mxu0
    %v1048 = vadd.f32 0.0, %v1047
    %1049 = vmatmul.f32.gmra.mxu0 %v166
    %v1050 = vpop.f32.mrf.mxu0
    %v1051 = vadd.f32 0.0, %v1050
    %1052 = vmatmul.f32.gmra.mxu0 %v169
    %v1053 = vpop.f32.mrf.mxu0
    %v1054 = vadd.f32 0.0, %v1053
    %1055 = vmatmul.f32.gmra.mxu0 %v172
    %v1056 = vpop.f32.mrf.mxu0
    %v1057 = vadd.f32 0.0, %v1056
    %1058 = vmatmul.f32.gmra.mxu0 %v175
    %v1059 = vpop.f32.mrf.mxu0
    %v1060 = vadd.f32 0.0, %v1059
    %1061 = vmatmul.f32.gmra.mxu0 %v178
    %v1062 = vpop.f32.mrf.mxu0
    %v1063 = vadd.f32 0.0, %v1062
    %1064 = vmatmul.f32.gmra.mxu0 %v181
    %v1065 = vpop.f32.mrf.mxu0
    %v1066 = vadd.f32 0.0, %v1065
    %1067 = vmatmul.f32.gmra.mxu0 %v184
    %v1068 = vpop.f32.mrf.mxu0
    %v1069 = vadd.f32 0.0, %v1068
    %1070 = vmatmul.f32.gmra.mxu0 %v187
    %v1071 = vpop.f32.mrf.mxu0
    %v1072 = vadd.f32 0.0, %v1071
    %1073 = vmatmul.f32.gmra.mxu0 %v190
    %v1074 = vpop.f32.mrf.mxu0
    %v1075 = vadd.f32 0.0, %v1074
    %1076 = vmatmul.f32.gmra.mxu0 %v193
    %v1077 = vpop.f32.mrf.mxu0
    %v1078 = vadd.f32 0.0, %v1077
    %1079 = vmatmul.f32.gmra.mxu0 %v196
    %v1080 = vpop.f32.mrf.mxu0
    %v1081 = vadd.f32 0.0, %v1080
    %1082 = vmatmul.f32.gmra.mxu0 %v199
    %v1083 = vpop.f32.mrf.mxu0
    %v1084 = vadd.f32 0.0, %v1083
    %1085 = vmatmul.f32.gmra.mxu0 %v202
    %v1086 = vpop.f32.mrf.mxu0
    %v1087 = vadd.f32 0.0, %v1086
    %1088 = vmatmul.f32.gmra.mxu0 %v205
    %v1089 = vpop.f32.mrf.mxu0
    %v1090 = vadd.f32 0.0, %v1089
    %1091 = vmatmul.f32.gmra.mxu0 %v208
    %v1092 = vpop.f32.mrf.mxu0
    %v1093 = vadd.f32 0.0, %v1092
    %1094 = vmatmul.f32.gmra.mxu0 %v211
    %v1095 = vpop.f32.mrf.mxu0
    %v1096 = vadd.f32 0.0, %v1095
    %1097 = vmatmul.f32.gmra.mxu0 %v214
    %v1098 = vpop.f32.mrf.mxu0
    %v1099 = vadd.f32 0.0, %v1098
    %1100 = vmatmul.f32.gmra.mxu0 %v217
    %v1101 = vpop.f32.mrf.mxu0
    %v1102 = vadd.f32 0.0, %v1101
    %1103 = vmatmul.f32.gmra.mxu0 %v220
    %v1104 = vpop.f32.mrf.mxu0
    %v1105 = vadd.f32 0.0, %v1104
    %1106 = vmatmul.f32.gmra.mxu0 %v223
    %v1107 = vpop.f32.mrf.mxu0
    %v1108 = vadd.f32 0.0, %v1107
    %1109 = vmatmul.f32.gmra.mxu0 %v226
    %v1110 = vpop.f32.mrf.mxu0
    %v1111 = vadd.f32 0.0, %v1110
    %1112 = vmatmul.f32.gmra.mxu0 %v229
    %v1113 = vpop.f32.mrf.mxu0
    %v1114 = vadd.f32 0.0, %v1113
    %1115 = vmatmul.f32.gmra.mxu0 %v232
    %v1116 = vpop.f32.mrf.mxu0
    %v1117 = vadd.f32 0.0, %v1116
    %1118 = vmatmul.f32.gmra.mxu0 %v235
    %v1119 = vpop.f32.mrf.mxu0
    %v1120 = vadd.f32 0.0, %v1119
    %1121 = vmatmul.f32.gmra.mxu0 %v238
    %v1122 = vpop.f32.mrf.mxu0
    %v1123 = vadd.f32 0.0, %v1122
    %1124 = vmatmul.f32.gmra.mxu0 %v241
    %v1125 = vpop.f32.mrf.mxu0
    %v1126 = vadd.f32 0.0, %v1125
    %1127 = vmatmul.f32.gmra.mxu0 %v244
    %v1128 = vpop.f32.mrf.mxu0
    %v1129 = vadd.f32 0.0, %v1128
    %1130 = vmatmul.f32.gmra.mxu0 %v247
    %v1131 = vpop.f32.mrf.mxu0
    %v1132 = vadd.f32 0.0, %v1131
    %1133 = vmatmul.f32.gmra.mxu0 %v250
    %v1134 = vpop.f32.mrf.mxu0
    %v1135 = vadd.f32 0.0, %v1134
    %1136 = vmatmul.f32.gmra.mxu0 %v253
    %v1137 = vpop.f32.mrf.mxu0
    %v1138 = vadd.f32 0.0, %v1137
    %1139 = vdwg.mxu0
    %1140 = vmatpush.msra.mxu0 %v463
    %1141 = vmatpush.msra.mxu0 %v461
    %1142 = vmatpush.msra.mxu0 %v459
    %1143 = vmatpush.msra.mxu0 %v457
    %1144 = vmatpush.msra.mxu0 %v455
    %1145 = vmatpush.msra.mxu0 %v453
    %1146 = vmatpush.msra.mxu0 %v451
    %1147 = vmatpush.msra.mxu0 %v449
    %1148 = vmatpush.msra.mxu0 %v447
    %1149 = vmatpush.msra.mxu0 %v445
    %1150 = vmatpush.msra.mxu0 %v443
    %1151 = vmatpush.msra.mxu0 %v441
    %1152 = vmatpush.msra.mxu0 %v439
    %1153 = vmatpush.msra.mxu0 %v437
    %1154 = vmatpush.msra.mxu0 %v435
    %1155 = vmatpush.msra.mxu0 %v433
    %1156 = vmatmul.f32.gmra.mxu0 %v113
    %v1157 = vpop.f32.mrf.mxu0
    %v1158 = vadd.f32 %v997, %v1157
    %1159 = vmatmul.f32.gmra.mxu0 %v116
    %v1160 = vpop.f32.mrf.mxu0
    %v1161 = vadd.f32 %v1000, %v1160
    %1162 = vmatmul.f32.gmra.mxu0 %v119
    %v1163 = vpop.f32.mrf.mxu0
    %v1164 = vadd.f32 %v1003, %v1163
    %1165 = vmatmul.f32.gmra.mxu0 %v122
    %v1166 = vpop.f32.mrf.mxu0
    %v1167 = vadd.f32 %v1006, %v1166
    %1168 = vmatmul.f32.gmra.mxu0 %v125
    %v1169 = vpop.f32.mrf.mxu0
    %v1170 = vadd.f32 %v1009, %v1169
    %1171 = vmatmul.f32.gmra.mxu0 %v128
    %v1172 = vpop.f32.mrf.mxu0
    %v1173 = vadd.f32 %v1012, %v1172
    %1174 = vmatmul.f32.gmra.mxu0 %v131
    %v1175 = vpop.f32.mrf.mxu0
    %v1176 = vadd.f32 %v1015, %v1175
    %1177 = vmatmul.f32.gmra.mxu0 %v134
    %v1178 = vpop.f32.mrf.mxu0
    %v1179 = vadd.f32 %v1018, %v1178
    %1180 = vmatmul.f32.gmra.mxu0 %v137
    %v1181 = vpop.f32.mrf.mxu0
    %v1182 = vadd.f32 %v1021, %v1181
    %1183 = vmatmul.f32.gmra.mxu0 %v140
    %v1184 = vpop.f32.mrf.mxu0
    %v1185 = vadd.f32 %v1024, %v1184
    %1186 = vmatmul.f32.gmra.mxu0 %v143
    %v1187 = vpop.f32.mrf.mxu0
    %v1188 = vadd.f32 %v1027, %v1187
    %1189 = vmatmul.f32.gmra.mxu0 %v146
    %v1190 = vpop.f32.mrf.mxu0
    %v1191 = vadd.f32 %v1030, %v1190
    %1192 = vmatmul.f32.gmra.mxu0 %v149
    %v1193 = vpop.f32.mrf.mxu0
    %v1194 = vadd.f32 %v1033, %v1193
    %1195 = vmatmul.f32.gmra.mxu0 %v152
    %v1196 = vpop.f32.mrf.mxu0
    %v1197 = vadd.f32 %v1036, %v1196
    %1198 = vmatmul.f32.gmra.mxu0 %v155
    %v1199 = vpop.f32.mrf.mxu0
    %v1200 = vadd.f32 %v1039, %v1199
    %1201 = vmatmul.f32.gmra.mxu0 %v158
    %v1202 = vpop.f32.mrf.mxu0
    %v1203 = vadd.f32 %v1042, %v1202
    %1204 = vmatmul.f32.gmra.mxu0 %v161
    %v1205 = vpop.f32.mrf.mxu0
    %v1206 = vadd.f32 %v1045, %v1205
    %1207 = vmatmul.f32.gmra.mxu0 %v164
    %v1208 = vpop.f32.mrf.mxu0
    %v1209 = vadd.f32 %v1048, %v1208
    %1210 = vmatmul.f32.gmra.mxu0 %v167
    %v1211 = vpop.f32.mrf.mxu0
    %v1212 = vadd.f32 %v1051, %v1211
    %1213 = vmatmul.f32.gmra.mxu0 %v170
    %v1214 = vpop.f32.mrf.mxu0
    %v1215 = vadd.f32 %v1054, %v1214
    %1216 = vmatmul.f32.gmra.mxu0 %v173
    %v1217 = vpop.f32.mrf.mxu0
    %v1218 = vadd.f32 %v1057, %v1217
    %1219 = vmatmul.f32.gmra.mxu0 %v176
    %v1220 = vpop.f32.mrf.mxu0
    %v1221 = vadd.f32 %v1060, %v1220
    %1222 = vmatmul.f32.gmra.mxu0 %v179
    %v1223 = vpop.f32.mrf.mxu0
    %v1224 = vadd.f32 %v1063, %v1223
    %1225 = vmatmul.f32.gmra.mxu0 %v182
    %v1226 = vpop.f32.mrf.mxu0
    %v1227 = vadd.f32 %v1066, %v1226
    %1228 = vmatmul.f32.gmra.mxu0 %v185
    %v1229 = vpop.f32.mrf.mxu0
    %v1230 = vadd.f32 %v1069, %v1229
    %1231 = vmatmul.f32.gmra.mxu0 %v188
    %v1232 = vpop.f32.mrf.mxu0
    %v1233 = vadd.f32 %v1072, %v1232
    %1234 = vmatmul.f32.gmra.mxu0 %v191
    %v1235 = vpop.f32.mrf.mxu0
    %v1236 = vadd.f32 %v1075, %v1235
    %1237 = vmatmul.f32.gmra.mxu0 %v194
    %v1238 = vpop.f32.mrf.mxu0
    %v1239 = vadd.f32 %v1078, %v1238
    %1240 = vmatmul.f32.gmra.mxu0 %v197
    %v1241 = vpop.f32.mrf.mxu0
    %v1242 = vadd.f32 %v1081, %v1241
    %1243 = vmatmul.f32.gmra.mxu0 %v200
    %v1244 = vpop.f32.mrf.mxu0
    %v1245 = vadd.f32 %v1084, %v1244
    %1246 = vmatmul.f32.gmra.mxu0 %v203
    %v1247 = vpop.f32.mrf.mxu0
    %v1248 = vadd.f32 %v1087, %v1247
    %1249 = vmatmul.f32.gmra.mxu0 %v206
    %v1250 = vpop.f32.mrf.mxu0
    %v1251 = vadd.f32 %v1090, %v1250
    %1252 = vmatmul.f32.gmra.mxu0 %v209
    %v1253 = vpop.f32.mrf.mxu0
    %v1254 = vadd.f32 %v1093, %v1253
    %1255 = vmatmul.f32.gmra.mxu0 %v212
    %v1256 = vpop.f32.mrf.mxu0
    %v1257 = vadd.f32 %v1096, %v1256
    %1258 = vmatmul.f32.gmra.mxu0 %v215
    %v1259 = vpop.f32.mrf.mxu0
    %v1260 = vadd.f32 %v1099, %v1259
    %1261 = vmatmul.f32.gmra.mxu0 %v218
    %v1262 = vpop.f32.mrf.mxu0
    %v1263 = vadd.f32 %v1102, %v1262
    %1264 = vmatmul.f32.gmra.mxu0 %v221
    %v1265 = vpop.f32.mrf.mxu0
    %v1266 = vadd.f32 %v1105, %v1265
    %1267 = vmatmul.f32.gmra.mxu0 %v224
    %v1268 = vpop.f32.mrf.mxu0
    %v1269 = vadd.f32 %v1108, %v1268
    %1270 = vmatmul.f32.gmra.mxu0 %v227
    %v1271 = vpop.f32.mrf.mxu0
    %v1272 = vadd.f32 %v1111, %v1271
    %1273 = vmatmul.f32.gmra.mxu0 %v230
    %v1274 = vpop.f32.mrf.mxu0
    %v1275 = vadd.f32 %v1114, %v1274
    %1276 = vmatmul.f32.gmra.mxu0 %v233
    %v1277 = vpop.f32.mrf.mxu0
    %v1278 = vadd.f32 %v1117, %v1277
    %1279 = vmatmul.f32.gmra.mxu0 %v236
    %v1280 = vpop.f32.mrf.mxu0
    %v1281 = vadd.f32 %v1120, %v1280
    %1282 = vmatmul.f32.gmra.mxu0 %v239
    %v1283 = vpop.f32.mrf.mxu0
    %v1284 = vadd.f32 %v1123, %v1283
    %1285 = vmatmul.f32.gmra.mxu0 %v242
    %v1286 = vpop.f32.mrf.mxu0
    %v1287 = vadd.f32 %v1126, %v1286
    %1288 = vmatmul.f32.gmra.mxu0 %v245
    %v1289 = vpop.f32.mrf.mxu0
    %v1290 = vadd.f32 %v1129, %v1289
    %1291 = vmatmul.f32.gmra.mxu0 %v248
    %v1292 = vpop.f32.mrf.mxu0
    %v1293 = vadd.f32 %v1132, %v1292
    %1294 = vmatmul.f32.gmra.mxu0 %v251
    %v1295 = vpop.f32.mrf.mxu0
    %v1296 = vadd.f32 %v1135, %v1295
    %1297 = vmatmul.f32.gmra.mxu0 %v254
    %v1298 = vpop.f32.mrf.mxu0
    %v1299 = vadd.f32 %v1138, %v1298
    %1300 = vdwg.mxu0
    %1301 = vmatpush.msra.mxu0 %v495
    %1302 = vmatpush.msra.mxu0 %v493
    %1303 = vmatpush.msra.mxu0 %v491
    %1304 = vmatpush.msra.mxu0 %v489
    %1305 = vmatpush.msra.mxu0 %v487
    %1306 = vmatpush.msra.mxu0 %v485
    %1307 = vmatpush.msra.mxu0 %v483
    %1308 = vmatpush.msra.mxu0 %v481
    %1309 = vmatpush.msra.mxu0 %v479
    %1310 = vmatpush.msra.mxu0 %v477
    %1311 = vmatpush.msra.mxu0 %v475
    %1312 = vmatpush.msra.mxu0 %v473
    %1313 = vmatpush.msra.mxu0 %v471
    %1314 = vmatpush.msra.mxu0 %v469
    %1315 = vmatpush.msra.mxu0 %v467
    %1316 = vmatpush.msra.mxu0 %v465
    %1317 = vmatmul.f32.gmra.mxu0 %v114
    %v1318 = vpop.f32.mrf.mxu0
    %v1319 = vadd.f32 %v1158, %v1318
    %1320 = vmatmul.f32.gmra.mxu0 %v117
    %v1321 = vpop.f32.mrf.mxu0
    %v1322 = vadd.f32 %v1161, %v1321
    %1323 = vmatmul.f32.gmra.mxu0 %v120
    %v1324 = vpop.f32.mrf.mxu0
    %v1325 = vadd.f32 %v1164, %v1324
    %1326 = vmatmul.f32.gmra.mxu0 %v123
    %v1327 = vpop.f32.mrf.mxu0
    %v1328 = vadd.f32 %v1167, %v1327
    %1329 = vmatmul.f32.gmra.mxu0 %v126
    %v1330 = vpop.f32.mrf.mxu0
    %v1331 = vadd.f32 %v1170, %v1330
    %1332 = vmatmul.f32.gmra.mxu0 %v129
    %v1333 = vpop.f32.mrf.mxu0
    %v1334 = vadd.f32 %v1173, %v1333
    %1335 = vmatmul.f32.gmra.mxu0 %v132
    %v1336 = vpop.f32.mrf.mxu0
    %v1337 = vadd.f32 %v1176, %v1336
    %1338 = vmatmul.f32.gmra.mxu0 %v135
    %v1339 = vpop.f32.mrf.mxu0
    %v1340 = vadd.f32 %v1179, %v1339
    %1341 = vmatmul.f32.gmra.mxu0 %v138
    %v1342 = vpop.f32.mrf.mxu0
    %v1343 = vadd.f32 %v1182, %v1342
    %1344 = vmatmul.f32.gmra.mxu0 %v141
    %v1345 = vpop.f32.mrf.mxu0
    %v1346 = vadd.f32 %v1185, %v1345
    %1347 = vmatmul.f32.gmra.mxu0 %v144
    %v1348 = vpop.f32.mrf.mxu0
    %v1349 = vadd.f32 %v1188, %v1348
    %1350 = vmatmul.f32.gmra.mxu0 %v147
    %v1351 = vpop.f32.mrf.mxu0
    %v1352 = vadd.f32 %v1191, %v1351
    %1353 = vmatmul.f32.gmra.mxu0 %v150
    %v1354 = vpop.f32.mrf.mxu0
    %v1355 = vadd.f32 %v1194, %v1354
    %1356 = vmatmul.f32.gmra.mxu0 %v153
    %v1357 = vpop.f32.mrf.mxu0
    %v1358 = vadd.f32 %v1197, %v1357
    %1359 = vmatmul.f32.gmra.mxu0 %v156
    %v1360 = vpop.f32.mrf.mxu0
    %v1361 = vadd.f32 %v1200, %v1360
    %1362 = vmatmul.f32.gmra.mxu0 %v159
    %v1363 = vpop.f32.mrf.mxu0
    %v1364 = vadd.f32 %v1203, %v1363
    %1365 = vmatmul.f32.gmra.mxu0 %v162
    %v1366 = vpop.f32.mrf.mxu0
    %v1367 = vadd.f32 %v1206, %v1366
    %1368 = vmatmul.f32.gmra.mxu0 %v165
    %v1369 = vpop.f32.mrf.mxu0
    %v1370 = vadd.f32 %v1209, %v1369
    %1371 = vmatmul.f32.gmra.mxu0 %v168
    %v1372 = vpop.f32.mrf.mxu0
    %v1373 = vadd.f32 %v1212, %v1372
    %1374 = vmatmul.f32.gmra.mxu0 %v171
    %v1375 = vpop.f32.mrf.mxu0
    %v1376 = vadd.f32 %v1215, %v1375
    %1377 = vmatmul.f32.gmra.mxu0 %v174
    %v1378 = vpop.f32.mrf.mxu0
    %v1379 = vadd.f32 %v1218, %v1378
    %1380 = vmatmul.f32.gmra.mxu0 %v177
    %v1381 = vpop.f32.mrf.mxu0
    %v1382 = vadd.f32 %v1221, %v1381
    %1383 = vmatmul.f32.gmra.mxu0 %v180
    %v1384 = vpop.f32.mrf.mxu0
    %v1385 = vadd.f32 %v1224, %v1384
    %1386 = vmatmul.f32.gmra.mxu0 %v183
    %v1387 = vpop.f32.mrf.mxu0
    %v1388 = vadd.f32 %v1227, %v1387
    %1389 = vmatmul.f32.gmra.mxu0 %v186
    %v1390 = vpop.f32.mrf.mxu0
    %v1391 = vadd.f32 %v1230, %v1390
    %1392 = vmatmul.f32.gmra.mxu0 %v189
    %v1393 = vpop.f32.mrf.mxu0
    %v1394 = vadd.f32 %v1233, %v1393
    %1395 = vmatmul.f32.gmra.mxu0 %v192
    %v1396 = vpop.f32.mrf.mxu0
    %v1397 = vadd.f32 %v1236, %v1396
    %1398 = vmatmul.f32.gmra.mxu0 %v195
    %v1399 = vpop.f32.mrf.mxu0
    %v1400 = vadd.f32 %v1239, %v1399
    %1401 = vmatmul.f32.gmra.mxu0 %v198
    %v1402 = vpop.f32.mrf.mxu0
    %v1403 = vadd.f32 %v1242, %v1402
    %1404 = vmatmul.f32.gmra.mxu0 %v201
    %v1405 = vpop.f32.mrf.mxu0
    %v1406 = vadd.f32 %v1245, %v1405
    %1407 = vmatmul.f32.gmra.mxu0 %v204
    %v1408 = vpop.f32.mrf.mxu0
    %v1409 = vadd.f32 %v1248, %v1408
    %1410 = vmatmul.f32.gmra.mxu0 %v207
    %v1411 = vpop.f32.mrf.mxu0
    %v1412 = vadd.f32 %v1251, %v1411
    %1413 = vmatmul.f32.gmra.mxu0 %v210
    %v1414 = vpop.f32.mrf.mxu0
    %v1415 = vadd.f32 %v1254, %v1414
    %1416 = vmatmul.f32.gmra.mxu0 %v213
    %v1417 = vpop.f32.mrf.mxu0
    %v1418 = vadd.f32 %v1257, %v1417
    %1419 = vmatmul.f32.gmra.mxu0 %v216
    %v1420 = vpop.f32.mrf.mxu0
    %v1421 = vadd.f32 %v1260, %v1420
    %1422 = vmatmul.f32.gmra.mxu0 %v219
    %v1423 = vpop.f32.mrf.mxu0
    %v1424 = vadd.f32 %v1263, %v1423
    %1425 = vmatmul.f32.gmra.mxu0 %v222
    %v1426 = vpop.f32.mrf.mxu0
    %v1427 = vadd.f32 %v1266, %v1426
    %1428 = vmatmul.f32.gmra.mxu0 %v225
    %v1429 = vpop.f32.mrf.mxu0
    %v1430 = vadd.f32 %v1269, %v1429
    %1431 = vmatmul.f32.gmra.mxu0 %v228
    %v1432 = vpop.f32.mrf.mxu0
    %v1433 = vadd.f32 %v1272, %v1432
    %1434 = vmatmul.f32.gmra.mxu0 %v231
    %v1435 = vpop.f32.mrf.mxu0
    %v1436 = vadd.f32 %v1275, %v1435
    %1437 = vmatmul.f32.gmra.mxu0 %v234
    %v1438 = vpop.f32.mrf.mxu0
    %v1439 = vadd.f32 %v1278, %v1438
    %1440 = vmatmul.f32.gmra.mxu0 %v237
    %v1441 = vpop.f32.mrf.mxu0
    %v1442 = vadd.f32 %v1281, %v1441
    %1443 = vmatmul.f32.gmra.mxu0 %v240
    %v1444 = vpop.f32.mrf.mxu0
    %v1445 = vadd.f32 %v1284, %v1444
    %1446 = vmatmul.f32.gmra.mxu0 %v243
    %v1447 = vpop.f32.mrf.mxu0
    %v1448 = vadd.f32 %v1287, %v1447
    %1449 = vmatmul.f32.gmra.mxu0 %v246
    %v1450 = vpop.f32.mrf.mxu0
    %v1451 = vadd.f32 %v1290, %v1450
    %1452 = vmatmul.f32.gmra.mxu0 %v249
    %v1453 = vpop.f32.mrf.mxu0
    %v1454 = vadd.f32 %v1293, %v1453
    %1455 = vmatmul.f32.gmra.mxu0 %v252
    %v1456 = vpop.f32.mrf.mxu0
    %v1457 = vadd.f32 %v1296, %v1456
    %1458 = vmatmul.f32.gmra.mxu0 %v255
    %v1459 = vpop.f32.mrf.mxu0
    %v1460 = vadd.f32 %v1299, %v1459
    %1461 = vdwg.mxu0
    %1462 = vmatpush.msra.mxu0 %v431
    %1463 = vmatpush.msra.mxu0 %v429
    %1464 = vmatpush.msra.mxu0 %v427
    %1465 = vmatpush.msra.mxu0 %v425
    %1466 = vmatpush.msra.mxu0 %v423
    %1467 = vmatpush.msra.mxu0 %v421
    %1468 = vmatpush.msra.mxu0 %v419
    %1469 = vmatpush.msra.mxu0 %v417
    %1470 = vmatpush.msra.mxu0 %v415
    %1471 = vmatpush.msra.mxu0 %v413
    %1472 = vmatpush.msra.mxu0 %v411
    %1473 = vmatpush.msra.mxu0 %v409
    %1474 = vmatpush.msra.mxu0 %v407
    %1475 = vmatpush.msra.mxu0 %v405
    %1476 = vmatpush.msra.mxu0 %v403
    %1477 = vmatpush.msra.mxu0 %v401
    %1478 = vmatmul.f32.gmra.mxu0 %v256
    %v1479 = vpop.f32.mrf.mxu0
    %v1480 = vadd.f32 0.0, %v1479
    %1481 = vmatmul.f32.gmra.mxu0 %v259
    %v1482 = vpop.f32.mrf.mxu0
    %v1483 = vadd.f32 0.0, %v1482
    %1484 = vmatmul.f32.gmra.mxu0 %v262
    %v1485 = vpop.f32.mrf.mxu0
    %v1486 = vadd.f32 0.0, %v1485
    %1487 = vmatmul.f32.gmra.mxu0 %v265
    %v1488 = vpop.f32.mrf.mxu0
    %v1489 = vadd.f32 0.0, %v1488
    %1490 = vmatmul.f32.gmra.mxu0 %v268
    %v1491 = vpop.f32.mrf.mxu0
    %v1492 = vadd.f32 0.0, %v1491
    %1493 = vmatmul.f32.gmra.mxu0 %v271
    %v1494 = vpop.f32.mrf.mxu0
    %v1495 = vadd.f32 0.0, %v1494
    %1496 = vmatmul.f32.gmra.mxu0 %v274
    %v1497 = vpop.f32.mrf.mxu0
    %v1498 = vadd.f32 0.0, %v1497
    %1499 = vmatmul.f32.gmra.mxu0 %v277
    %v1500 = vpop.f32.mrf.mxu0
    %v1501 = vadd.f32 0.0, %v1500
    %1502 = vmatmul.f32.gmra.mxu0 %v280
    %v1503 = vpop.f32.mrf.mxu0
    %v1504 = vadd.f32 0.0, %v1503
    %1505 = vmatmul.f32.gmra.mxu0 %v283
    %v1506 = vpop.f32.mrf.mxu0
    %v1507 = vadd.f32 0.0, %v1506
    %1508 = vmatmul.f32.gmra.mxu0 %v286
    %v1509 = vpop.f32.mrf.mxu0
    %v1510 = vadd.f32 0.0, %v1509
    %1511 = vmatmul.f32.gmra.mxu0 %v289
    %v1512 = vpop.f32.mrf.mxu0
    %v1513 = vadd.f32 0.0, %v1512
    %1514 = vmatmul.f32.gmra.mxu0 %v292
    %v1515 = vpop.f32.mrf.mxu0
    %v1516 = vadd.f32 0.0, %v1515
    %1517 = vmatmul.f32.gmra.mxu0 %v295
    %v1518 = vpop.f32.mrf.mxu0
    %v1519 = vadd.f32 0.0, %v1518
    %1520 = vmatmul.f32.gmra.mxu0 %v298
    %v1521 = vpop.f32.mrf.mxu0
    %v1522 = vadd.f32 0.0, %v1521
    %1523 = vmatmul.f32.gmra.mxu0 %v301
    %v1524 = vpop.f32.mrf.mxu0
    %v1525 = vadd.f32 0.0, %v1524
    %1526 = vmatmul.f32.gmra.mxu0 %v304
    %v1527 = vpop.f32.mrf.mxu0
    %v1528 = vadd.f32 0.0, %v1527
    %1529 = vmatmul.f32.gmra.mxu0 %v307
    %v1530 = vpop.f32.mrf.mxu0
    %v1531 = vadd.f32 0.0, %v1530
    %1532 = vmatmul.f32.gmra.mxu0 %v310
    %v1533 = vpop.f32.mrf.mxu0
    %v1534 = vadd.f32 0.0, %v1533
    %1535 = vmatmul.f32.gmra.mxu0 %v313
    %v1536 = vpop.f32.mrf.mxu0
    %v1537 = vadd.f32 0.0, %v1536
    %1538 = vmatmul.f32.gmra.mxu0 %v316
    %v1539 = vpop.f32.mrf.mxu0
    %v1540 = vadd.f32 0.0, %v1539
    %1541 = vmatmul.f32.gmra.mxu0 %v319
    %v1542 = vpop.f32.mrf.mxu0
    %v1543 = vadd.f32 0.0, %v1542
    %1544 = vmatmul.f32.gmra.mxu0 %v322
    %v1545 = vpop.f32.mrf.mxu0
    %v1546 = vadd.f32 0.0, %v1545
    %1547 = vmatmul.f32.gmra.mxu0 %v325
    %v1548 = vpop.f32.mrf.mxu0
    %v1549 = vadd.f32 0.0, %v1548
    %1550 = vmatmul.f32.gmra.mxu0 %v328
    %v1551 = vpop.f32.mrf.mxu0
    %v1552 = vadd.f32 0.0, %v1551
    %1553 = vmatmul.f32.gmra.mxu0 %v331
    %v1554 = vpop.f32.mrf.mxu0
    %v1555 = vadd.f32 0.0, %v1554
    %1556 = vmatmul.f32.gmra.mxu0 %v334
    %v1557 = vpop.f32.mrf.mxu0
    %v1558 = vadd.f32 0.0, %v1557
    %1559 = vmatmul.f32.gmra.mxu0 %v337
    %v1560 = vpop.f32.mrf.mxu0
    %v1561 = vadd.f32 0.0, %v1560
    %1562 = vmatmul.f32.gmra.mxu0 %v340
    %v1563 = vpop.f32.mrf.mxu0
    %v1564 = vadd.f32 0.0, %v1563
    %1565 = vmatmul.f32.gmra.mxu0 %v343
    %v1566 = vpop.f32.mrf.mxu0
    %v1567 = vadd.f32 0.0, %v1566
    %1568 = vmatmul.f32.gmra.mxu0 %v346
    %v1569 = vpop.f32.mrf.mxu0
    %v1570 = vadd.f32 0.0, %v1569
    %1571 = vmatmul.f32.gmra.mxu0 %v349
    %v1572 = vpop.f32.mrf.mxu0
    %v1573 = vadd.f32 0.0, %v1572
    %1574 = vmatmul.f32.gmra.mxu0 %v352
    %v1575 = vpop.f32.mrf.mxu0
    %v1576 = vadd.f32 0.0, %v1575
    %1577 = vmatmul.f32.gmra.mxu0 %v355
    %v1578 = vpop.f32.mrf.mxu0
    %v1579 = vadd.f32 0.0, %v1578
    %1580 = vmatmul.f32.gmra.mxu0 %v358
    %v1581 = vpop.f32.mrf.mxu0
    %v1582 = vadd.f32 0.0, %v1581
    %1583 = vmatmul.f32.gmra.mxu0 %v361
    %v1584 = vpop.f32.mrf.mxu0
    %v1585 = vadd.f32 0.0, %v1584
    %1586 = vmatmul.f32.gmra.mxu0 %v364
    %v1587 = vpop.f32.mrf.mxu0
    %v1588 = vadd.f32 0.0, %v1587
    %1589 = vmatmul.f32.gmra.mxu0 %v367
    %v1590 = vpop.f32.mrf.mxu0
    %v1591 = vadd.f32 0.0, %v1590
    %1592 = vmatmul.f32.gmra.mxu0 %v370
    %v1593 = vpop.f32.mrf.mxu0
    %v1594 = vadd.f32 0.0, %v1593
    %1595 = vmatmul.f32.gmra.mxu0 %v373
    %v1596 = vpop.f32.mrf.mxu0
    %v1597 = vadd.f32 0.0, %v1596
    %1598 = vmatmul.f32.gmra.mxu0 %v376
    %v1599 = vpop.f32.mrf.mxu0
    %v1600 = vadd.f32 0.0, %v1599
    %1601 = vmatmul.f32.gmra.mxu0 %v379
    %v1602 = vpop.f32.mrf.mxu0
    %v1603 = vadd.f32 0.0, %v1602
    %1604 = vmatmul.f32.gmra.mxu0 %v382
    %v1605 = vpop.f32.mrf.mxu0
    %v1606 = vadd.f32 0.0, %v1605
    %1607 = vmatmul.f32.gmra.mxu0 %v385
    %v1608 = vpop.f32.mrf.mxu0
    %v1609 = vadd.f32 0.0, %v1608
    %1610 = vmatmul.f32.gmra.mxu0 %v388
    %v1611 = vpop.f32.mrf.mxu0
    %v1612 = vadd.f32 0.0, %v1611
    %1613 = vmatmul.f32.gmra.mxu0 %v391
    %v1614 = vpop.f32.mrf.mxu0
    %v1615 = vadd.f32 0.0, %v1614
    %1616 = vmatmul.f32.gmra.mxu0 %v394
    %v1617 = vpop.f32.mrf.mxu0
    %v1618 = vadd.f32 0.0, %v1617
    %1619 = vmatmul.f32.gmra.mxu0 %v397
    %v1620 = vpop.f32.mrf.mxu0
    %v1621 = vadd.f32 0.0, %v1620
    %1622 = vdwg.mxu0
    %1623 = vmatpush.msra.mxu0 %v463
    %1624 = vmatpush.msra.mxu0 %v461
    %1625 = vmatpush.msra.mxu0 %v459
    %1626 = vmatpush.msra.mxu0 %v457
    %1627 = vmatpush.msra.mxu0 %v455
    %1628 = vmatpush.msra.mxu0 %v453
    %1629 = vmatpush.msra.mxu0 %v451
    %1630 = vmatpush.msra.mxu0 %v449
    %1631 = vmatpush.msra.mxu0 %v447
    %1632 = vmatpush.msra.mxu0 %v445
    %1633 = vmatpush.msra.mxu0 %v443
    %1634 = vmatpush.msra.mxu0 %v441
    %1635 = vmatpush.msra.mxu0 %v439
    %1636 = vmatpush.msra.mxu0 %v437
    %1637 = vmatpush.msra.mxu0 %v435
    %1638 = vmatpush.msra.mxu0 %v433
    %1639 = vmatmul.f32.gmra.mxu0 %v257
    %v1640 = vpop.f32.mrf.mxu0
    %v1641 = vadd.f32 %v1480, %v1640
    %1642 = vmatmul.f32.gmra.mxu0 %v260
    %v1643 = vpop.f32.mrf.mxu0
    %v1644 = vadd.f32 %v1483, %v1643
    %1645 = vmatmul.f32.gmra.mxu0 %v263
    %v1646 = vpop.f32.mrf.mxu0
    %v1647 = vadd.f32 %v1486, %v1646
    %1648 = vmatmul.f32.gmra.mxu0 %v266
    %v1649 = vpop.f32.mrf.mxu0
    %v1650 = vadd.f32 %v1489, %v1649
    %1651 = vmatmul.f32.gmra.mxu0 %v269
    %v1652 = vpop.f32.mrf.mxu0
    %v1653 = vadd.f32 %v1492, %v1652
    %1654 = vmatmul.f32.gmra.mxu0 %v272
    %v1655 = vpop.f32.mrf.mxu0
    %v1656 = vadd.f32 %v1495, %v1655
    %1657 = vmatmul.f32.gmra.mxu0 %v275
    %v1658 = vpop.f32.mrf.mxu0
    %v1659 = vadd.f32 %v1498, %v1658
    %1660 = vmatmul.f32.gmra.mxu0 %v278
    %v1661 = vpop.f32.mrf.mxu0
    %v1662 = vadd.f32 %v1501, %v1661
    %1663 = vmatmul.f32.gmra.mxu0 %v281
    %v1664 = vpop.f32.mrf.mxu0
    %v1665 = vadd.f32 %v1504, %v1664
    %1666 = vmatmul.f32.gmra.mxu0 %v284
    %v1667 = vpop.f32.mrf.mxu0
    %v1668 = vadd.f32 %v1507, %v1667
    %1669 = vmatmul.f32.gmra.mxu0 %v287
    %v1670 = vpop.f32.mrf.mxu0
    %v1671 = vadd.f32 %v1510, %v1670
    %1672 = vmatmul.f32.gmra.mxu0 %v290
    %v1673 = vpop.f32.mrf.mxu0
    %v1674 = vadd.f32 %v1513, %v1673
    %1675 = vmatmul.f32.gmra.mxu0 %v293
    %v1676 = vpop.f32.mrf.mxu0
    %v1677 = vadd.f32 %v1516, %v1676
    %1678 = vmatmul.f32.gmra.mxu0 %v296
    %v1679 = vpop.f32.mrf.mxu0
    %v1680 = vadd.f32 %v1519, %v1679
    %1681 = vmatmul.f32.gmra.mxu0 %v299
    %v1682 = vpop.f32.mrf.mxu0
    %v1683 = vadd.f32 %v1522, %v1682
    %1684 = vmatmul.f32.gmra.mxu0 %v302
    %v1685 = vpop.f32.mrf.mxu0
    %v1686 = vadd.f32 %v1525, %v1685
    %1687 = vmatmul.f32.gmra.mxu0 %v305
    %v1688 = vpop.f32.mrf.mxu0
    %v1689 = vadd.f32 %v1528, %v1688
    %1690 = vmatmul.f32.gmra.mxu0 %v308
    %v1691 = vpop.f32.mrf.mxu0
    %v1692 = vadd.f32 %v1531, %v1691
    %1693 = vmatmul.f32.gmra.mxu0 %v311
    %v1694 = vpop.f32.mrf.mxu0
    %v1695 = vadd.f32 %v1534, %v1694
    %1696 = vmatmul.f32.gmra.mxu0 %v314
    %v1697 = vpop.f32.mrf.mxu0
    %v1698 = vadd.f32 %v1537, %v1697
    %1699 = vmatmul.f32.gmra.mxu0 %v317
    %v1700 = vpop.f32.mrf.mxu0
    %v1701 = vadd.f32 %v1540, %v1700
    %1702 = vmatmul.f32.gmra.mxu0 %v320
    %v1703 = vpop.f32.mrf.mxu0
    %v1704 = vadd.f32 %v1543, %v1703
    %1705 = vmatmul.f32.gmra.mxu0 %v323
    %v1706 = vpop.f32.mrf.mxu0
    %v1707 = vadd.f32 %v1546, %v1706
    %1708 = vmatmul.f32.gmra.mxu0 %v326
    %v1709 = vpop.f32.mrf.mxu0
    %v1710 = vadd.f32 %v1549, %v1709
    %1711 = vmatmul.f32.gmra.mxu0 %v329
    %v1712 = vpop.f32.mrf.mxu0
    %v1713 = vadd.f32 %v1552, %v1712
    %1714 = vmatmul.f32.gmra.mxu0 %v332
    %v1715 = vpop.f32.mrf.mxu0
    %v1716 = vadd.f32 %v1555, %v1715
    %1717 = vmatmul.f32.gmra.mxu0 %v335
    %v1718 = vpop.f32.mrf.mxu0
    %v1719 = vadd.f32 %v1558, %v1718
    %1720 = vmatmul.f32.gmra.mxu0 %v338
    %v1721 = vpop.f32.mrf.mxu0
    %v1722 = vadd.f32 %v1561, %v1721
    %1723 = vmatmul.f32.gmra.mxu0 %v341
    %v1724 = vpop.f32.mrf.mxu0
    %v1725 = vadd.f32 %v1564, %v1724
    %1726 = vmatmul.f32.gmra.mxu0 %v344
    %v1727 = vpop.f32.mrf.mxu0
    %v1728 = vadd.f32 %v1567, %v1727
    %1729 = vmatmul.f32.gmra.mxu0 %v347
    %v1730 = vpop.f32.mrf.mxu0
    %v1731 = vadd.f32 %v1570, %v1730
    %1732 = vmatmul.f32.gmra.mxu0 %v350
    %v1733 = vpop.f32.mrf.mxu0
    %v1734 = vadd.f32 %v1573, %v1733
    %1735 = vmatmul.f32.gmra.mxu0 %v353
    %v1736 = vpop.f32.mrf.mxu0
    %v1737 = vadd.f32 %v1576, %v1736
    %1738 = vmatmul.f32.gmra.mxu0 %v356
    %v1739 = vpop.f32.mrf.mxu0
    %v1740 = vadd.f32 %v1579, %v1739
    %1741 = vmatmul.f32.gmra.mxu0 %v359
    %v1742 = vpop.f32.mrf.mxu0
    %v1743 = vadd.f32 %v1582, %v1742
    %1744 = vmatmul.f32.gmra.mxu0 %v362
    %v1745 = vpop.f32.mrf.mxu0
    %v1746 = vadd.f32 %v1585, %v1745
    %1747 = vmatmul.f32.gmra.mxu0 %v365
    %v1748 = vpop.f32.mrf.mxu0
    %v1749 = vadd.f32 %v1588, %v1748
    %1750 = vmatmul.f32.gmra.mxu0 %v368
    %v1751 = vpop.f32.mrf.mxu0
    %v1752 = vadd.f32 %v1591, %v1751
    %1753 = vmatmul.f32.gmra.mxu0 %v371
    %v1754 = vpop.f32.mrf.mxu0
    %v1755 = vadd.f32 %v1594, %v1754
    %1756 = vmatmul.f32.gmra.mxu0 %v374
    %v1757 = vpop.f32.mrf.mxu0
    %v1758 = vadd.f32 %v1597, %v1757
    %1759 = vmatmul.f32.gmra.mxu0 %v377
    %v1760 = vpop.f32.mrf.mxu0
    %v1761 = vadd.f32 %v1600, %v1760
    %1762 = vmatmul.f32.gmra.mxu0 %v380
    %v1763 = vpop.f32.mrf.mxu0
    %v1764 = vadd.f32 %v1603, %v1763
    %1765 = vmatmul.f32.gmra.mxu0 %v383
    %v1766 = vpop.f32.mrf.mxu0
    %v1767 = vadd.f32 %v1606, %v1766
    %1768 = vmatmul.f32.gmra.mxu0 %v386
    %v1769 = vpop.f32.mrf.mxu0
    %v1770 = vadd.f32 %v1609, %v1769
    %1771 = vmatmul.f32.gmra.mxu0 %v389
    %v1772 = vpop.f32.mrf.mxu0
    %v1773 = vadd.f32 %v1612, %v1772
    %1774 = vmatmul.f32.gmra.mxu0 %v392
    %v1775 = vpop.f32.mrf.mxu0
    %v1776 = vadd.f32 %v1615, %v1775
    %1777 = vmatmul.f32.gmra.mxu0 %v395
    %v1778 = vpop.f32.mrf.mxu0
    %v1779 = vadd.f32 %v1618, %v1778
    %1780 = vmatmul.f32.gmra.mxu0 %v398
    %v1781 = vpop.f32.mrf.mxu0
    %v1782 = vadd.f32 %v1621, %v1781
    %1783 = vdwg.mxu0
    %1784 = vmatpush.msra.mxu0 %v495
    %1785 = vmatpush.msra.mxu0 %v493
    %1786 = vmatpush.msra.mxu0 %v491
    %1787 = vmatpush.msra.mxu0 %v489
    %1788 = vmatpush.msra.mxu0 %v487
    %1789 = vmatpush.msra.mxu0 %v485
    %1790 = vmatpush.msra.mxu0 %v483
    %1791 = vmatpush.msra.mxu0 %v481
    %1792 = vmatpush.msra.mxu0 %v479
    %1793 = vmatpush.msra.mxu0 %v477
    %1794 = vmatpush.msra.mxu0 %v475
    %1795 = vmatpush.msra.mxu0 %v473
    %1796 = vmatpush.msra.mxu0 %v471
    %1797 = vmatpush.msra.mxu0 %v469
    %1798 = vmatpush.msra.mxu0 %v467
    %1799 = vmatpush.msra.mxu0 %v465
    %1800 = vmatmul.f32.gmra.mxu0 %v258
    %v1801 = vpop.f32.mrf.mxu0
    %v1802 = vadd.f32 %v1641, %v1801
    %1803 = vmatmul.f32.gmra.mxu0 %v261
    %v1804 = vpop.f32.mrf.mxu0
    %v1805 = vadd.f32 %v1644, %v1804
    %1806 = vmatmul.f32.gmra.mxu0 %v264
    %v1807 = vpop.f32.mrf.mxu0
    %v1808 = vadd.f32 %v1647, %v1807
    %1809 = vmatmul.f32.gmra.mxu0 %v267
    %v1810 = vpop.f32.mrf.mxu0
    %v1811 = vadd.f32 %v1650, %v1810
    %1812 = vmatmul.f32.gmra.mxu0 %v270
    %v1813 = vpop.f32.mrf.mxu0
    %v1814 = vadd.f32 %v1653, %v1813
    %1815 = vmatmul.f32.gmra.mxu0 %v273
    %v1816 = vpop.f32.mrf.mxu0
    %v1817 = vadd.f32 %v1656, %v1816
    %1818 = vmatmul.f32.gmra.mxu0 %v276
    %v1819 = vpop.f32.mrf.mxu0
    %v1820 = vadd.f32 %v1659, %v1819
    %1821 = vmatmul.f32.gmra.mxu0 %v279
    %v1822 = vpop.f32.mrf.mxu0
    %v1823 = vadd.f32 %v1662, %v1822
    %1824 = vmatmul.f32.gmra.mxu0 %v282
    %v1825 = vpop.f32.mrf.mxu0
    %v1826 = vadd.f32 %v1665, %v1825
    %1827 = vmatmul.f32.gmra.mxu0 %v285
    %v1828 = vpop.f32.mrf.mxu0
    %v1829 = vadd.f32 %v1668, %v1828
    %1830 = vmatmul.f32.gmra.mxu0 %v288
    %v1831 = vpop.f32.mrf.mxu0
    %v1832 = vadd.f32 %v1671, %v1831
    %1833 = vmatmul.f32.gmra.mxu0 %v291
    %v1834 = vpop.f32.mrf.mxu0
    %v1835 = vadd.f32 %v1674, %v1834
    %1836 = vmatmul.f32.gmra.mxu0 %v294
    %v1837 = vpop.f32.mrf.mxu0
    %v1838 = vadd.f32 %v1677, %v1837
    %1839 = vmatmul.f32.gmra.mxu0 %v297
    %v1840 = vpop.f32.mrf.mxu0
    %v1841 = vadd.f32 %v1680, %v1840
    %1842 = vmatmul.f32.gmra.mxu0 %v300
    %v1843 = vpop.f32.mrf.mxu0
    %v1844 = vadd.f32 %v1683, %v1843
    %1845 = vmatmul.f32.gmra.mxu0 %v303
    %v1846 = vpop.f32.mrf.mxu0
    %v1847 = vadd.f32 %v1686, %v1846
    %1848 = vmatmul.f32.gmra.mxu0 %v306
    %v1849 = vpop.f32.mrf.mxu0
    %v1850 = vadd.f32 %v1689, %v1849
    %1851 = vmatmul.f32.gmra.mxu0 %v309
    %v1852 = vpop.f32.mrf.mxu0
    %v1853 = vadd.f32 %v1692, %v1852
    %1854 = vmatmul.f32.gmra.mxu0 %v312
    %v1855 = vpop.f32.mrf.mxu0
    %v1856 = vadd.f32 %v1695, %v1855
    %1857 = vmatmul.f32.gmra.mxu0 %v315
    %v1858 = vpop.f32.mrf.mxu0
    %v1859 = vadd.f32 %v1698, %v1858
    %1860 = vmatmul.f32.gmra.mxu0 %v318
    %v1861 = vpop.f32.mrf.mxu0
    %v1862 = vadd.f32 %v1701, %v1861
    %1863 = vmatmul.f32.gmra.mxu0 %v321
    %v1864 = vpop.f32.mrf.mxu0
    %v1865 = vadd.f32 %v1704, %v1864
    %1866 = vmatmul.f32.gmra.mxu0 %v324
    %v1867 = vpop.f32.mrf.mxu0
    %v1868 = vadd.f32 %v1707, %v1867
    %1869 = vmatmul.f32.gmra.mxu0 %v327
    %v1870 = vpop.f32.mrf.mxu0
    %v1871 = vadd.f32 %v1710, %v1870
    %1872 = vmatmul.f32.gmra.mxu0 %v330
    %v1873 = vpop.f32.mrf.mxu0
    %v1874 = vadd.f32 %v1713, %v1873
    %1875 = vmatmul.f32.gmra.mxu0 %v333
    %v1876 = vpop.f32.mrf.mxu0
    %v1877 = vadd.f32 %v1716, %v1876
    %1878 = vmatmul.f32.gmra.mxu0 %v336
    %v1879 = vpop.f32.mrf.mxu0
    %v1880 = vadd.f32 %v1719, %v1879
    %1881 = vmatmul.f32.gmra.mxu0 %v339
    %v1882 = vpop.f32.mrf.mxu0
    %v1883 = vadd.f32 %v1722, %v1882
    %1884 = vmatmul.f32.gmra.mxu0 %v342
    %v1885 = vpop.f32.mrf.mxu0
    %v1886 = vadd.f32 %v1725, %v1885
    %1887 = vmatmul.f32.gmra.mxu0 %v345
    %v1888 = vpop.f32.mrf.mxu0
    %v1889 = vadd.f32 %v1728, %v1888
    %1890 = vmatmul.f32.gmra.mxu0 %v348
    %v1891 = vpop.f32.mrf.mxu0
    %v1892 = vadd.f32 %v1731, %v1891
    %1893 = vmatmul.f32.gmra.mxu0 %v351
    %v1894 = vpop.f32.mrf.mxu0
    %v1895 = vadd.f32 %v1734, %v1894
    %1896 = vmatmul.f32.gmra.mxu0 %v354
    %v1897 = vpop.f32.mrf.mxu0
    %v1898 = vadd.f32 %v1737, %v1897
    %1899 = vmatmul.f32.gmra.mxu0 %v357
    %v1900 = vpop.f32.mrf.mxu0
    %v1901 = vadd.f32 %v1740, %v1900
    %1902 = vmatmul.f32.gmra.mxu0 %v360
    %v1903 = vpop.f32.mrf.mxu0
    %v1904 = vadd.f32 %v1743, %v1903
    %1905 = vmatmul.f32.gmra.mxu0 %v363
    %v1906 = vpop.f32.mrf.mxu0
    %v1907 = vadd.f32 %v1746, %v1906
    %1908 = vmatmul.f32.gmra.mxu0 %v366
    %v1909 = vpop.f32.mrf.mxu0
    %v1910 = vadd.f32 %v1749, %v1909
    %1911 = vmatmul.f32.gmra.mxu0 %v369
    %v1912 = vpop.f32.mrf.mxu0
    %v1913 = vadd.f32 %v1752, %v1912
    %1914 = vmatmul.f32.gmra.mxu0 %v372
    %v1915 = vpop.f32.mrf.mxu0
    %v1916 = vadd.f32 %v1755, %v1915
    %1917 = vmatmul.f32.gmra.mxu0 %v375
    %v1918 = vpop.f32.mrf.mxu0
    %v1919 = vadd.f32 %v1758, %v1918
    %1920 = vmatmul.f32.gmra.mxu0 %v378
    %v1921 = vpop.f32.mrf.mxu0
    %v1922 = vadd.f32 %v1761, %v1921
    %1923 = vmatmul.f32.gmra.mxu0 %v381
    %v1924 = vpop.f32.mrf.mxu0
    %v1925 = vadd.f32 %v1764, %v1924
    %1926 = vmatmul.f32.gmra.mxu0 %v384
    %v1927 = vpop.f32.mrf.mxu0
    %v1928 = vadd.f32 %v1767, %v1927
    %1929 = vmatmul.f32.gmra.mxu0 %v387
    %v1930 = vpop.f32.mrf.mxu0
    %v1931 = vadd.f32 %v1770, %v1930
    %1932 = vmatmul.f32.gmra.mxu0 %v390
    %v1933 = vpop.f32.mrf.mxu0
    %v1934 = vadd.f32 %v1773, %v1933
    %1935 = vmatmul.f32.gmra.mxu0 %v393
    %v1936 = vpop.f32.mrf.mxu0
    %v1937 = vadd.f32 %v1776, %v1936
    %1938 = vmatmul.f32.gmra.mxu0 %v396
    %v1939 = vpop.f32.mrf.mxu0
    %v1940 = vadd.f32 %v1779, %v1939
    %1941 = vmatmul.f32.gmra.mxu0 %v399
    %v1942 = vpop.f32.mrf.mxu0
    %v1943 = vadd.f32 %v1782, %v1942
    %1944 = vdwg.mxu0
    %1945 = vmatpush.msra.mxu0 %v881
    %1946 = vmatpush.msra.mxu0 %v878
    %1947 = vmatpush.msra.mxu0 %v875
    %1948 = vmatpush.msra.mxu0 %v872
    %1949 = vmatpush.msra.mxu0 %v869
    %1950 = vmatpush.msra.mxu0 %v866
    %1951 = vmatpush.msra.mxu0 %v863
    %1952 = vmatpush.msra.mxu0 %v860
    %1953 = vmatpush.msra.mxu0 %v857
    %1954 = vmatpush.msra.mxu0 %v854
    %1955 = vmatpush.msra.mxu0 %v851
    %1956 = vmatpush.msra.mxu0 %v848
    %1957 = vmatpush.msra.mxu0 %v845
    %1958 = vmatpush.msra.mxu0 %v842
    %1959 = vmatpush.msra.mxu0 %v839
    %1960 = vmatpush.msra.mxu0 %v836
    %1961 = vmatmul.f32.gmra.mxu0 %v112
    %v1962 = vpop.f32.mrf.mxu0
    %v1963 = vadd.f32 0.0, %v1962
    %1964 = vmatmul.f32.gmra.mxu0 %v115
    %v1965 = vpop.f32.mrf.mxu0
    %v1966 = vadd.f32 0.0, %v1965
    %1967 = vmatmul.f32.gmra.mxu0 %v118
    %v1968 = vpop.f32.mrf.mxu0
    %v1969 = vadd.f32 0.0, %v1968
    %1970 = vmatmul.f32.gmra.mxu0 %v121
    %v1971 = vpop.f32.mrf.mxu0
    %v1972 = vadd.f32 0.0, %v1971
    %1973 = vmatmul.f32.gmra.mxu0 %v124
    %v1974 = vpop.f32.mrf.mxu0
    %v1975 = vadd.f32 0.0, %v1974
    %1976 = vmatmul.f32.gmra.mxu0 %v127
    %v1977 = vpop.f32.mrf.mxu0
    %v1978 = vadd.f32 0.0, %v1977
    %1979 = vmatmul.f32.gmra.mxu0 %v130
    %v1980 = vpop.f32.mrf.mxu0
    %v1981 = vadd.f32 0.0, %v1980
    %1982 = vmatmul.f32.gmra.mxu0 %v133
    %v1983 = vpop.f32.mrf.mxu0
    %v1984 = vadd.f32 0.0, %v1983
    %1985 = vmatmul.f32.gmra.mxu0 %v136
    %v1986 = vpop.f32.mrf.mxu0
    %v1987 = vadd.f32 0.0, %v1986
    %1988 = vmatmul.f32.gmra.mxu0 %v139
    %v1989 = vpop.f32.mrf.mxu0
    %v1990 = vadd.f32 0.0, %v1989
    %1991 = vmatmul.f32.gmra.mxu0 %v142
    %v1992 = vpop.f32.mrf.mxu0
    %v1993 = vadd.f32 0.0, %v1992
    %1994 = vmatmul.f32.gmra.mxu0 %v145
    %v1995 = vpop.f32.mrf.mxu0
    %v1996 = vadd.f32 0.0, %v1995
    %1997 = vmatmul.f32.gmra.mxu0 %v148
    %v1998 = vpop.f32.mrf.mxu0
    %v1999 = vadd.f32 0.0, %v1998
    %2000 = vmatmul.f32.gmra.mxu0 %v151
    %v2001 = vpop.f32.mrf.mxu0
    %v2002 = vadd.f32 0.0, %v2001
    %2003 = vmatmul.f32.gmra.mxu0 %v154
    %v2004 = vpop.f32.mrf.mxu0
    %v2005 = vadd.f32 0.0, %v2004
    %2006 = vmatmul.f32.gmra.mxu0 %v157
    %v2007 = vpop.f32.mrf.mxu0
    %v2008 = vadd.f32 0.0, %v2007
    %2009 = vmatmul.f32.gmra.mxu0 %v160
    %v2010 = vpop.f32.mrf.mxu0
    %v2011 = vadd.f32 0.0, %v2010
    %2012 = vmatmul.f32.gmra.mxu0 %v163
    %v2013 = vpop.f32.mrf.mxu0
    %v2014 = vadd.f32 0.0, %v2013
    %2015 = vmatmul.f32.gmra.mxu0 %v166
    %v2016 = vpop.f32.mrf.mxu0
    %v2017 = vadd.f32 0.0, %v2016
    %2018 = vmatmul.f32.gmra.mxu0 %v169
    %v2019 = vpop.f32.mrf.mxu0
    %v2020 = vadd.f32 0.0, %v2019
    %2021 = vmatmul.f32.gmra.mxu0 %v172
    %v2022 = vpop.f32.mrf.mxu0
    %v2023 = vadd.f32 0.0, %v2022
    %2024 = vmatmul.f32.gmra.mxu0 %v175
    %v2025 = vpop.f32.mrf.mxu0
    %v2026 = vadd.f32 0.0, %v2025
    %2027 = vmatmul.f32.gmra.mxu0 %v178
    %v2028 = vpop.f32.mrf.mxu0
    %v2029 = vadd.f32 0.0, %v2028
    %2030 = vmatmul.f32.gmra.mxu0 %v181
    %v2031 = vpop.f32.mrf.mxu0
    %v2032 = vadd.f32 0.0, %v2031
    %2033 = vmatmul.f32.gmra.mxu0 %v184
    %v2034 = vpop.f32.mrf.mxu0
    %v2035 = vadd.f32 0.0, %v2034
    %2036 = vmatmul.f32.gmra.mxu0 %v187
    %v2037 = vpop.f32.mrf.mxu0
    %v2038 = vadd.f32 0.0, %v2037
    %2039 = vmatmul.f32.gmra.mxu0 %v190
    %v2040 = vpop.f32.mrf.mxu0
    %v2041 = vadd.f32 0.0, %v2040
    %2042 = vmatmul.f32.gmra.mxu0 %v193
    %v2043 = vpop.f32.mrf.mxu0
    %v2044 = vadd.f32 0.0, %v2043
    %2045 = vmatmul.f32.gmra.mxu0 %v196
    %v2046 = vpop.f32.mrf.mxu0
    %v2047 = vadd.f32 0.0, %v2046
    %2048 = vmatmul.f32.gmra.mxu0 %v199
    %v2049 = vpop.f32.mrf.mxu0
    %v2050 = vadd.f32 0.0, %v2049
    %2051 = vmatmul.f32.gmra.mxu0 %v202
    %v2052 = vpop.f32.mrf.mxu0
    %v2053 = vadd.f32 0.0, %v2052
    %2054 = vmatmul.f32.gmra.mxu0 %v205
    %v2055 = vpop.f32.mrf.mxu0
    %v2056 = vadd.f32 0.0, %v2055
    %2057 = vmatmul.f32.gmra.mxu0 %v208
    %v2058 = vpop.f32.mrf.mxu0
    %v2059 = vadd.f32 0.0, %v2058
    %2060 = vmatmul.f32.gmra.mxu0 %v211
    %v2061 = vpop.f32.mrf.mxu0
    %v2062 = vadd.f32 0.0, %v2061
    %2063 = vmatmul.f32.gmra.mxu0 %v214
    %v2064 = vpop.f32.mrf.mxu0
    %v2065 = vadd.f32 0.0, %v2064
    %2066 = vmatmul.f32.gmra.mxu0 %v217
    %v2067 = vpop.f32.mrf.mxu0
    %v2068 = vadd.f32 0.0, %v2067
    %2069 = vmatmul.f32.gmra.mxu0 %v220
    %v2070 = vpop.f32.mrf.mxu0
    %v2071 = vadd.f32 0.0, %v2070
    %2072 = vmatmul.f32.gmra.mxu0 %v223
    %v2073 = vpop.f32.mrf.mxu0
    %v2074 = vadd.f32 0.0, %v2073
    %2075 = vmatmul.f32.gmra.mxu0 %v226
    %v2076 = vpop.f32.mrf.mxu0
    %v2077 = vadd.f32 0.0, %v2076
    %2078 = vmatmul.f32.gmra.mxu0 %v229
    %v2079 = vpop.f32.mrf.mxu0
    %v2080 = vadd.f32 0.0, %v2079
    %2081 = vmatmul.f32.gmra.mxu0 %v232
    %v2082 = vpop.f32.mrf.mxu0
    %v2083 = vadd.f32 0.0, %v2082
    %2084 = vmatmul.f32.gmra.mxu0 %v235
    %v2085 = vpop.f32.mrf.mxu0
    %v2086 = vadd.f32 0.0, %v2085
    %2087 = vmatmul.f32.gmra.mxu0 %v238
    %v2088 = vpop.f32.mrf.mxu0
    %v2089 = vadd.f32 0.0, %v2088
    %2090 = vmatmul.f32.gmra.mxu0 %v241
    %v2091 = vpop.f32.mrf.mxu0
    %v2092 = vadd.f32 0.0, %v2091
    %2093 = vmatmul.f32.gmra.mxu0 %v244
    %v2094 = vpop.f32.mrf.mxu0
    %v2095 = vadd.f32 0.0, %v2094
    %2096 = vmatmul.f32.gmra.mxu0 %v247
    %v2097 = vpop.f32.mrf.mxu0
    %v2098 = vadd.f32 0.0, %v2097
    %2099 = vmatmul.f32.gmra.mxu0 %v250
    %v2100 = vpop.f32.mrf.mxu0
    %v2101 = vadd.f32 0.0, %v2100
    %2102 = vmatmul.f32.gmra.mxu0 %v253
    %v2103 = vpop.f32.mrf.mxu0
    %v2104 = vadd.f32 0.0, %v2103
    %2105 = vdwg.mxu0
    %2106 = vmatpush.msra.mxu0 %v929
    %2107 = vmatpush.msra.mxu0 %v926
    %2108 = vmatpush.msra.mxu0 %v923
    %2109 = vmatpush.msra.mxu0 %v920
    %2110 = vmatpush.msra.mxu0 %v917
    %2111 = vmatpush.msra.mxu0 %v914
    %2112 = vmatpush.msra.mxu0 %v911
    %2113 = vmatpush.msra.mxu0 %v908
    %2114 = vmatpush.msra.mxu0 %v905
    %2115 = vmatpush.msra.mxu0 %v902
    %2116 = vmatpush.msra.mxu0 %v899
    %2117 = vmatpush.msra.mxu0 %v896
    %2118 = vmatpush.msra.mxu0 %v893
    %2119 = vmatpush.msra.mxu0 %v890
    %2120 = vmatpush.msra.mxu0 %v887
    %2121 = vmatpush.msra.mxu0 %v884
    %2122 = vmatmul.f32.gmra.mxu0 %v113
    %v2123 = vpop.f32.mrf.mxu0
    %v2124 = vadd.f32 %v1963, %v2123
    %2125 = vmatmul.f32.gmra.mxu0 %v116
    %v2126 = vpop.f32.mrf.mxu0
    %v2127 = vadd.f32 %v1966, %v2126
    %2128 = vmatmul.f32.gmra.mxu0 %v119
    %v2129 = vpop.f32.mrf.mxu0
    %v2130 = vadd.f32 %v1969, %v2129
    %2131 = vmatmul.f32.gmra.mxu0 %v122
    %v2132 = vpop.f32.mrf.mxu0
    %v2133 = vadd.f32 %v1972, %v2132
    %2134 = vmatmul.f32.gmra.mxu0 %v125
    %v2135 = vpop.f32.mrf.mxu0
    %v2136 = vadd.f32 %v1975, %v2135
    %2137 = vmatmul.f32.gmra.mxu0 %v128
    %v2138 = vpop.f32.mrf.mxu0
    %v2139 = vadd.f32 %v1978, %v2138
    %2140 = vmatmul.f32.gmra.mxu0 %v131
    %v2141 = vpop.f32.mrf.mxu0
    %v2142 = vadd.f32 %v1981, %v2141
    %2143 = vmatmul.f32.gmra.mxu0 %v134
    %v2144 = vpop.f32.mrf.mxu0
    %v2145 = vadd.f32 %v1984, %v2144
    %2146 = vmatmul.f32.gmra.mxu0 %v137
    %v2147 = vpop.f32.mrf.mxu0
    %v2148 = vadd.f32 %v1987, %v2147
    %2149 = vmatmul.f32.gmra.mxu0 %v140
    %v2150 = vpop.f32.mrf.mxu0
    %v2151 = vadd.f32 %v1990, %v2150
    %2152 = vmatmul.f32.gmra.mxu0 %v143
    %v2153 = vpop.f32.mrf.mxu0
    %v2154 = vadd.f32 %v1993, %v2153
    %2155 = vmatmul.f32.gmra.mxu0 %v146
    %v2156 = vpop.f32.mrf.mxu0
    %v2157 = vadd.f32 %v1996, %v2156
    %2158 = vmatmul.f32.gmra.mxu0 %v149
    %v2159 = vpop.f32.mrf.mxu0
    %v2160 = vadd.f32 %v1999, %v2159
    %2161 = vmatmul.f32.gmra.mxu0 %v152
    %v2162 = vpop.f32.mrf.mxu0
    %v2163 = vadd.f32 %v2002, %v2162
    %2164 = vmatmul.f32.gmra.mxu0 %v155
    %v2165 = vpop.f32.mrf.mxu0
    %v2166 = vadd.f32 %v2005, %v2165
    %2167 = vmatmul.f32.gmra.mxu0 %v158
    %v2168 = vpop.f32.mrf.mxu0
    %v2169 = vadd.f32 %v2008, %v2168
    %2170 = vmatmul.f32.gmra.mxu0 %v161
    %v2171 = vpop.f32.mrf.mxu0
    %v2172 = vadd.f32 %v2011, %v2171
    %2173 = vmatmul.f32.gmra.mxu0 %v164
    %v2174 = vpop.f32.mrf.mxu0
    %v2175 = vadd.f32 %v2014, %v2174
    %2176 = vmatmul.f32.gmra.mxu0 %v167
    %v2177 = vpop.f32.mrf.mxu0
    %v2178 = vadd.f32 %v2017, %v2177
    %2179 = vmatmul.f32.gmra.mxu0 %v170
    %v2180 = vpop.f32.mrf.mxu0
    %v2181 = vadd.f32 %v2020, %v2180
    %2182 = vmatmul.f32.gmra.mxu0 %v173
    %v2183 = vpop.f32.mrf.mxu0
    %v2184 = vadd.f32 %v2023, %v2183
    %2185 = vmatmul.f32.gmra.mxu0 %v176
    %v2186 = vpop.f32.mrf.mxu0
    %v2187 = vadd.f32 %v2026, %v2186
    %2188 = vmatmul.f32.gmra.mxu0 %v179
    %v2189 = vpop.f32.mrf.mxu0
    %v2190 = vadd.f32 %v2029, %v2189
    %2191 = vmatmul.f32.gmra.mxu0 %v182
    %v2192 = vpop.f32.mrf.mxu0
    %v2193 = vadd.f32 %v2032, %v2192
    %2194 = vmatmul.f32.gmra.mxu0 %v185
    %v2195 = vpop.f32.mrf.mxu0
    %v2196 = vadd.f32 %v2035, %v2195
    %2197 = vmatmul.f32.gmra.mxu0 %v188
    %v2198 = vpop.f32.mrf.mxu0
    %v2199 = vadd.f32 %v2038, %v2198
    %2200 = vmatmul.f32.gmra.mxu0 %v191
    %v2201 = vpop.f32.mrf.mxu0
    %v2202 = vadd.f32 %v2041, %v2201
    %2203 = vmatmul.f32.gmra.mxu0 %v194
    %v2204 = vpop.f32.mrf.mxu0
    %v2205 = vadd.f32 %v2044, %v2204
    %2206 = vmatmul.f32.gmra.mxu0 %v197
    %v2207 = vpop.f32.mrf.mxu0
    %v2208 = vadd.f32 %v2047, %v2207
    %2209 = vmatmul.f32.gmra.mxu0 %v200
    %v2210 = vpop.f32.mrf.mxu0
    %v2211 = vadd.f32 %v2050, %v2210
    %2212 = vmatmul.f32.gmra.mxu0 %v203
    %v2213 = vpop.f32.mrf.mxu0
    %v2214 = vadd.f32 %v2053, %v2213
    %2215 = vmatmul.f32.gmra.mxu0 %v206
    %v2216 = vpop.f32.mrf.mxu0
    %v2217 = vadd.f32 %v2056, %v2216
    %2218 = vmatmul.f32.gmra.mxu0 %v209
    %v2219 = vpop.f32.mrf.mxu0
    %v2220 = vadd.f32 %v2059, %v2219
    %2221 = vmatmul.f32.gmra.mxu0 %v212
    %v2222 = vpop.f32.mrf.mxu0
    %v2223 = vadd.f32 %v2062, %v2222
    %2224 = vmatmul.f32.gmra.mxu0 %v215
    %v2225 = vpop.f32.mrf.mxu0
    %v2226 = vadd.f32 %v2065, %v2225
    %2227 = vmatmul.f32.gmra.mxu0 %v218
    %v2228 = vpop.f32.mrf.mxu0
    %v2229 = vadd.f32 %v2068, %v2228
    %2230 = vmatmul.f32.gmra.mxu0 %v221
    %v2231 = vpop.f32.mrf.mxu0
    %v2232 = vadd.f32 %v2071, %v2231
    %2233 = vmatmul.f32.gmra.mxu0 %v224
    %v2234 = vpop.f32.mrf.mxu0
    %v2235 = vadd.f32 %v2074, %v2234
    %2236 = vmatmul.f32.gmra.mxu0 %v227
    %v2237 = vpop.f32.mrf.mxu0
    %v2238 = vadd.f32 %v2077, %v2237
    %2239 = vmatmul.f32.gmra.mxu0 %v230
    %v2240 = vpop.f32.mrf.mxu0
    %v2241 = vadd.f32 %v2080, %v2240
    %2242 = vmatmul.f32.gmra.mxu0 %v233
    %v2243 = vpop.f32.mrf.mxu0
    %v2244 = vadd.f32 %v2083, %v2243
    %2245 = vmatmul.f32.gmra.mxu0 %v236
    %v2246 = vpop.f32.mrf.mxu0
    %v2247 = vadd.f32 %v2086, %v2246
    %2248 = vmatmul.f32.gmra.mxu0 %v239
    %v2249 = vpop.f32.mrf.mxu0
    %v2250 = vadd.f32 %v2089, %v2249
    %2251 = vmatmul.f32.gmra.mxu0 %v242
    %v2252 = vpop.f32.mrf.mxu0
    %v2253 = vadd.f32 %v2092, %v2252
    %2254 = vmatmul.f32.gmra.mxu0 %v245
    %v2255 = vpop.f32.mrf.mxu0
    %v2256 = vadd.f32 %v2095, %v2255
    %2257 = vmatmul.f32.gmra.mxu0 %v248
    %v2258 = vpop.f32.mrf.mxu0
    %v2259 = vadd.f32 %v2098, %v2258
    %2260 = vmatmul.f32.gmra.mxu0 %v251
    %v2261 = vpop.f32.mrf.mxu0
    %v2262 = vadd.f32 %v2101, %v2261
    %2263 = vmatmul.f32.gmra.mxu0 %v254
    %v2264 = vpop.f32.mrf.mxu0
    %v2265 = vadd.f32 %v2104, %v2264
    %2266 = vdwg.mxu0
    %2267 = vmatpush.msra.mxu0 %v977
    %2268 = vmatpush.msra.mxu0 %v974
    %2269 = vmatpush.msra.mxu0 %v971
    %2270 = vmatpush.msra.mxu0 %v968
    %2271 = vmatpush.msra.mxu0 %v965
    %2272 = vmatpush.msra.mxu0 %v962
    %2273 = vmatpush.msra.mxu0 %v959
    %2274 = vmatpush.msra.mxu0 %v956
    %2275 = vmatpush.msra.mxu0 %v953
    %2276 = vmatpush.msra.mxu0 %v950
    %2277 = vmatpush.msra.mxu0 %v947
    %2278 = vmatpush.msra.mxu0 %v944
    %2279 = vmatpush.msra.mxu0 %v941
    %2280 = vmatpush.msra.mxu0 %v938
    %2281 = vmatpush.msra.mxu0 %v935
    %2282 = vmatpush.msra.mxu0 %v932
    %2283 = vmatmul.f32.gmra.mxu0 %v114
    %v2284 = vpop.f32.mrf.mxu0
    %v2285 = vadd.f32 %v2124, %v2284
    %2286 = vmatmul.f32.gmra.mxu0 %v117
    %v2287 = vpop.f32.mrf.mxu0
    %v2288 = vadd.f32 %v2127, %v2287
    %2289 = vmatmul.f32.gmra.mxu0 %v120
    %v2290 = vpop.f32.mrf.mxu0
    %v2291 = vadd.f32 %v2130, %v2290
    %2292 = vmatmul.f32.gmra.mxu0 %v123
    %v2293 = vpop.f32.mrf.mxu0
    %v2294 = vadd.f32 %v2133, %v2293
    %2295 = vmatmul.f32.gmra.mxu0 %v126
    %v2296 = vpop.f32.mrf.mxu0
    %v2297 = vadd.f32 %v2136, %v2296
    %2298 = vmatmul.f32.gmra.mxu0 %v129
    %v2299 = vpop.f32.mrf.mxu0
    %v2300 = vadd.f32 %v2139, %v2299
    %2301 = vmatmul.f32.gmra.mxu0 %v132
    %v2302 = vpop.f32.mrf.mxu0
    %v2303 = vadd.f32 %v2142, %v2302
    %2304 = vmatmul.f32.gmra.mxu0 %v135
    %v2305 = vpop.f32.mrf.mxu0
    %v2306 = vadd.f32 %v2145, %v2305
    %2307 = vmatmul.f32.gmra.mxu0 %v138
    %v2308 = vpop.f32.mrf.mxu0
    %v2309 = vadd.f32 %v2148, %v2308
    %2310 = vmatmul.f32.gmra.mxu0 %v141
    %v2311 = vpop.f32.mrf.mxu0
    %v2312 = vadd.f32 %v2151, %v2311
    %2313 = vmatmul.f32.gmra.mxu0 %v144
    %v2314 = vpop.f32.mrf.mxu0
    %v2315 = vadd.f32 %v2154, %v2314
    %2316 = vmatmul.f32.gmra.mxu0 %v147
    %v2317 = vpop.f32.mrf.mxu0
    %v2318 = vadd.f32 %v2157, %v2317
    %2319 = vmatmul.f32.gmra.mxu0 %v150
    %v2320 = vpop.f32.mrf.mxu0
    %v2321 = vadd.f32 %v2160, %v2320
    %2322 = vmatmul.f32.gmra.mxu0 %v153
    %v2323 = vpop.f32.mrf.mxu0
    %v2324 = vadd.f32 %v2163, %v2323
    %2325 = vmatmul.f32.gmra.mxu0 %v156
    %v2326 = vpop.f32.mrf.mxu0
    %v2327 = vadd.f32 %v2166, %v2326
    %2328 = vmatmul.f32.gmra.mxu0 %v159
    %v2329 = vpop.f32.mrf.mxu0
    %v2330 = vadd.f32 %v2169, %v2329
    %2331 = vmatmul.f32.gmra.mxu0 %v162
    %v2332 = vpop.f32.mrf.mxu0
    %v2333 = vadd.f32 %v2172, %v2332
    %2334 = vmatmul.f32.gmra.mxu0 %v165
    %v2335 = vpop.f32.mrf.mxu0
    %v2336 = vadd.f32 %v2175, %v2335
    %2337 = vmatmul.f32.gmra.mxu0 %v168
    %v2338 = vpop.f32.mrf.mxu0
    %v2339 = vadd.f32 %v2178, %v2338
    %2340 = vmatmul.f32.gmra.mxu0 %v171
    %v2341 = vpop.f32.mrf.mxu0
    %v2342 = vadd.f32 %v2181, %v2341
    %2343 = vmatmul.f32.gmra.mxu0 %v174
    %v2344 = vpop.f32.mrf.mxu0
    %v2345 = vadd.f32 %v2184, %v2344
    %2346 = vmatmul.f32.gmra.mxu0 %v177
    %v2347 = vpop.f32.mrf.mxu0
    %v2348 = vadd.f32 %v2187, %v2347
    %2349 = vmatmul.f32.gmra.mxu0 %v180
    %v2350 = vpop.f32.mrf.mxu0
    %v2351 = vadd.f32 %v2190, %v2350
    %2352 = vmatmul.f32.gmra.mxu0 %v183
    %v2353 = vpop.f32.mrf.mxu0
    %v2354 = vadd.f32 %v2193, %v2353
    %2355 = vmatmul.f32.gmra.mxu0 %v186
    %v2356 = vpop.f32.mrf.mxu0
    %v2357 = vadd.f32 %v2196, %v2356
    %2358 = vmatmul.f32.gmra.mxu0 %v189
    %v2359 = vpop.f32.mrf.mxu0
    %v2360 = vadd.f32 %v2199, %v2359
    %2361 = vmatmul.f32.gmra.mxu0 %v192
    %v2362 = vpop.f32.mrf.mxu0
    %v2363 = vadd.f32 %v2202, %v2362
    %2364 = vmatmul.f32.gmra.mxu0 %v195
    %v2365 = vpop.f32.mrf.mxu0
    %v2366 = vadd.f32 %v2205, %v2365
    %2367 = vmatmul.f32.gmra.mxu0 %v198
    %v2368 = vpop.f32.mrf.mxu0
    %v2369 = vadd.f32 %v2208, %v2368
    %2370 = vmatmul.f32.gmra.mxu0 %v201
    %v2371 = vpop.f32.mrf.mxu0
    %v2372 = vadd.f32 %v2211, %v2371
    %2373 = vmatmul.f32.gmra.mxu0 %v204
    %v2374 = vpop.f32.mrf.mxu0
    %v2375 = vadd.f32 %v2214, %v2374
    %2376 = vmatmul.f32.gmra.mxu0 %v207
    %v2377 = vpop.f32.mrf.mxu0
    %v2378 = vadd.f32 %v2217, %v2377
    %2379 = vmatmul.f32.gmra.mxu0 %v210
    %v2380 = vpop.f32.mrf.mxu0
    %v2381 = vadd.f32 %v2220, %v2380
    %2382 = vmatmul.f32.gmra.mxu0 %v213
    %v2383 = vpop.f32.mrf.mxu0
    %v2384 = vadd.f32 %v2223, %v2383
    %2385 = vmatmul.f32.gmra.mxu0 %v216
    %v2386 = vpop.f32.mrf.mxu0
    %v2387 = vadd.f32 %v2226, %v2386
    %2388 = vmatmul.f32.gmra.mxu0 %v219
    %v2389 = vpop.f32.mrf.mxu0
    %v2390 = vadd.f32 %v2229, %v2389
    %2391 = vmatmul.f32.gmra.mxu0 %v222
    %v2392 = vpop.f32.mrf.mxu0
    %v2393 = vadd.f32 %v2232, %v2392
    %2394 = vmatmul.f32.gmra.mxu0 %v225
    %v2395 = vpop.f32.mrf.mxu0
    %v2396 = vadd.f32 %v2235, %v2395
    %2397 = vmatmul.f32.gmra.mxu0 %v228
    %v2398 = vpop.f32.mrf.mxu0
    %v2399 = vadd.f32 %v2238, %v2398
    %2400 = vmatmul.f32.gmra.mxu0 %v231
    %v2401 = vpop.f32.mrf.mxu0
    %v2402 = vadd.f32 %v2241, %v2401
    %2403 = vmatmul.f32.gmra.mxu0 %v234
    %v2404 = vpop.f32.mrf.mxu0
    %v2405 = vadd.f32 %v2244, %v2404
    %2406 = vmatmul.f32.gmra.mxu0 %v237
    %v2407 = vpop.f32.mrf.mxu0
    %v2408 = vadd.f32 %v2247, %v2407
    %2409 = vmatmul.f32.gmra.mxu0 %v240
    %v2410 = vpop.f32.mrf.mxu0
    %v2411 = vadd.f32 %v2250, %v2410
    %2412 = vmatmul.f32.gmra.mxu0 %v243
    %v2413 = vpop.f32.mrf.mxu0
    %v2414 = vadd.f32 %v2253, %v2413
    %2415 = vmatmul.f32.gmra.mxu0 %v246
    %v2416 = vpop.f32.mrf.mxu0
    %v2417 = vadd.f32 %v2256, %v2416
    %2418 = vmatmul.f32.gmra.mxu0 %v249
    %v2419 = vpop.f32.mrf.mxu0
    %v2420 = vadd.f32 %v2259, %v2419
    %2421 = vmatmul.f32.gmra.mxu0 %v252
    %v2422 = vpop.f32.mrf.mxu0
    %v2423 = vadd.f32 %v2262, %v2422
    %2424 = vmatmul.f32.gmra.mxu0 %v255
    %v2425 = vpop.f32.mrf.mxu0
    %v2426 = vadd.f32 %v2265, %v2425
    %2427 = vdwg.mxu0
    %2428 = vmatpush.msra.mxu0 %v1847
    %2429 = vmatpush.msra.mxu0 %v1844
    %2430 = vmatpush.msra.mxu0 %v1841
    %2431 = vmatpush.msra.mxu0 %v1838
    %2432 = vmatpush.msra.mxu0 %v1835
    %2433 = vmatpush.msra.mxu0 %v1832
    %2434 = vmatpush.msra.mxu0 %v1829
    %2435 = vmatpush.msra.mxu0 %v1826
    %2436 = vmatpush.msra.mxu0 %v1823
    %2437 = vmatpush.msra.mxu0 %v1820
    %2438 = vmatpush.msra.mxu0 %v1817
    %2439 = vmatpush.msra.mxu0 %v1814
    %2440 = vmatpush.msra.mxu0 %v1811
    %2441 = vmatpush.msra.mxu0 %v1808
    %2442 = vmatpush.msra.mxu0 %v1805
    %2443 = vmatpush.msra.mxu0 %v1802
    %2444 = vmatmul.f32.gmra.mxu0 %v112
    %v2445 = vpop.f32.mrf.mxu0
    %v2446 = vadd.f32 0.0, %v2445
    %2447 = vmatmul.f32.gmra.mxu0 %v115
    %v2448 = vpop.f32.mrf.mxu0
    %v2449 = vadd.f32 0.0, %v2448
    %2450 = vmatmul.f32.gmra.mxu0 %v118
    %v2451 = vpop.f32.mrf.mxu0
    %v2452 = vadd.f32 0.0, %v2451
    %2453 = vmatmul.f32.gmra.mxu0 %v121
    %v2454 = vpop.f32.mrf.mxu0
    %v2455 = vadd.f32 0.0, %v2454
    %2456 = vmatmul.f32.gmra.mxu0 %v124
    %v2457 = vpop.f32.mrf.mxu0
    %v2458 = vadd.f32 0.0, %v2457
    %2459 = vmatmul.f32.gmra.mxu0 %v127
    %v2460 = vpop.f32.mrf.mxu0
    %v2461 = vadd.f32 0.0, %v2460
    %2462 = vmatmul.f32.gmra.mxu0 %v130
    %v2463 = vpop.f32.mrf.mxu0
    %v2464 = vadd.f32 0.0, %v2463
    %2465 = vmatmul.f32.gmra.mxu0 %v133
    %v2466 = vpop.f32.mrf.mxu0
    %v2467 = vadd.f32 0.0, %v2466
    %2468 = vmatmul.f32.gmra.mxu0 %v136
    %v2469 = vpop.f32.mrf.mxu0
    %v2470 = vadd.f32 0.0, %v2469
    %2471 = vmatmul.f32.gmra.mxu0 %v139
    %v2472 = vpop.f32.mrf.mxu0
    %v2473 = vadd.f32 0.0, %v2472
    %2474 = vmatmul.f32.gmra.mxu0 %v142
    %v2475 = vpop.f32.mrf.mxu0
    %v2476 = vadd.f32 0.0, %v2475
    %2477 = vmatmul.f32.gmra.mxu0 %v145
    %v2478 = vpop.f32.mrf.mxu0
    %v2479 = vadd.f32 0.0, %v2478
    %2480 = vmatmul.f32.gmra.mxu0 %v148
    %v2481 = vpop.f32.mrf.mxu0
    %v2482 = vadd.f32 0.0, %v2481
    %2483 = vmatmul.f32.gmra.mxu0 %v151
    %v2484 = vpop.f32.mrf.mxu0
    %v2485 = vadd.f32 0.0, %v2484
    %2486 = vmatmul.f32.gmra.mxu0 %v154
    %v2487 = vpop.f32.mrf.mxu0
    %v2488 = vadd.f32 0.0, %v2487
    %2489 = vmatmul.f32.gmra.mxu0 %v157
    %v2490 = vpop.f32.mrf.mxu0
    %v2491 = vadd.f32 0.0, %v2490
    %2492 = vmatmul.f32.gmra.mxu0 %v160
    %v2493 = vpop.f32.mrf.mxu0
    %v2494 = vadd.f32 0.0, %v2493
    %2495 = vmatmul.f32.gmra.mxu0 %v163
    %v2496 = vpop.f32.mrf.mxu0
    %v2497 = vadd.f32 0.0, %v2496
    %2498 = vmatmul.f32.gmra.mxu0 %v166
    %v2499 = vpop.f32.mrf.mxu0
    %v2500 = vadd.f32 0.0, %v2499
    %2501 = vmatmul.f32.gmra.mxu0 %v169
    %v2502 = vpop.f32.mrf.mxu0
    %v2503 = vadd.f32 0.0, %v2502
    %2504 = vmatmul.f32.gmra.mxu0 %v172
    %v2505 = vpop.f32.mrf.mxu0
    %v2506 = vadd.f32 0.0, %v2505
    %2507 = vmatmul.f32.gmra.mxu0 %v175
    %v2508 = vpop.f32.mrf.mxu0
    %v2509 = vadd.f32 0.0, %v2508
    %2510 = vmatmul.f32.gmra.mxu0 %v178
    %v2511 = vpop.f32.mrf.mxu0
    %v2512 = vadd.f32 0.0, %v2511
    %2513 = vmatmul.f32.gmra.mxu0 %v181
    %v2514 = vpop.f32.mrf.mxu0
    %v2515 = vadd.f32 0.0, %v2514
    %2516 = vmatmul.f32.gmra.mxu0 %v184
    %v2517 = vpop.f32.mrf.mxu0
    %v2518 = vadd.f32 0.0, %v2517
    %2519 = vmatmul.f32.gmra.mxu0 %v187
    %v2520 = vpop.f32.mrf.mxu0
    %v2521 = vadd.f32 0.0, %v2520
    %2522 = vmatmul.f32.gmra.mxu0 %v190
    %v2523 = vpop.f32.mrf.mxu0
    %v2524 = vadd.f32 0.0, %v2523
    %2525 = vmatmul.f32.gmra.mxu0 %v193
    %v2526 = vpop.f32.mrf.mxu0
    %v2527 = vadd.f32 0.0, %v2526
    %2528 = vmatmul.f32.gmra.mxu0 %v196
    %v2529 = vpop.f32.mrf.mxu0
    %v2530 = vadd.f32 0.0, %v2529
    %2531 = vmatmul.f32.gmra.mxu0 %v199
    %v2532 = vpop.f32.mrf.mxu0
    %v2533 = vadd.f32 0.0, %v2532
    %2534 = vmatmul.f32.gmra.mxu0 %v202
    %v2535 = vpop.f32.mrf.mxu0
    %v2536 = vadd.f32 0.0, %v2535
    %2537 = vmatmul.f32.gmra.mxu0 %v205
    %v2538 = vpop.f32.mrf.mxu0
    %v2539 = vadd.f32 0.0, %v2538
    %2540 = vmatmul.f32.gmra.mxu0 %v208
    %v2541 = vpop.f32.mrf.mxu0
    %v2542 = vadd.f32 0.0, %v2541
    %2543 = vmatmul.f32.gmra.mxu0 %v211
    %v2544 = vpop.f32.mrf.mxu0
    %v2545 = vadd.f32 0.0, %v2544
    %2546 = vmatmul.f32.gmra.mxu0 %v214
    %v2547 = vpop.f32.mrf.mxu0
    %v2548 = vadd.f32 0.0, %v2547
    %2549 = vmatmul.f32.gmra.mxu0 %v217
    %v2550 = vpop.f32.mrf.mxu0
    %v2551 = vadd.f32 0.0, %v2550
    %2552 = vmatmul.f32.gmra.mxu0 %v220
    %v2553 = vpop.f32.mrf.mxu0
    %v2554 = vadd.f32 0.0, %v2553
    %2555 = vmatmul.f32.gmra.mxu0 %v223
    %v2556 = vpop.f32.mrf.mxu0
    %v2557 = vadd.f32 0.0, %v2556
    %2558 = vmatmul.f32.gmra.mxu0 %v226
    %v2559 = vpop.f32.mrf.mxu0
    %v2560 = vadd.f32 0.0, %v2559
    %2561 = vmatmul.f32.gmra.mxu0 %v229
    %v2562 = vpop.f32.mrf.mxu0
    %v2563 = vadd.f32 0.0, %v2562
    %2564 = vmatmul.f32.gmra.mxu0 %v232
    %v2565 = vpop.f32.mrf.mxu0
    %v2566 = vadd.f32 0.0, %v2565
    %2567 = vmatmul.f32.gmra.mxu0 %v235
    %v2568 = vpop.f32.mrf.mxu0
    %v2569 = vadd.f32 0.0, %v2568
    %2570 = vmatmul.f32.gmra.mxu0 %v238
    %v2571 = vpop.f32.mrf.mxu0
    %v2572 = vadd.f32 0.0, %v2571
    %2573 = vmatmul.f32.gmra.mxu0 %v241
    %v2574 = vpop.f32.mrf.mxu0
    %v2575 = vadd.f32 0.0, %v2574
    %2576 = vmatmul.f32.gmra.mxu0 %v244
    %v2577 = vpop.f32.mrf.mxu0
    %v2578 = vadd.f32 0.0, %v2577
    %2579 = vmatmul.f32.gmra.mxu0 %v247
    %v2580 = vpop.f32.mrf.mxu0
    %v2581 = vadd.f32 0.0, %v2580
    %2582 = vmatmul.f32.gmra.mxu0 %v250
    %v2583 = vpop.f32.mrf.mxu0
    %v2584 = vadd.f32 0.0, %v2583
    %2585 = vmatmul.f32.gmra.mxu0 %v253
    %v2586 = vpop.f32.mrf.mxu0
    %v2587 = vadd.f32 0.0, %v2586
    %2588 = vdwg.mxu0
    %2589 = vmatpush.msra.mxu0 %v1895
    %2590 = vmatpush.msra.mxu0 %v1892
    %2591 = vmatpush.msra.mxu0 %v1889
    %2592 = vmatpush.msra.mxu0 %v1886
    %2593 = vmatpush.msra.mxu0 %v1883
    %2594 = vmatpush.msra.mxu0 %v1880
    %2595 = vmatpush.msra.mxu0 %v1877
    %2596 = vmatpush.msra.mxu0 %v1874
    %2597 = vmatpush.msra.mxu0 %v1871
    %2598 = vmatpush.msra.mxu0 %v1868
    %2599 = vmatpush.msra.mxu0 %v1865
    %2600 = vmatpush.msra.mxu0 %v1862
    %2601 = vmatpush.msra.mxu0 %v1859
    %2602 = vmatpush.msra.mxu0 %v1856
    %2603 = vmatpush.msra.mxu0 %v1853
    %2604 = vmatpush.msra.mxu0 %v1850
    %2605 = vmatmul.f32.gmra.mxu0 %v113
    %v2606 = vpop.f32.mrf.mxu0
    %v2607 = vadd.f32 %v2446, %v2606
    %2608 = vmatmul.f32.gmra.mxu0 %v116
    %v2609 = vpop.f32.mrf.mxu0
    %v2610 = vadd.f32 %v2449, %v2609
    %2611 = vmatmul.f32.gmra.mxu0 %v119
    %v2612 = vpop.f32.mrf.mxu0
    %v2613 = vadd.f32 %v2452, %v2612
    %2614 = vmatmul.f32.gmra.mxu0 %v122
    %v2615 = vpop.f32.mrf.mxu0
    %v2616 = vadd.f32 %v2455, %v2615
    %2617 = vmatmul.f32.gmra.mxu0 %v125
    %v2618 = vpop.f32.mrf.mxu0
    %v2619 = vadd.f32 %v2458, %v2618
    %2620 = vmatmul.f32.gmra.mxu0 %v128
    %v2621 = vpop.f32.mrf.mxu0
    %v2622 = vadd.f32 %v2461, %v2621
    %2623 = vmatmul.f32.gmra.mxu0 %v131
    %v2624 = vpop.f32.mrf.mxu0
    %v2625 = vadd.f32 %v2464, %v2624
    %2626 = vmatmul.f32.gmra.mxu0 %v134
    %v2627 = vpop.f32.mrf.mxu0
    %v2628 = vadd.f32 %v2467, %v2627
    %2629 = vmatmul.f32.gmra.mxu0 %v137
    %v2630 = vpop.f32.mrf.mxu0
    %v2631 = vadd.f32 %v2470, %v2630
    %2632 = vmatmul.f32.gmra.mxu0 %v140
    %v2633 = vpop.f32.mrf.mxu0
    %v2634 = vadd.f32 %v2473, %v2633
    %2635 = vmatmul.f32.gmra.mxu0 %v143
    %v2636 = vpop.f32.mrf.mxu0
    %v2637 = vadd.f32 %v2476, %v2636
    %2638 = vmatmul.f32.gmra.mxu0 %v146
    %v2639 = vpop.f32.mrf.mxu0
    %v2640 = vadd.f32 %v2479, %v2639
    %2641 = vmatmul.f32.gmra.mxu0 %v149
    %v2642 = vpop.f32.mrf.mxu0
    %v2643 = vadd.f32 %v2482, %v2642
    %2644 = vmatmul.f32.gmra.mxu0 %v152
    %v2645 = vpop.f32.mrf.mxu0
    %v2646 = vadd.f32 %v2485, %v2645
    %2647 = vmatmul.f32.gmra.mxu0 %v155
    %v2648 = vpop.f32.mrf.mxu0
    %v2649 = vadd.f32 %v2488, %v2648
    %2650 = vmatmul.f32.gmra.mxu0 %v158
    %v2651 = vpop.f32.mrf.mxu0
    %v2652 = vadd.f32 %v2491, %v2651
    %2653 = vmatmul.f32.gmra.mxu0 %v161
    %v2654 = vpop.f32.mrf.mxu0
    %v2655 = vadd.f32 %v2494, %v2654
    %2656 = vmatmul.f32.gmra.mxu0 %v164
    %v2657 = vpop.f32.mrf.mxu0
    %v2658 = vadd.f32 %v2497, %v2657
    %2659 = vmatmul.f32.gmra.mxu0 %v167
    %v2660 = vpop.f32.mrf.mxu0
    %v2661 = vadd.f32 %v2500, %v2660
    %2662 = vmatmul.f32.gmra.mxu0 %v170
    %v2663 = vpop.f32.mrf.mxu0
    %v2664 = vadd.f32 %v2503, %v2663
    %2665 = vmatmul.f32.gmra.mxu0 %v173
    %v2666 = vpop.f32.mrf.mxu0
    %v2667 = vadd.f32 %v2506, %v2666
    %2668 = vmatmul.f32.gmra.mxu0 %v176
    %v2669 = vpop.f32.mrf.mxu0
    %v2670 = vadd.f32 %v2509, %v2669
    %2671 = vmatmul.f32.gmra.mxu0 %v179
    %v2672 = vpop.f32.mrf.mxu0
    %v2673 = vadd.f32 %v2512, %v2672
    %2674 = vmatmul.f32.gmra.mxu0 %v182
    %v2675 = vpop.f32.mrf.mxu0
    %v2676 = vadd.f32 %v2515, %v2675
    %2677 = vmatmul.f32.gmra.mxu0 %v185
    %v2678 = vpop.f32.mrf.mxu0
    %v2679 = vadd.f32 %v2518, %v2678
    %2680 = vmatmul.f32.gmra.mxu0 %v188
    %v2681 = vpop.f32.mrf.mxu0
    %v2682 = vadd.f32 %v2521, %v2681
    %2683 = vmatmul.f32.gmra.mxu0 %v191
    %v2684 = vpop.f32.mrf.mxu0
    %v2685 = vadd.f32 %v2524, %v2684
    %2686 = vmatmul.f32.gmra.mxu0 %v194
    %v2687 = vpop.f32.mrf.mxu0
    %v2688 = vadd.f32 %v2527, %v2687
    %2689 = vmatmul.f32.gmra.mxu0 %v197
    %v2690 = vpop.f32.mrf.mxu0
    %v2691 = vadd.f32 %v2530, %v2690
    %2692 = vmatmul.f32.gmra.mxu0 %v200
    %v2693 = vpop.f32.mrf.mxu0
    %v2694 = vadd.f32 %v2533, %v2693
    %2695 = vmatmul.f32.gmra.mxu0 %v203
    %v2696 = vpop.f32.mrf.mxu0
    %v2697 = vadd.f32 %v2536, %v2696
    %2698 = vmatmul.f32.gmra.mxu0 %v206
    %v2699 = vpop.f32.mrf.mxu0
    %v2700 = vadd.f32 %v2539, %v2699
    %2701 = vmatmul.f32.gmra.mxu0 %v209
    %v2702 = vpop.f32.mrf.mxu0
    %v2703 = vadd.f32 %v2542, %v2702
    %2704 = vmatmul.f32.gmra.mxu0 %v212
    %v2705 = vpop.f32.mrf.mxu0
    %v2706 = vadd.f32 %v2545, %v2705
    %2707 = vmatmul.f32.gmra.mxu0 %v215
    %v2708 = vpop.f32.mrf.mxu0
    %v2709 = vadd.f32 %v2548, %v2708
    %2710 = vmatmul.f32.gmra.mxu0 %v218
    %v2711 = vpop.f32.mrf.mxu0
    %v2712 = vadd.f32 %v2551, %v2711
    %2713 = vmatmul.f32.gmra.mxu0 %v221
    %v2714 = vpop.f32.mrf.mxu0
    %v2715 = vadd.f32 %v2554, %v2714
    %2716 = vmatmul.f32.gmra.mxu0 %v224
    %v2717 = vpop.f32.mrf.mxu0
    %v2718 = vadd.f32 %v2557, %v2717
    %2719 = vmatmul.f32.gmra.mxu0 %v227
    %v2720 = vpop.f32.mrf.mxu0
    %v2721 = vadd.f32 %v2560, %v2720
    %2722 = vmatmul.f32.gmra.mxu0 %v230
    %v2723 = vpop.f32.mrf.mxu0
    %v2724 = vadd.f32 %v2563, %v2723
    %2725 = vmatmul.f32.gmra.mxu0 %v233
    %v2726 = vpop.f32.mrf.mxu0
    %v2727 = vadd.f32 %v2566, %v2726
    %2728 = vmatmul.f32.gmra.mxu0 %v236
    %v2729 = vpop.f32.mrf.mxu0
    %v2730 = vadd.f32 %v2569, %v2729
    %2731 = vmatmul.f32.gmra.mxu0 %v239
    %v2732 = vpop.f32.mrf.mxu0
    %v2733 = vadd.f32 %v2572, %v2732
    %2734 = vmatmul.f32.gmra.mxu0 %v242
    %v2735 = vpop.f32.mrf.mxu0
    %v2736 = vadd.f32 %v2575, %v2735
    %2737 = vmatmul.f32.gmra.mxu0 %v245
    %v2738 = vpop.f32.mrf.mxu0
    %v2739 = vadd.f32 %v2578, %v2738
    %2740 = vmatmul.f32.gmra.mxu0 %v248
    %v2741 = vpop.f32.mrf.mxu0
    %v2742 = vadd.f32 %v2581, %v2741
    %2743 = vmatmul.f32.gmra.mxu0 %v251
    %v2744 = vpop.f32.mrf.mxu0
    %v2745 = vadd.f32 %v2584, %v2744
    %2746 = vmatmul.f32.gmra.mxu0 %v254
    %v2747 = vpop.f32.mrf.mxu0
    %v2748 = vadd.f32 %v2587, %v2747
    %2749 = vdwg.mxu0
    %2750 = vmatpush.msra.mxu0 %v1943
    %2751 = vmatpush.msra.mxu0 %v1940
    %2752 = vmatpush.msra.mxu0 %v1937
    %2753 = vmatpush.msra.mxu0 %v1934
    %2754 = vmatpush.msra.mxu0 %v1931
    %2755 = vmatpush.msra.mxu0 %v1928
    %2756 = vmatpush.msra.mxu0 %v1925
    %2757 = vmatpush.msra.mxu0 %v1922
    %2758 = vmatpush.msra.mxu0 %v1919
    %2759 = vmatpush.msra.mxu0 %v1916
    %2760 = vmatpush.msra.mxu0 %v1913
    %2761 = vmatpush.msra.mxu0 %v1910
    %2762 = vmatpush.msra.mxu0 %v1907
    %2763 = vmatpush.msra.mxu0 %v1904
    %2764 = vmatpush.msra.mxu0 %v1901
    %2765 = vmatpush.msra.mxu0 %v1898
    %2766 = vmatmul.f32.gmra.mxu0 %v114
    %v2767 = vpop.f32.mrf.mxu0
    %v2768 = vadd.f32 %v2607, %v2767
    %2769 = vmatmul.f32.gmra.mxu0 %v117
    %v2770 = vpop.f32.mrf.mxu0
    %v2771 = vadd.f32 %v2610, %v2770
    %2772 = vmatmul.f32.gmra.mxu0 %v120
    %v2773 = vpop.f32.mrf.mxu0
    %v2774 = vadd.f32 %v2613, %v2773
    %2775 = vmatmul.f32.gmra.mxu0 %v123
    %v2776 = vpop.f32.mrf.mxu0
    %v2777 = vadd.f32 %v2616, %v2776
    %2778 = vmatmul.f32.gmra.mxu0 %v126
    %v2779 = vpop.f32.mrf.mxu0
    %v2780 = vadd.f32 %v2619, %v2779
    %2781 = vmatmul.f32.gmra.mxu0 %v129
    %v2782 = vpop.f32.mrf.mxu0
    %v2783 = vadd.f32 %v2622, %v2782
    %2784 = vmatmul.f32.gmra.mxu0 %v132
    %v2785 = vpop.f32.mrf.mxu0
    %v2786 = vadd.f32 %v2625, %v2785
    %2787 = vmatmul.f32.gmra.mxu0 %v135
    %v2788 = vpop.f32.mrf.mxu0
    %v2789 = vadd.f32 %v2628, %v2788
    %2790 = vmatmul.f32.gmra.mxu0 %v138
    %v2791 = vpop.f32.mrf.mxu0
    %v2792 = vadd.f32 %v2631, %v2791
    %2793 = vmatmul.f32.gmra.mxu0 %v141
    %v2794 = vpop.f32.mrf.mxu0
    %v2795 = vadd.f32 %v2634, %v2794
    %2796 = vmatmul.f32.gmra.mxu0 %v144
    %v2797 = vpop.f32.mrf.mxu0
    %v2798 = vadd.f32 %v2637, %v2797
    %2799 = vmatmul.f32.gmra.mxu0 %v147
    %v2800 = vpop.f32.mrf.mxu0
    %v2801 = vadd.f32 %v2640, %v2800
    %2802 = vmatmul.f32.gmra.mxu0 %v150
    %v2803 = vpop.f32.mrf.mxu0
    %v2804 = vadd.f32 %v2643, %v2803
    %2805 = vmatmul.f32.gmra.mxu0 %v153
    %v2806 = vpop.f32.mrf.mxu0
    %v2807 = vadd.f32 %v2646, %v2806
    %2808 = vmatmul.f32.gmra.mxu0 %v156
    %v2809 = vpop.f32.mrf.mxu0
    %v2810 = vadd.f32 %v2649, %v2809
    %2811 = vmatmul.f32.gmra.mxu0 %v159
    %v2812 = vpop.f32.mrf.mxu0
    %v2813 = vadd.f32 %v2652, %v2812
    %2814 = vmatmul.f32.gmra.mxu0 %v162
    %v2815 = vpop.f32.mrf.mxu0
    %v2816 = vadd.f32 %v2655, %v2815
    %2817 = vmatmul.f32.gmra.mxu0 %v165
    %v2818 = vpop.f32.mrf.mxu0
    %v2819 = vadd.f32 %v2658, %v2818
    %2820 = vmatmul.f32.gmra.mxu0 %v168
    %v2821 = vpop.f32.mrf.mxu0
    %v2822 = vadd.f32 %v2661, %v2821
    %2823 = vmatmul.f32.gmra.mxu0 %v171
    %v2824 = vpop.f32.mrf.mxu0
    %v2825 = vadd.f32 %v2664, %v2824
    %2826 = vmatmul.f32.gmra.mxu0 %v174
    %v2827 = vpop.f32.mrf.mxu0
    %v2828 = vadd.f32 %v2667, %v2827
    %2829 = vmatmul.f32.gmra.mxu0 %v177
    %v2830 = vpop.f32.mrf.mxu0
    %v2831 = vadd.f32 %v2670, %v2830
    %2832 = vmatmul.f32.gmra.mxu0 %v180
    %v2833 = vpop.f32.mrf.mxu0
    %v2834 = vadd.f32 %v2673, %v2833
    %2835 = vmatmul.f32.gmra.mxu0 %v183
    %v2836 = vpop.f32.mrf.mxu0
    %v2837 = vadd.f32 %v2676, %v2836
    %2838 = vmatmul.f32.gmra.mxu0 %v186
    %v2839 = vpop.f32.mrf.mxu0
    %v2840 = vadd.f32 %v2679, %v2839
    %2841 = vmatmul.f32.gmra.mxu0 %v189
    %v2842 = vpop.f32.mrf.mxu0
    %v2843 = vadd.f32 %v2682, %v2842
    %2844 = vmatmul.f32.gmra.mxu0 %v192
    %v2845 = vpop.f32.mrf.mxu0
    %v2846 = vadd.f32 %v2685, %v2845
    %2847 = vmatmul.f32.gmra.mxu0 %v195
    %v2848 = vpop.f32.mrf.mxu0
    %v2849 = vadd.f32 %v2688, %v2848
    %2850 = vmatmul.f32.gmra.mxu0 %v198
    %v2851 = vpop.f32.mrf.mxu0
    %v2852 = vadd.f32 %v2691, %v2851
    %2853 = vmatmul.f32.gmra.mxu0 %v201
    %v2854 = vpop.f32.mrf.mxu0
    %v2855 = vadd.f32 %v2694, %v2854
    %2856 = vmatmul.f32.gmra.mxu0 %v204
    %v2857 = vpop.f32.mrf.mxu0
    %v2858 = vadd.f32 %v2697, %v2857
    %2859 = vmatmul.f32.gmra.mxu0 %v207
    %v2860 = vpop.f32.mrf.mxu0
    %v2861 = vadd.f32 %v2700, %v2860
    %2862 = vmatmul.f32.gmra.mxu0 %v210
    %v2863 = vpop.f32.mrf.mxu0
    %v2864 = vadd.f32 %v2703, %v2863
    %2865 = vmatmul.f32.gmra.mxu0 %v213
    %v2866 = vpop.f32.mrf.mxu0
    %v2867 = vadd.f32 %v2706, %v2866
    %2868 = vmatmul.f32.gmra.mxu0 %v216
    %v2869 = vpop.f32.mrf.mxu0
    %v2870 = vadd.f32 %v2709, %v2869
    %2871 = vmatmul.f32.gmra.mxu0 %v219
    %v2872 = vpop.f32.mrf.mxu0
    %v2873 = vadd.f32 %v2712, %v2872
    %2874 = vmatmul.f32.gmra.mxu0 %v222
    %v2875 = vpop.f32.mrf.mxu0
    %v2876 = vadd.f32 %v2715, %v2875
    %2877 = vmatmul.f32.gmra.mxu0 %v225
    %v2878 = vpop.f32.mrf.mxu0
    %v2879 = vadd.f32 %v2718, %v2878
    %2880 = vmatmul.f32.gmra.mxu0 %v228
    %v2881 = vpop.f32.mrf.mxu0
    %v2882 = vadd.f32 %v2721, %v2881
    %2883 = vmatmul.f32.gmra.mxu0 %v231
    %v2884 = vpop.f32.mrf.mxu0
    %v2885 = vadd.f32 %v2724, %v2884
    %2886 = vmatmul.f32.gmra.mxu0 %v234
    %v2887 = vpop.f32.mrf.mxu0
    %v2888 = vadd.f32 %v2727, %v2887
    %2889 = vmatmul.f32.gmra.mxu0 %v237
    %v2890 = vpop.f32.mrf.mxu0
    %v2891 = vadd.f32 %v2730, %v2890
    %2892 = vmatmul.f32.gmra.mxu0 %v240
    %v2893 = vpop.f32.mrf.mxu0
    %v2894 = vadd.f32 %v2733, %v2893
    %2895 = vmatmul.f32.gmra.mxu0 %v243
    %v2896 = vpop.f32.mrf.mxu0
    %v2897 = vadd.f32 %v2736, %v2896
    %2898 = vmatmul.f32.gmra.mxu0 %v246
    %v2899 = vpop.f32.mrf.mxu0
    %v2900 = vadd.f32 %v2739, %v2899
    %2901 = vmatmul.f32.gmra.mxu0 %v249
    %v2902 = vpop.f32.mrf.mxu0
    %v2903 = vadd.f32 %v2742, %v2902
    %2904 = vmatmul.f32.gmra.mxu0 %v252
    %v2905 = vpop.f32.mrf.mxu0
    %v2906 = vadd.f32 %v2745, %v2905
    %2907 = vmatmul.f32.gmra.mxu0 %v255
    %v2908 = vpop.f32.mrf.mxu0
    %v2909 = vadd.f32 %v2748, %v2908
    %2910 = vdwg.mxu0
    %2911 = vmatpush.msra.mxu0 %v1364
    %2912 = vmatpush.msra.mxu0 %v1361
    %2913 = vmatpush.msra.mxu0 %v1358
    %2914 = vmatpush.msra.mxu0 %v1355
    %2915 = vmatpush.msra.mxu0 %v1352
    %2916 = vmatpush.msra.mxu0 %v1349
    %2917 = vmatpush.msra.mxu0 %v1346
    %2918 = vmatpush.msra.mxu0 %v1343
    %2919 = vmatpush.msra.mxu0 %v1340
    %2920 = vmatpush.msra.mxu0 %v1337
    %2921 = vmatpush.msra.mxu0 %v1334
    %2922 = vmatpush.msra.mxu0 %v1331
    %2923 = vmatpush.msra.mxu0 %v1328
    %2924 = vmatpush.msra.mxu0 %v1325
    %2925 = vmatpush.msra.mxu0 %v1322
    %2926 = vmatpush.msra.mxu0 %v1319
    %2927 = vmatmul.f32.gmra.mxu0 %v256
    %v2928 = vpop.f32.mrf.mxu0
    %v2929 = vadd.f32 0.0, %v2928
    %2930 = vmatmul.f32.gmra.mxu0 %v259
    %v2931 = vpop.f32.mrf.mxu0
    %v2932 = vadd.f32 0.0, %v2931
    %2933 = vmatmul.f32.gmra.mxu0 %v262
    %v2934 = vpop.f32.mrf.mxu0
    %v2935 = vadd.f32 0.0, %v2934
    %2936 = vmatmul.f32.gmra.mxu0 %v265
    %v2937 = vpop.f32.mrf.mxu0
    %v2938 = vadd.f32 0.0, %v2937
    %2939 = vmatmul.f32.gmra.mxu0 %v268
    %v2940 = vpop.f32.mrf.mxu0
    %v2941 = vadd.f32 0.0, %v2940
    %2942 = vmatmul.f32.gmra.mxu0 %v271
    %v2943 = vpop.f32.mrf.mxu0
    %v2944 = vadd.f32 0.0, %v2943
    %2945 = vmatmul.f32.gmra.mxu0 %v274
    %v2946 = vpop.f32.mrf.mxu0
    %v2947 = vadd.f32 0.0, %v2946
    %2948 = vmatmul.f32.gmra.mxu0 %v277
    %v2949 = vpop.f32.mrf.mxu0
    %v2950 = vadd.f32 0.0, %v2949
    %2951 = vmatmul.f32.gmra.mxu0 %v280
    %v2952 = vpop.f32.mrf.mxu0
    %v2953 = vadd.f32 0.0, %v2952
    %2954 = vmatmul.f32.gmra.mxu0 %v283
    %v2955 = vpop.f32.mrf.mxu0
    %v2956 = vadd.f32 0.0, %v2955
    %2957 = vmatmul.f32.gmra.mxu0 %v286
    %v2958 = vpop.f32.mrf.mxu0
    %v2959 = vadd.f32 0.0, %v2958
    %2960 = vmatmul.f32.gmra.mxu0 %v289
    %v2961 = vpop.f32.mrf.mxu0
    %v2962 = vadd.f32 0.0, %v2961
    %2963 = vmatmul.f32.gmra.mxu0 %v292
    %v2964 = vpop.f32.mrf.mxu0
    %v2965 = vadd.f32 0.0, %v2964
    %2966 = vmatmul.f32.gmra.mxu0 %v295
    %v2967 = vpop.f32.mrf.mxu0
    %v2968 = vadd.f32 0.0, %v2967
    %2969 = vmatmul.f32.gmra.mxu0 %v298
    %v2970 = vpop.f32.mrf.mxu0
    %v2971 = vadd.f32 0.0, %v2970
    %2972 = vmatmul.f32.gmra.mxu0 %v301
    %v2973 = vpop.f32.mrf.mxu0
    %v2974 = vadd.f32 0.0, %v2973
    %2975 = vmatmul.f32.gmra.mxu0 %v304
    %v2976 = vpop.f32.mrf.mxu0
    %v2977 = vadd.f32 0.0, %v2976
    %2978 = vmatmul.f32.gmra.mxu0 %v307
    %v2979 = vpop.f32.mrf.mxu0
    %v2980 = vadd.f32 0.0, %v2979
    %2981 = vmatmul.f32.gmra.mxu0 %v310
    %v2982 = vpop.f32.mrf.mxu0
    %v2983 = vadd.f32 0.0, %v2982
    %2984 = vmatmul.f32.gmra.mxu0 %v313
    %v2985 = vpop.f32.mrf.mxu0
    %v2986 = vadd.f32 0.0, %v2985
    %2987 = vmatmul.f32.gmra.mxu0 %v316
    %v2988 = vpop.f32.mrf.mxu0
    %v2989 = vadd.f32 0.0, %v2988
    %2990 = vmatmul.f32.gmra.mxu0 %v319
    %v2991 = vpop.f32.mrf.mxu0
    %v2992 = vadd.f32 0.0, %v2991
    %2993 = vmatmul.f32.gmra.mxu0 %v322
    %v2994 = vpop.f32.mrf.mxu0
    %v2995 = vadd.f32 0.0, %v2994
    %2996 = vmatmul.f32.gmra.mxu0 %v325
    %v2997 = vpop.f32.mrf.mxu0
    %v2998 = vadd.f32 0.0, %v2997
    %2999 = vmatmul.f32.gmra.mxu0 %v328
    %v3000 = vpop.f32.mrf.mxu0
    %v3001 = vadd.f32 0.0, %v3000
    %3002 = vmatmul.f32.gmra.mxu0 %v331
    %v3003 = vpop.f32.mrf.mxu0
    %v3004 = vadd.f32 0.0, %v3003
    %3005 = vmatmul.f32.gmra.mxu0 %v334
    %v3006 = vpop.f32.mrf.mxu0
    %v3007 = vadd.f32 0.0, %v3006
    %3008 = vmatmul.f32.gmra.mxu0 %v337
    %v3009 = vpop.f32.mrf.mxu0
    %v3010 = vadd.f32 0.0, %v3009
    %3011 = vmatmul.f32.gmra.mxu0 %v340
    %v3012 = vpop.f32.mrf.mxu0
    %v3013 = vadd.f32 0.0, %v3012
    %3014 = vmatmul.f32.gmra.mxu0 %v343
    %v3015 = vpop.f32.mrf.mxu0
    %v3016 = vadd.f32 0.0, %v3015
    %3017 = vmatmul.f32.gmra.mxu0 %v346
    %v3018 = vpop.f32.mrf.mxu0
    %v3019 = vadd.f32 0.0, %v3018
    %3020 = vmatmul.f32.gmra.mxu0 %v349
    %v3021 = vpop.f32.mrf.mxu0
    %v3022 = vadd.f32 0.0, %v3021
    %3023 = vmatmul.f32.gmra.mxu0 %v352
    %v3024 = vpop.f32.mrf.mxu0
    %v3025 = vadd.f32 0.0, %v3024
    %3026 = vmatmul.f32.gmra.mxu0 %v355
    %v3027 = vpop.f32.mrf.mxu0
    %v3028 = vadd.f32 0.0, %v3027
    %3029 = vmatmul.f32.gmra.mxu0 %v358
    %v3030 = vpop.f32.mrf.mxu0
    %v3031 = vadd.f32 0.0, %v3030
    %3032 = vmatmul.f32.gmra.mxu0 %v361
    %v3033 = vpop.f32.mrf.mxu0
    %v3034 = vadd.f32 0.0, %v3033
    %3035 = vmatmul.f32.gmra.mxu0 %v364
    %v3036 = vpop.f32.mrf.mxu0
    %v3037 = vadd.f32 0.0, %v3036
    %3038 = vmatmul.f32.gmra.mxu0 %v367
    %v3039 = vpop.f32.mrf.mxu0
    %v3040 = vadd.f32 0.0, %v3039
    %3041 = vmatmul.f32.gmra.mxu0 %v370
    %v3042 = vpop.f32.mrf.mxu0
    %v3043 = vadd.f32 0.0, %v3042
    %3044 = vmatmul.f32.gmra.mxu0 %v373
    %v3045 = vpop.f32.mrf.mxu0
    %v3046 = vadd.f32 0.0, %v3045
    %3047 = vmatmul.f32.gmra.mxu0 %v376
    %v3048 = vpop.f32.mrf.mxu0
    %v3049 = vadd.f32 0.0, %v3048
    %3050 = vmatmul.f32.gmra.mxu0 %v379
    %v3051 = vpop.f32.mrf.mxu0
    %v3052 = vadd.f32 0.0, %v3051
    %3053 = vmatmul.f32.gmra.mxu0 %v382
    %v3054 = vpop.f32.mrf.mxu0
    %v3055 = vadd.f32 0.0, %v3054
    %3056 = vmatmul.f32.gmra.mxu0 %v385
    %v3057 = vpop.f32.mrf.mxu0
    %v3058 = vadd.f32 0.0, %v3057
    %3059 = vmatmul.f32.gmra.mxu0 %v388
    %v3060 = vpop.f32.mrf.mxu0
    %v3061 = vadd.f32 0.0, %v3060
    %3062 = vmatmul.f32.gmra.mxu0 %v391
    %v3063 = vpop.f32.mrf.mxu0
    %v3064 = vadd.f32 0.0, %v3063
    %3065 = vmatmul.f32.gmra.mxu0 %v394
    %v3066 = vpop.f32.mrf.mxu0
    %v3067 = vadd.f32 0.0, %v3066
    %3068 = vmatmul.f32.gmra.mxu0 %v397
    %v3069 = vpop.f32.mrf.mxu0
    %v3070 = vadd.f32 0.0, %v3069
    %3071 = vdwg.mxu0
    %3072 = vmatpush.msra.mxu0 %v1412
    %3073 = vmatpush.msra.mxu0 %v1409
    %3074 = vmatpush.msra.mxu0 %v1406
    %3075 = vmatpush.msra.mxu0 %v1403
    %3076 = vmatpush.msra.mxu0 %v1400
    %3077 = vmatpush.msra.mxu0 %v1397
    %3078 = vmatpush.msra.mxu0 %v1394
    %3079 = vmatpush.msra.mxu0 %v1391
    %3080 = vmatpush.msra.mxu0 %v1388
    %3081 = vmatpush.msra.mxu0 %v1385
    %3082 = vmatpush.msra.mxu0 %v1382
    %3083 = vmatpush.msra.mxu0 %v1379
    %3084 = vmatpush.msra.mxu0 %v1376
    %3085 = vmatpush.msra.mxu0 %v1373
    %3086 = vmatpush.msra.mxu0 %v1370
    %3087 = vmatpush.msra.mxu0 %v1367
    %3088 = vmatmul.f32.gmra.mxu0 %v257
    %v3089 = vpop.f32.mrf.mxu0
    %v3090 = vadd.f32 %v2929, %v3089
    %3091 = vmatmul.f32.gmra.mxu0 %v260
    %v3092 = vpop.f32.mrf.mxu0
    %v3093 = vadd.f32 %v2932, %v3092
    %3094 = vmatmul.f32.gmra.mxu0 %v263
    %v3095 = vpop.f32.mrf.mxu0
    %v3096 = vadd.f32 %v2935, %v3095
    %3097 = vmatmul.f32.gmra.mxu0 %v266
    %v3098 = vpop.f32.mrf.mxu0
    %v3099 = vadd.f32 %v2938, %v3098
    %3100 = vmatmul.f32.gmra.mxu0 %v269
    %v3101 = vpop.f32.mrf.mxu0
    %v3102 = vadd.f32 %v2941, %v3101
    %3103 = vmatmul.f32.gmra.mxu0 %v272
    %v3104 = vpop.f32.mrf.mxu0
    %v3105 = vadd.f32 %v2944, %v3104
    %3106 = vmatmul.f32.gmra.mxu0 %v275
    %v3107 = vpop.f32.mrf.mxu0
    %v3108 = vadd.f32 %v2947, %v3107
    %3109 = vmatmul.f32.gmra.mxu0 %v278
    %v3110 = vpop.f32.mrf.mxu0
    %v3111 = vadd.f32 %v2950, %v3110
    %3112 = vmatmul.f32.gmra.mxu0 %v281
    %v3113 = vpop.f32.mrf.mxu0
    %v3114 = vadd.f32 %v2953, %v3113
    %3115 = vmatmul.f32.gmra.mxu0 %v284
    %v3116 = vpop.f32.mrf.mxu0
    %v3117 = vadd.f32 %v2956, %v3116
    %3118 = vmatmul.f32.gmra.mxu0 %v287
    %v3119 = vpop.f32.mrf.mxu0
    %v3120 = vadd.f32 %v2959, %v3119
    %3121 = vmatmul.f32.gmra.mxu0 %v290
    %v3122 = vpop.f32.mrf.mxu0
    %v3123 = vadd.f32 %v2962, %v3122
    %3124 = vmatmul.f32.gmra.mxu0 %v293
    %v3125 = vpop.f32.mrf.mxu0
    %v3126 = vadd.f32 %v2965, %v3125
    %3127 = vmatmul.f32.gmra.mxu0 %v296
    %v3128 = vpop.f32.mrf.mxu0
    %v3129 = vadd.f32 %v2968, %v3128
    %3130 = vmatmul.f32.gmra.mxu0 %v299
    %v3131 = vpop.f32.mrf.mxu0
    %v3132 = vadd.f32 %v2971, %v3131
    %3133 = vmatmul.f32.gmra.mxu0 %v302
    %v3134 = vpop.f32.mrf.mxu0
    %v3135 = vadd.f32 %v2974, %v3134
    %3136 = vmatmul.f32.gmra.mxu0 %v305
    %v3137 = vpop.f32.mrf.mxu0
    %v3138 = vadd.f32 %v2977, %v3137
    %3139 = vmatmul.f32.gmra.mxu0 %v308
    %v3140 = vpop.f32.mrf.mxu0
    %v3141 = vadd.f32 %v2980, %v3140
    %3142 = vmatmul.f32.gmra.mxu0 %v311
    %v3143 = vpop.f32.mrf.mxu0
    %v3144 = vadd.f32 %v2983, %v3143
    %3145 = vmatmul.f32.gmra.mxu0 %v314
    %v3146 = vpop.f32.mrf.mxu0
    %v3147 = vadd.f32 %v2986, %v3146
    %3148 = vmatmul.f32.gmra.mxu0 %v317
    %v3149 = vpop.f32.mrf.mxu0
    %v3150 = vadd.f32 %v2989, %v3149
    %3151 = vmatmul.f32.gmra.mxu0 %v320
    %v3152 = vpop.f32.mrf.mxu0
    %v3153 = vadd.f32 %v2992, %v3152
    %3154 = vmatmul.f32.gmra.mxu0 %v323
    %v3155 = vpop.f32.mrf.mxu0
    %v3156 = vadd.f32 %v2995, %v3155
    %3157 = vmatmul.f32.gmra.mxu0 %v326
    %v3158 = vpop.f32.mrf.mxu0
    %v3159 = vadd.f32 %v2998, %v3158
    %3160 = vmatmul.f32.gmra.mxu0 %v329
    %v3161 = vpop.f32.mrf.mxu0
    %v3162 = vadd.f32 %v3001, %v3161
    %3163 = vmatmul.f32.gmra.mxu0 %v332
    %v3164 = vpop.f32.mrf.mxu0
    %v3165 = vadd.f32 %v3004, %v3164
    %3166 = vmatmul.f32.gmra.mxu0 %v335
    %v3167 = vpop.f32.mrf.mxu0
    %v3168 = vadd.f32 %v3007, %v3167
    %3169 = vmatmul.f32.gmra.mxu0 %v338
    %v3170 = vpop.f32.mrf.mxu0
    %v3171 = vadd.f32 %v3010, %v3170
    %3172 = vmatmul.f32.gmra.mxu0 %v341
    %v3173 = vpop.f32.mrf.mxu0
    %v3174 = vadd.f32 %v3013, %v3173
    %3175 = vmatmul.f32.gmra.mxu0 %v344
    %v3176 = vpop.f32.mrf.mxu0
    %v3177 = vadd.f32 %v3016, %v3176
    %3178 = vmatmul.f32.gmra.mxu0 %v347
    %v3179 = vpop.f32.mrf.mxu0
    %v3180 = vadd.f32 %v3019, %v3179
    %3181 = vmatmul.f32.gmra.mxu0 %v350
    %v3182 = vpop.f32.mrf.mxu0
    %v3183 = vadd.f32 %v3022, %v3182
    %3184 = vmatmul.f32.gmra.mxu0 %v353
    %v3185 = vpop.f32.mrf.mxu0
    %v3186 = vadd.f32 %v3025, %v3185
    %3187 = vmatmul.f32.gmra.mxu0 %v356
    %v3188 = vpop.f32.mrf.mxu0
    %v3189 = vadd.f32 %v3028, %v3188
    %3190 = vmatmul.f32.gmra.mxu0 %v359
    %v3191 = vpop.f32.mrf.mxu0
    %v3192 = vadd.f32 %v3031, %v3191
    %3193 = vmatmul.f32.gmra.mxu0 %v362
    %v3194 = vpop.f32.mrf.mxu0
    %v3195 = vadd.f32 %v3034, %v3194
    %3196 = vmatmul.f32.gmra.mxu0 %v365
    %v3197 = vpop.f32.mrf.mxu0
    %v3198 = vadd.f32 %v3037, %v3197
    %3199 = vmatmul.f32.gmra.mxu0 %v368
    %v3200 = vpop.f32.mrf.mxu0
    %v3201 = vadd.f32 %v3040, %v3200
    %3202 = vmatmul.f32.gmra.mxu0 %v371
    %v3203 = vpop.f32.mrf.mxu0
    %v3204 = vadd.f32 %v3043, %v3203
    %3205 = vmatmul.f32.gmra.mxu0 %v374
    %v3206 = vpop.f32.mrf.mxu0
    %v3207 = vadd.f32 %v3046, %v3206
    %3208 = vmatmul.f32.gmra.mxu0 %v377
    %v3209 = vpop.f32.mrf.mxu0
    %v3210 = vadd.f32 %v3049, %v3209
    %3211 = vmatmul.f32.gmra.mxu0 %v380
    %v3212 = vpop.f32.mrf.mxu0
    %v3213 = vadd.f32 %v3052, %v3212
    %3214 = vmatmul.f32.gmra.mxu0 %v383
    %v3215 = vpop.f32.mrf.mxu0
    %v3216 = vadd.f32 %v3055, %v3215
    %3217 = vmatmul.f32.gmra.mxu0 %v386
    %v3218 = vpop.f32.mrf.mxu0
    %v3219 = vadd.f32 %v3058, %v3218
    %3220 = vmatmul.f32.gmra.mxu0 %v389
    %v3221 = vpop.f32.mrf.mxu0
    %v3222 = vadd.f32 %v3061, %v3221
    %3223 = vmatmul.f32.gmra.mxu0 %v392
    %v3224 = vpop.f32.mrf.mxu0
    %v3225 = vadd.f32 %v3064, %v3224
    %3226 = vmatmul.f32.gmra.mxu0 %v395
    %v3227 = vpop.f32.mrf.mxu0
    %v3228 = vadd.f32 %v3067, %v3227
    %3229 = vmatmul.f32.gmra.mxu0 %v398
    %v3230 = vpop.f32.mrf.mxu0
    %v3231 = vadd.f32 %v3070, %v3230
    %3232 = vdwg.mxu0
    %3233 = vmatpush.msra.mxu0 %v1460
    %3234 = vmatpush.msra.mxu0 %v1457
    %3235 = vmatpush.msra.mxu0 %v1454
    %3236 = vmatpush.msra.mxu0 %v1451
    %3237 = vmatpush.msra.mxu0 %v1448
    %3238 = vmatpush.msra.mxu0 %v1445
    %3239 = vmatpush.msra.mxu0 %v1442
    %3240 = vmatpush.msra.mxu0 %v1439
    %3241 = vmatpush.msra.mxu0 %v1436
    %3242 = vmatpush.msra.mxu0 %v1433
    %3243 = vmatpush.msra.mxu0 %v1430
    %3244 = vmatpush.msra.mxu0 %v1427
    %3245 = vmatpush.msra.mxu0 %v1424
    %3246 = vmatpush.msra.mxu0 %v1421
    %3247 = vmatpush.msra.mxu0 %v1418
    %3248 = vmatpush.msra.mxu0 %v1415
    %3249 = vmatmul.f32.gmra.mxu0 %v258
    %v3250 = vpop.f32.mrf.mxu0
    %v3251 = vadd.f32 %v3090, %v3250
    %3252 = vmatmul.f32.gmra.mxu0 %v261
    %v3253 = vpop.f32.mrf.mxu0
    %v3254 = vadd.f32 %v3093, %v3253
    %3255 = vmatmul.f32.gmra.mxu0 %v264
    %v3256 = vpop.f32.mrf.mxu0
    %v3257 = vadd.f32 %v3096, %v3256
    %3258 = vmatmul.f32.gmra.mxu0 %v267
    %v3259 = vpop.f32.mrf.mxu0
    %v3260 = vadd.f32 %v3099, %v3259
    %3261 = vmatmul.f32.gmra.mxu0 %v270
    %v3262 = vpop.f32.mrf.mxu0
    %v3263 = vadd.f32 %v3102, %v3262
    %3264 = vmatmul.f32.gmra.mxu0 %v273
    %v3265 = vpop.f32.mrf.mxu0
    %v3266 = vadd.f32 %v3105, %v3265
    %3267 = vmatmul.f32.gmra.mxu0 %v276
    %v3268 = vpop.f32.mrf.mxu0
    %v3269 = vadd.f32 %v3108, %v3268
    %3270 = vmatmul.f32.gmra.mxu0 %v279
    %v3271 = vpop.f32.mrf.mxu0
    %v3272 = vadd.f32 %v3111, %v3271
    %3273 = vmatmul.f32.gmra.mxu0 %v282
    %v3274 = vpop.f32.mrf.mxu0
    %v3275 = vadd.f32 %v3114, %v3274
    %3276 = vmatmul.f32.gmra.mxu0 %v285
    %v3277 = vpop.f32.mrf.mxu0
    %v3278 = vadd.f32 %v3117, %v3277
    %3279 = vmatmul.f32.gmra.mxu0 %v288
    %v3280 = vpop.f32.mrf.mxu0
    %v3281 = vadd.f32 %v3120, %v3280
    %3282 = vmatmul.f32.gmra.mxu0 %v291
    %v3283 = vpop.f32.mrf.mxu0
    %v3284 = vadd.f32 %v3123, %v3283
    %3285 = vmatmul.f32.gmra.mxu0 %v294
    %v3286 = vpop.f32.mrf.mxu0
    %v3287 = vadd.f32 %v3126, %v3286
    %3288 = vmatmul.f32.gmra.mxu0 %v297
    %v3289 = vpop.f32.mrf.mxu0
    %v3290 = vadd.f32 %v3129, %v3289
    %3291 = vmatmul.f32.gmra.mxu0 %v300
    %v3292 = vpop.f32.mrf.mxu0
    %v3293 = vadd.f32 %v3132, %v3292
    %3294 = vmatmul.f32.gmra.mxu0 %v303
    %v3295 = vpop.f32.mrf.mxu0
    %v3296 = vadd.f32 %v3135, %v3295
    %3297 = vmatmul.f32.gmra.mxu0 %v306
    %v3298 = vpop.f32.mrf.mxu0
    %v3299 = vadd.f32 %v3138, %v3298
    %3300 = vmatmul.f32.gmra.mxu0 %v309
    %v3301 = vpop.f32.mrf.mxu0
    %v3302 = vadd.f32 %v3141, %v3301
    %3303 = vmatmul.f32.gmra.mxu0 %v312
    %v3304 = vpop.f32.mrf.mxu0
    %v3305 = vadd.f32 %v3144, %v3304
    %3306 = vmatmul.f32.gmra.mxu0 %v315
    %v3307 = vpop.f32.mrf.mxu0
    %v3308 = vadd.f32 %v3147, %v3307
    %3309 = vmatmul.f32.gmra.mxu0 %v318
    %v3310 = vpop.f32.mrf.mxu0
    %v3311 = vadd.f32 %v3150, %v3310
    %3312 = vmatmul.f32.gmra.mxu0 %v321
    %v3313 = vpop.f32.mrf.mxu0
    %v3314 = vadd.f32 %v3153, %v3313
    %3315 = vmatmul.f32.gmra.mxu0 %v324
    %v3316 = vpop.f32.mrf.mxu0
    %v3317 = vadd.f32 %v3156, %v3316
    %3318 = vmatmul.f32.gmra.mxu0 %v327
    %v3319 = vpop.f32.mrf.mxu0
    %v3320 = vadd.f32 %v3159, %v3319
    %3321 = vmatmul.f32.gmra.mxu0 %v330
    %v3322 = vpop.f32.mrf.mxu0
    %v3323 = vadd.f32 %v3162, %v3322
    %3324 = vmatmul.f32.gmra.mxu0 %v333
    %v3325 = vpop.f32.mrf.mxu0
    %v3326 = vadd.f32 %v3165, %v3325
    %3327 = vmatmul.f32.gmra.mxu0 %v336
    %v3328 = vpop.f32.mrf.mxu0
    %v3329 = vadd.f32 %v3168, %v3328
    %3330 = vmatmul.f32.gmra.mxu0 %v339
    %v3331 = vpop.f32.mrf.mxu0
    %v3332 = vadd.f32 %v3171, %v3331
    %3333 = vmatmul.f32.gmra.mxu0 %v342
    %v3334 = vpop.f32.mrf.mxu0
    %v3335 = vadd.f32 %v3174, %v3334
    %3336 = vmatmul.f32.gmra.mxu0 %v345
    %v3337 = vpop.f32.mrf.mxu0
    %v3338 = vadd.f32 %v3177, %v3337
    %3339 = vmatmul.f32.gmra.mxu0 %v348
    %v3340 = vpop.f32.mrf.mxu0
    %v3341 = vadd.f32 %v3180, %v3340
    %3342 = vmatmul.f32.gmra.mxu0 %v351
    %v3343 = vpop.f32.mrf.mxu0
    %v3344 = vadd.f32 %v3183, %v3343
    %3345 = vmatmul.f32.gmra.mxu0 %v354
    %v3346 = vpop.f32.mrf.mxu0
    %v3347 = vadd.f32 %v3186, %v3346
    %3348 = vmatmul.f32.gmra.mxu0 %v357
    %v3349 = vpop.f32.mrf.mxu0
    %v3350 = vadd.f32 %v3189, %v3349
    %3351 = vmatmul.f32.gmra.mxu0 %v360
    %v3352 = vpop.f32.mrf.mxu0
    %v3353 = vadd.f32 %v3192, %v3352
    %3354 = vmatmul.f32.gmra.mxu0 %v363
    %v3355 = vpop.f32.mrf.mxu0
    %v3356 = vadd.f32 %v3195, %v3355
    %3357 = vmatmul.f32.gmra.mxu0 %v366
    %v3358 = vpop.f32.mrf.mxu0
    %v3359 = vadd.f32 %v3198, %v3358
    %3360 = vmatmul.f32.gmra.mxu0 %v369
    %v3361 = vpop.f32.mrf.mxu0
    %v3362 = vadd.f32 %v3201, %v3361
    %3363 = vmatmul.f32.gmra.mxu0 %v372
    %v3364 = vpop.f32.mrf.mxu0
    %v3365 = vadd.f32 %v3204, %v3364
    %3366 = vmatmul.f32.gmra.mxu0 %v375
    %v3367 = vpop.f32.mrf.mxu0
    %v3368 = vadd.f32 %v3207, %v3367
    %3369 = vmatmul.f32.gmra.mxu0 %v378
    %v3370 = vpop.f32.mrf.mxu0
    %v3371 = vadd.f32 %v3210, %v3370
    %3372 = vmatmul.f32.gmra.mxu0 %v381
    %v3373 = vpop.f32.mrf.mxu0
    %v3374 = vadd.f32 %v3213, %v3373
    %3375 = vmatmul.f32.gmra.mxu0 %v384
    %v3376 = vpop.f32.mrf.mxu0
    %v3377 = vadd.f32 %v3216, %v3376
    %3378 = vmatmul.f32.gmra.mxu0 %v387
    %v3379 = vpop.f32.mrf.mxu0
    %v3380 = vadd.f32 %v3219, %v3379
    %3381 = vmatmul.f32.gmra.mxu0 %v390
    %v3382 = vpop.f32.mrf.mxu0
    %v3383 = vadd.f32 %v3222, %v3382
    %3384 = vmatmul.f32.gmra.mxu0 %v393
    %v3385 = vpop.f32.mrf.mxu0
    %v3386 = vadd.f32 %v3225, %v3385
    %3387 = vmatmul.f32.gmra.mxu0 %v396
    %v3388 = vpop.f32.mrf.mxu0
    %v3389 = vadd.f32 %v3228, %v3388
    %3390 = vmatmul.f32.gmra.mxu0 %v399
    %v3391 = vpop.f32.mrf.mxu0
    %v3392 = vadd.f32 %v3231, %v3391
    %3393 = vdwg.mxu0
    %s3394 = sld [smem:[#allocation11]]
    %s3395 = sld [smem:[#allocation11 + $0x1]]
    %s3396 = sld [smem:[#allocation11 + $0x2]]
    %s3397 = sld [smem:[#allocation12]]
    %s3398 = sld [smem:[#allocation12 + $0x1]]
    %s3399 = sld [smem:[#allocation12 + $0x2]]
    %v3400 = vld [vmem:[#allocation9] sm:$0xff]
    %v3401 = vld [vmem:[#allocation9 + $0x8] sm:$0xff]
    %v3402 = vld [vmem:[#allocation9 + $0x10] sm:$0xff]
    %v3403 = vld [vmem:[#allocation9 + $0x18] sm:$0xff]
    %v3404 = vld [vmem:[#allocation9 + $0x20] sm:$0xff]
    %v3405 = vld [vmem:[#allocation9 + $0x28] sm:$0xff]
    %v3406 = vld [vmem:[#allocation9 + $0x30] sm:$0xff]
    %v3407 = vld [vmem:[#allocation9 + $0x38] sm:$0xff]
    %v3408 = vld [vmem:[#allocation9 + $0x40] sm:$0xff]
    %v3409 = vld [vmem:[#allocation9 + $0x48] sm:$0xff]
    %v3410 = vld [vmem:[#allocation9 + $0x50] sm:$0xff]
    %v3411 = vld [vmem:[#allocation9 + $0x58] sm:$0xff]
    %v3412 = vld [vmem:[#allocation9 + $0x60] sm:$0xff]
    %v3413 = vld [vmem:[#allocation9 + $0x68] sm:$0xff]
    %v3414 = vld [vmem:[#allocation9 + $0x70] sm:$0xff]
    %v3415 = vld [vmem:[#allocation9 + $0x78] sm:$0xff]
    %v3416 = vld [vmem:[#allocation9 + $0x80] sm:$0xff]
    %v3417 = vld [vmem:[#allocation9 + $0x88] sm:$0xff]
    %v3418 = vld [vmem:[#allocation9 + $0x90] sm:$0xff]
    %v3419 = vld [vmem:[#allocation9 + $0x98] sm:$0xff]
    %v3420 = vld [vmem:[#allocation9 + $0xa0] sm:$0xff]
    %v3421 = vld [vmem:[#allocation9 + $0xa8] sm:$0xff]
    %v3422 = vld [vmem:[#allocation9 + $0xb0] sm:$0xff]
    %v3423 = vld [vmem:[#allocation9 + $0xb8] sm:$0xff]
    %v3424 = vld [vmem:[#allocation9 + $0xc0] sm:$0xff]
    %v3425 = vld [vmem:[#allocation9 + $0xc8] sm:$0xff]
    %v3426 = vld [vmem:[#allocation9 + $0xd0] sm:$0xff]
    %v3427 = vld [vmem:[#allocation9 + $0xd8] sm:$0xff]
    %v3428 = vld [vmem:[#allocation9 + $0xe0] sm:$0xff]
    %v3429 = vld [vmem:[#allocation9 + $0xe8] sm:$0xff]
    %v3430 = vld [vmem:[#allocation9 + $0xf0] sm:$0xff]
    %v3431 = vld [vmem:[#allocation9 + $0xf8] sm:$0xff]
    %v3432 = vld [vmem:[#allocation9 + $0x100] sm:$0xff]
    %v3433 = vld [vmem:[#allocation9 + $0x108] sm:$0xff]
    %v3434 = vld [vmem:[#allocation9 + $0x110] sm:$0xff]
    %v3435 = vld [vmem:[#allocation9 + $0x118] sm:$0xff]
    %v3436 = vld [vmem:[#allocation9 + $0x120] sm:$0xff]
    %v3437 = vld [vmem:[#allocation9 + $0x128] sm:$0xff]
    %v3438 = vld [vmem:[#allocation9 + $0x130] sm:$0xff]
    %v3439 = vld [vmem:[#allocation9 + $0x138] sm:$0xff]
    %v3440 = vld [vmem:[#allocation9 + $0x140] sm:$0xff]
    %v3441 = vld [vmem:[#allocation9 + $0x148] sm:$0xff]
    %v3442 = vld [vmem:[#allocation9 + $0x150] sm:$0xff]
    %v3443 = vld [vmem:[#allocation9 + $0x158] sm:$0xff]
    %v3444 = vld [vmem:[#allocation9 + $0x160] sm:$0xff]
    %v3445 = vld [vmem:[#allocation9 + $0x168] sm:$0xff]
    %v3446 = vld [vmem:[#allocation9 + $0x170] sm:$0xff]
    %v3447 = vld [vmem:[#allocation9 + $0x178] sm:$0xff]
    %v3448 = vstv %s3396
    %v3449 = vmul.f32 %v3448, %v2285
    %v3450 = vmul.f32 %v3448, %v2288
    %v3451 = vmul.f32 %v3448, %v2291
    %v3452 = vmul.f32 %v3448, %v2294
    %v3453 = vmul.f32 %v3448, %v2297
    %v3454 = vmul.f32 %v3448, %v2300
    %v3455 = vmul.f32 %v3448, %v2303
    %v3456 = vmul.f32 %v3448, %v2306
    %v3457 = vmul.f32 %v3448, %v2309
    %v3458 = vmul.f32 %v3448, %v2312
    %v3459 = vmul.f32 %v3448, %v2315
    %v3460 = vmul.f32 %v3448, %v2318
    %v3461 = vmul.f32 %v3448, %v2321
    %v3462 = vmul.f32 %v3448, %v2324
    %v3463 = vmul.f32 %v3448, %v2327
    %v3464 = vmul.f32 %v3448, %v2330
    %v3465 = vmul.f32 %v3448, %v2333
    %v3466 = vmul.f32 %v3448, %v2336
    %v3467 = vmul.f32 %v3448, %v2339
    %v3468 = vmul.f32 %v3448, %v2342
    %v3469 = vmul.f32 %v3448, %v2345
    %v3470 = vmul.f32 %v3448, %v2348
    %v3471 = vmul.f32 %v3448, %v2351
    %v3472 = vmul.f32 %v3448, %v2354
    %v3473 = vmul.f32 %v3448, %v2357
    %v3474 = vmul.f32 %v3448, %v2360
    %v3475 = vmul.f32 %v3448, %v2363
    %v3476 = vmul.f32 %v3448, %v2366
    %v3477 = vmul.f32 %v3448, %v2369
    %v3478 = vmul.f32 %v3448, %v2372
    %v3479 = vmul.f32 %v3448, %v2375
    %v3480 = vmul.f32 %v3448, %v2378
    %v3481 = vmul.f32 %v3448, %v2381
    %v3482 = vmul.f32 %v3448, %v2384
    %v3483 = vmul.f32 %v3448, %v2387
    %v3484 = vmul.f32 %v3448, %v2390
    %v3485 = vmul.f32 %v3448, %v2393
    %v3486 = vmul.f32 %v3448, %v2396
    %v3487 = vmul.f32 %v3448, %v2399
    %v3488 = vmul.f32 %v3448, %v2402
    %v3489 = vmul.f32 %v3448, %v2405
    %v3490 = vmul.f32 %v3448, %v2408
    %v3491 = vmul.f32 %v3448, %v2411
    %v3492 = vmul.f32 %v3448, %v2414
    %v3493 = vmul.f32 %v3448, %v2417
    %v3494 = vmul.f32 %v3448, %v2420
    %v3495 = vmul.f32 %v3448, %v2423
    %v3496 = vmul.f32 %v3448, %v2426
    %v3497 = vstv %s3395
    %v3498 = vmul.f32 %v3497, %v836
    %v3499 = vmul.f32 %v3497, %v839
    %v3500 = vmul.f32 %v3497, %v842
    %v3501 = vmul.f32 %v3497, %v845
    %v3502 = vmul.f32 %v3497, %v848
    %v3503 = vmul.f32 %v3497, %v851
    %v3504 = vmul.f32 %v3497, %v854
    %v3505 = vmul.f32 %v3497, %v857
    %v3506 = vmul.f32 %v3497, %v860
    %v3507 = vmul.f32 %v3497, %v863
    %v3508 = vmul.f32 %v3497, %v866
    %v3509 = vmul.f32 %v3497, %v869
    %v3510 = vmul.f32 %v3497, %v872
    %v3511 = vmul.f32 %v3497, %v875
    %v3512 = vmul.f32 %v3497, %v878
    %v3513 = vmul.f32 %v3497, %v881
    %v3514 = vmul.f32 %v3497, %v884
    %v3515 = vmul.f32 %v3497, %v887
    %v3516 = vmul.f32 %v3497, %v890
    %v3517 = vmul.f32 %v3497, %v893
    %v3518 = vmul.f32 %v3497, %v896
    %v3519 = vmul.f32 %v3497, %v899
    %v3520 = vmul.f32 %v3497, %v902
    %v3521 = vmul.f32 %v3497, %v905
    %v3522 = vmul.f32 %v3497, %v908
    %v3523 = vmul.f32 %v3497, %v911
    %v3524 = vmul.f32 %v3497, %v914
    %v3525 = vmul.f32 %v3497, %v917
    %v3526 = vmul.f32 %v3497, %v920
    %v3527 = vmul.f32 %v3497, %v923
    %v3528 = vmul.f32 %v3497, %v926
    %v3529 = vmul.f32 %v3497, %v929
    %v3530 = vmul.f32 %v3497, %v932
    %v3531 = vmul.f32 %v3497, %v935
    %v3532 = vmul.f32 %v3497, %v938
    %v3533 = vmul.f32 %v3497, %v941
    %v3534 = vmul.f32 %v3497, %v944
    %v3535 = vmul.f32 %v3497, %v947
    %v3536 = vmul.f32 %v3497, %v950
    %v3537 = vmul.f32 %v3497, %v953
    %v3538 = vmul.f32 %v3497, %v956
    %v3539 = vmul.f32 %v3497, %v959
    %v3540 = vmul.f32 %v3497, %v962
    %v3541 = vmul.f32 %v3497, %v965
    %v3542 = vmul.f32 %v3497, %v968
    %v3543 = vmul.f32 %v3497, %v971
    %v3544 = vmul.f32 %v3497, %v974
    %v3545 = vmul.f32 %v3497, %v977
    %v3546 = vadd.f32 %v3449, %v3498
    %v3547 = vadd.f32 %v3450, %v3499
    %v3548 = vadd.f32 %v3451, %v3500
    %v3549 = vadd.f32 %v3452, %v3501
    %v3550 = vadd.f32 %v3453, %v3502
    %v3551 = vadd.f32 %v3454, %v3503
    %v3552 = vadd.f32 %v3455, %v3504
    %v3553 = vadd.f32 %v3456, %v3505
    %v3554 = vadd.f32 %v3457, %v3506
    %v3555 = vadd.f32 %v3458, %v3507
    %v3556 = vadd.f32 %v3459, %v3508
    %v3557 = vadd.f32 %v3460, %v3509
    %v3558 = vadd.f32 %v3461, %v3510
    %v3559 = vadd.f32 %v3462, %v3511
    %v3560 = vadd.f32 %v3463, %v3512
    %v3561 = vadd.f32 %v3464, %v3513
    %v3562 = vadd.f32 %v3465, %v3514
    %v3563 = vadd.f32 %v3466, %v3515
    %v3564 = vadd.f32 %v3467, %v3516
    %v3565 = vadd.f32 %v3468, %v3517
    %v3566 = vadd.f32 %v3469, %v3518
    %v3567 = vadd.f32 %v3470, %v3519
    %v3568 = vadd.f32 %v3471, %v3520
    %v3569 = vadd.f32 %v3472, %v3521
    %v3570 = vadd.f32 %v3473, %v3522
    %v3571 = vadd.f32 %v3474, %v3523
    %v3572 = vadd.f32 %v3475, %v3524
    %v3573 = vadd.f32 %v3476, %v3525
    %v3574 = vadd.f32 %v3477, %v3526
    %v3575 = vadd.f32 %v3478, %v3527
    %v3576 = vadd.f32 %v3479, %v3528
    %v3577 = vadd.f32 %v3480, %v3529
    %v3578 = vadd.f32 %v3481, %v3530
    %v3579 = vadd.f32 %v3482, %v3531
    %v3580 = vadd.f32 %v3483, %v3532
    %v3581 = vadd.f32 %v3484, %v3533
    %v3582 = vadd.f32 %v3485, %v3534
    %v3583 = vadd.f32 %v3486, %v3535
    %v3584 = vadd.f32 %v3487, %v3536
    %v3585 = vadd.f32 %v3488, %v3537
    %v3586 = vadd.f32 %v3489, %v3538
    %v3587 = vadd.f32 %v3490, %v3539
    %v3588 = vadd.f32 %v3491, %v3540
    %v3589 = vadd.f32 %v3492, %v3541
    %v3590 = vadd.f32 %v3493, %v3542
    %v3591 = vadd.f32 %v3494, %v3543
    %v3592 = vadd.f32 %v3495, %v3544
    %v3593 = vadd.f32 %v3496, %v3545
    %v3594 = vstv %s3394
    %v3595 = vmul.f32 %v3594, %v3400
    %v3596 = vmul.f32 %v3594, %v3401
    %v3597 = vmul.f32 %v3594, %v3402
    %v3598 = vmul.f32 %v3594, %v3403
    %v3599 = vmul.f32 %v3594, %v3404
    %v3600 = vmul.f32 %v3594, %v3405
    %v3601 = vmul.f32 %v3594, %v3406
    %v3602 = vmul.f32 %v3594, %v3407
    %v3603 = vmul.f32 %v3594, %v3408
    %v3604 = vmul.f32 %v3594, %v3409
    %v3605 = vmul.f32 %v3594, %v3410
    %v3606 = vmul.f32 %v3594, %v3411
    %v3607 = vmul.f32 %v3594, %v3412
    %v3608 = vmul.f32 %v3594, %v3413
    %v3609 = vmul.f32 %v3594, %v3414
    %v3610 = vmul.f32 %v3594, %v3415
    %v3611 = vmul.f32 %v3594, %v3416
    %v3612 = vmul.f32 %v3594, %v3417
    %v3613 = vmul.f32 %v3594, %v3418
    %v3614 = vmul.f32 %v3594, %v3419
    %v3615 = vmul.f32 %v3594, %v3420
    %v3616 = vmul.f32 %v3594, %v3421
    %v3617 = vmul.f32 %v3594, %v3422
    %v3618 = vmul.f32 %v3594, %v3423
    %v3619 = vmul.f32 %v3594, %v3424
    %v3620 = vmul.f32 %v3594, %v3425
    %v3621 = vmul.f32 %v3594, %v3426
    %v3622 = vmul.f32 %v3594, %v3427
    %v3623 = vmul.f32 %v3594, %v3428
    %v3624 = vmul.f32 %v3594, %v3429
    %v3625 = vmul.f32 %v3594, %v3430
    %v3626 = vmul.f32 %v3594, %v3431
    %v3627 = vmul.f32 %v3594, %v3432
    %v3628 = vmul.f32 %v3594, %v3433
    %v3629 = vmul.f32 %v3594, %v3434
    %v3630 = vmul.f32 %v3594, %v3435
    %v3631 = vmul.f32 %v3594, %v3436
    %v3632 = vmul.f32 %v3594, %v3437
    %v3633 = vmul.f32 %v3594, %v3438
    %v3634 = vmul.f32 %v3594, %v3439
    %v3635 = vmul.f32 %v3594, %v3440
    %v3636 = vmul.f32 %v3594, %v3441
    %v3637 = vmul.f32 %v3594, %v3442
    %v3638 = vmul.f32 %v3594, %v3443
    %v3639 = vmul.f32 %v3594, %v3444
    %v3640 = vmul.f32 %v3594, %v3445
    %v3641 = vmul.f32 %v3594, %v3446
    %v3642 = vmul.f32 %v3594, %v3447
    %v3643 = vadd.f32 %v3546, %v3595
    %v3644 = vadd.f32 %v3547, %v3596
    %v3645 = vadd.f32 %v3548, %v3597
    %v3646 = vadd.f32 %v3549, %v3598
    %v3647 = vadd.f32 %v3550, %v3599
    %v3648 = vadd.f32 %v3551, %v3600
    %v3649 = vadd.f32 %v3552, %v3601
    %v3650 = vadd.f32 %v3553, %v3602
    %v3651 = vadd.f32 %v3554, %v3603
    %v3652 = vadd.f32 %v3555, %v3604
    %v3653 = vadd.f32 %v3556, %v3605
    %v3654 = vadd.f32 %v3557, %v3606
    %v3655 = vadd.f32 %v3558, %v3607
    %v3656 = vadd.f32 %v3559, %v3608
    %v3657 = vadd.f32 %v3560, %v3609
    %v3658 = vadd.f32 %v3561, %v3610
    %v3659 = vadd.f32 %v3562, %v3611
    %v3660 = vadd.f32 %v3563, %v3612
    %v3661 = vadd.f32 %v3564, %v3613
    %v3662 = vadd.f32 %v3565, %v3614
    %v3663 = vadd.f32 %v3566, %v3615
    %v3664 = vadd.f32 %v3567, %v3616
    %v3665 = vadd.f32 %v3568, %v3617
    %v3666 = vadd.f32 %v3569, %v3618
    %v3667 = vadd.f32 %v3570, %v3619
    %v3668 = vadd.f32 %v3571, %v3620
    %v3669 = vadd.f32 %v3572, %v3621
    %v3670 = vadd.f32 %v3573, %v3622
    %v3671 = vadd.f32 %v3574, %v3623
    %v3672 = vadd.f32 %v3575, %v3624
    %v3673 = vadd.f32 %v3576, %v3625
    %v3674 = vadd.f32 %v3577, %v3626
    %v3675 = vadd.f32 %v3578, %v3627
    %v3676 = vadd.f32 %v3579, %v3628
    %v3677 = vadd.f32 %v3580, %v3629
    %v3678 = vadd.f32 %v3581, %v3630
    %v3679 = vadd.f32 %v3582, %v3631
    %v3680 = vadd.f32 %v3583, %v3632
    %v3681 = vadd.f32 %v3584, %v3633
    %v3682 = vadd.f32 %v3585, %v3634
    %v3683 = vadd.f32 %v3586, %v3635
    %v3684 = vadd.f32 %v3587, %v3636
    %v3685 = vadd.f32 %v3588, %v3637
    %v3686 = vadd.f32 %v3589, %v3638
    %v3687 = vadd.f32 %v3590, %v3639
    %v3688 = vadd.f32 %v3591, %v3640
    %v3689 = vadd.f32 %v3592, %v3641
    %v3690 = vadd.f32 %v3593, %v3642
    %3691 = vst [vmem:[#allocation14] sm:$0xff] %v3643
    %3692 = vst [vmem:[#allocation14 + $0x10] sm:$0xff] %v3644
    %3693 = vst [vmem:[#allocation14 + $0x20] sm:$0xff] %v3645
    %3694 = vst [vmem:[#allocation14 + $0x30] sm:$0xff] %v3646
    %3695 = vst [vmem:[#allocation14 + $0x40] sm:$0xff] %v3647
    %3696 = vst [vmem:[#allocation14 + $0x50] sm:$0xff] %v3648
    %3697 = vst [vmem:[#allocation14 + $0x60] sm:$0xff] %v3649
    %3698 = vst [vmem:[#allocation14 + $0x70] sm:$0xff] %v3650
    %3699 = vst [vmem:[#allocation14 + $0x80] sm:$0xff] %v3651
    %3700 = vst [vmem:[#allocation14 + $0x90] sm:$0xff] %v3652
    %3701 = vst [vmem:[#allocation14 + $0xa0] sm:$0xff] %v3653
    %3702 = vst [vmem:[#allocation14 + $0xb0] sm:$0xff] %v3654
    %3703 = vst [vmem:[#allocation14 + $0xc0] sm:$0xff] %v3655
    %3704 = vst [vmem:[#allocation14 + $0xd0] sm:$0xff] %v3656
    %3705 = vst [vmem:[#allocation14 + $0xe0] sm:$0xff] %v3657
    %3706 = vst [vmem:[#allocation14 + $0xf0] sm:$0xff] %v3658
    %3707 = vst [vmem:[#allocation14 + $0x100] sm:$0xff] %v3659
    %3708 = vst [vmem:[#allocation14 + $0x110] sm:$0xff] %v3660
    %3709 = vst [vmem:[#allocation14 + $0x120] sm:$0xff] %v3661
    %3710 = vst [vmem:[#allocation14 + $0x130] sm:$0xff] %v3662
    %3711 = vst [vmem:[#allocation14 + $0x140] sm:$0xff] %v3663
    %3712 = vst [vmem:[#allocation14 + $0x150] sm:$0xff] %v3664
    %3713 = vst [vmem:[#allocation14 + $0x160] sm:$0xff] %v3665
    %3714 = vst [vmem:[#allocation14 + $0x170] sm:$0xff] %v3666
    %3715 = vst [vmem:[#allocation14 + $0x180] sm:$0xff] %v3667
    %3716 = vst [vmem:[#allocation14 + $0x190] sm:$0xff] %v3668
    %3717 = vst [vmem:[#allocation14 + $0x1a0] sm:$0xff] %v3669
    %3718 = vst [vmem:[#allocation14 + $0x1b0] sm:$0xff] %v3670
    %3719 = vst [vmem:[#allocation14 + $0x1c0] sm:$0xff] %v3671
    %3720 = vst [vmem:[#allocation14 + $0x1d0] sm:$0xff] %v3672
    %3721 = vst [vmem:[#allocation14 + $0x1e0] sm:$0xff] %v3673
    %3722 = vst [vmem:[#allocation14 + $0x1f0] sm:$0xff] %v3674
    %3723 = vst [vmem:[#allocation14 + $0x200] sm:$0xff] %v3675
    %3724 = vst [vmem:[#allocation14 + $0x210] sm:$0xff] %v3676
    %3725 = vst [vmem:[#allocation14 + $0x220] sm:$0xff] %v3677
    %3726 = vst [vmem:[#allocation14 + $0x230] sm:$0xff] %v3678
    %3727 = vst [vmem:[#allocation14 + $0x240] sm:$0xff] %v3679
    %3728 = vst [vmem:[#allocation14 + $0x250] sm:$0xff] %v3680
    %3729 = vst [vmem:[#allocation14 + $0x260] sm:$0xff] %v3681
    %3730 = vst [vmem:[#allocation14 + $0x270] sm:$0xff] %v3682
    %3731 = vst [vmem:[#allocation14 + $0x280] sm:$0xff] %v3683
    %3732 = vst [vmem:[#allocation14 + $0x290] sm:$0xff] %v3684
    %3733 = vst [vmem:[#allocation14 + $0x2a0] sm:$0xff] %v3685
    %3734 = vst [vmem:[#allocation14 + $0x2b0] sm:$0xff] %v3686
    %3735 = vst [vmem:[#allocation14 + $0x2c0] sm:$0xff] %v3687
    %3736 = vst [vmem:[#allocation14 + $0x2d0] sm:$0xff] %v3688
    %3737 = vst [vmem:[#allocation14 + $0x2e0] sm:$0xff] %v3689
    %3738 = vst [vmem:[#allocation14 + $0x2f0] sm:$0xff] %v3690
    %v3739 = vstv %s3399
    %v3740 = vmul.f32 %v3739, %v2768
    %v3741 = vmul.f32 %v3739, %v2771
    %v3742 = vmul.f32 %v3739, %v2774
    %v3743 = vmul.f32 %v3739, %v2777
    %v3744 = vmul.f32 %v3739, %v2780
    %v3745 = vmul.f32 %v3739, %v2783
    %v3746 = vmul.f32 %v3739, %v2786
    %v3747 = vmul.f32 %v3739, %v2789
    %v3748 = vmul.f32 %v3739, %v2792
    %v3749 = vmul.f32 %v3739, %v2795
    %v3750 = vmul.f32 %v3739, %v2798
    %v3751 = vmul.f32 %v3739, %v2801
    %v3752 = vmul.f32 %v3739, %v2804
    %v3753 = vmul.f32 %v3739, %v2807
    %v3754 = vmul.f32 %v3739, %v2810
    %v3755 = vmul.f32 %v3739, %v2813
    %v3756 = vmul.f32 %v3739, %v2816
    %v3757 = vmul.f32 %v3739, %v2819
    %v3758 = vmul.f32 %v3739, %v2822
    %v3759 = vmul.f32 %v3739, %v2825
    %v3760 = vmul.f32 %v3739, %v2828
    %v3761 = vmul.f32 %v3739, %v2831
    %v3762 = vmul.f32 %v3739, %v2834
    %v3763 = vmul.f32 %v3739, %v2837
    %v3764 = vmul.f32 %v3739, %v2840
    %v3765 = vmul.f32 %v3739, %v2843
    %v3766 = vmul.f32 %v3739, %v2846
    %v3767 = vmul.f32 %v3739, %v2849
    %v3768 = vmul.f32 %v3739, %v2852
    %v3769 = vmul.f32 %v3739, %v2855
    %v3770 = vmul.f32 %v3739, %v2858
    %v3771 = vmul.f32 %v3739, %v2861
    %v3772 = vmul.f32 %v3739, %v2864
    %v3773 = vmul.f32 %v3739, %v2867
    %v3774 = vmul.f32 %v3739, %v2870
    %v3775 = vmul.f32 %v3739, %v2873
    %v3776 = vmul.f32 %v3739, %v2876
    %v3777 = vmul.f32 %v3739, %v2879
    %v3778 = vmul.f32 %v3739, %v2882
    %v3779 = vmul.f32 %v3739, %v2885
    %v3780 = vmul.f32 %v3739, %v2888
    %v3781 = vmul.f32 %v3739, %v2891
    %v3782 = vmul.f32 %v3739, %v2894
    %v3783 = vmul.f32 %v3739, %v2897
    %v3784 = vmul.f32 %v3739, %v2900
    %v3785 = vmul.f32 %v3739, %v2903
    %v3786 = vmul.f32 %v3739, %v2906
    %v3787 = vmul.f32 %v3739, %v2909
    %v3788 = vstv %s3398
    %v3789 = vmul.f32 %v3788, %v3251
    %v3790 = vmul.f32 %v3788, %v3254
    %v3791 = vmul.f32 %v3788, %v3257
    %v3792 = vmul.f32 %v3788, %v3260
    %v3793 = vmul.f32 %v3788, %v3263
    %v3794 = vmul.f32 %v3788, %v3266
    %v3795 = vmul.f32 %v3788, %v3269
    %v3796 = vmul.f32 %v3788, %v3272
    %v3797 = vmul.f32 %v3788, %v3275
    %v3798 = vmul.f32 %v3788, %v3278
    %v3799 = vmul.f32 %v3788, %v3281
    %v3800 = vmul.f32 %v3788, %v3284
    %v3801 = vmul.f32 %v3788, %v3287
    %v3802 = vmul.f32 %v3788, %v3290
    %v3803 = vmul.f32 %v3788, %v3293
    %v3804 = vmul.f32 %v3788, %v3296
    %v3805 = vmul.f32 %v3788, %v3299
    %v3806 = vmul.f32 %v3788, %v3302
    %v3807 = vmul.f32 %v3788, %v3305
    %v3808 = vmul.f32 %v3788, %v3308
    %v3809 = vmul.f32 %v3788, %v3311
    %v3810 = vmul.f32 %v3788, %v3314
    %v3811 = vmul.f32 %v3788, %v3317
    %v3812 = vmul.f32 %v3788, %v3320
    %v3813 = vmul.f32 %v3788, %v3323
    %v3814 = vmul.f32 %v3788, %v3326
    %v3815 = vmul.f32 %v3788, %v3329
    %v3816 = vmul.f32 %v3788, %v3332
    %v3817 = vmul.f32 %v3788, %v3335
    %v3818 = vmul.f32 %v3788, %v3338
    %v3819 = vmul.f32 %v3788, %v3341
    %v3820 = vmul.f32 %v3788, %v3344
    %v3821 = vmul.f32 %v3788, %v3347
    %v3822 = vmul.f32 %v3788, %v3350
    %v3823 = vmul.f32 %v3788, %v3353
    %v3824 = vmul.f32 %v3788, %v3356
    %v3825 = vmul.f32 %v3788, %v3359
    %v3826 = vmul.f32 %v3788, %v3362
    %v3827 = vmul.f32 %v3788, %v3365
    %v3828 = vmul.f32 %v3788, %v3368
    %v3829 = vmul.f32 %v3788, %v3371
    %v3830 = vmul.f32 %v3788, %v3374
    %v3831 = vmul.f32 %v3788, %v3377
    %v3832 = vmul.f32 %v3788, %v3380
    %v3833 = vmul.f32 %v3788, %v3383
    %v3834 = vmul.f32 %v3788, %v3386
    %v3835 = vmul.f32 %v3788, %v3389
    %v3836 = vmul.f32 %v3788, %v3392
    %v3837 = vadd.f32 %v3740, %v3789
    %v3838 = vadd.f32 %v3741, %v3790
    %v3839 = vadd.f32 %v3742, %v3791
    %v3840 = vadd.f32 %v3743, %v3792
    %v3841 = vadd.f32 %v3744, %v3793
    %v3842 = vadd.f32 %v3745, %v3794
    %v3843 = vadd.f32 %v3746, %v3795
    %v3844 = vadd.f32 %v3747, %v3796
    %v3845 = vadd.f32 %v3748, %v3797
    %v3846 = vadd.f32 %v3749, %v3798
    %v3847 = vadd.f32 %v3750, %v3799
    %v3848 = vadd.f32 %v3751, %v3800
    %v3849 = vadd.f32 %v3752, %v3801
    %v3850 = vadd.f32 %v3753, %v3802
    %v3851 = vadd.f32 %v3754, %v3803
    %v3852 = vadd.f32 %v3755, %v3804
    %v3853 = vadd.f32 %v3756, %v3805
    %v3854 = vadd.f32 %v3757, %v3806
    %v3855 = vadd.f32 %v3758, %v3807
    %v3856 = vadd.f32 %v3759, %v3808
    %v3857 = vadd.f32 %v3760, %v3809
    %v3858 = vadd.f32 %v3761, %v3810
    %v3859 = vadd.f32 %v3762, %v3811
    %v3860 = vadd.f32 %v3763, %v3812
    %v3861 = vadd.f32 %v3764, %v3813
    %v3862 = vadd.f32 %v3765, %v3814
    %v3863 = vadd.f32 %v3766, %v3815
    %v3864 = vadd.f32 %v3767, %v3816
    %v3865 = vadd.f32 %v3768, %v3817
    %v3866 = vadd.f32 %v3769, %v3818
    %v3867 = vadd.f32 %v3770, %v3819
    %v3868 = vadd.f32 %v3771, %v3820
    %v3869 = vadd.f32 %v3772, %v3821
    %v3870 = vadd.f32 %v3773, %v3822
    %v3871 = vadd.f32 %v3774, %v3823
    %v3872 = vadd.f32 %v3775, %v3824
    %v3873 = vadd.f32 %v3776, %v3825
    %v3874 = vadd.f32 %v3777, %v3826
    %v3875 = vadd.f32 %v3778, %v3827
    %v3876 = vadd.f32 %v3779, %v3828
    %v3877 = vadd.f32 %v3780, %v3829
    %v3878 = vadd.f32 %v3781, %v3830
    %v3879 = vadd.f32 %v3782, %v3831
    %v3880 = vadd.f32 %v3783, %v3832
    %v3881 = vadd.f32 %v3784, %v3833
    %v3882 = vadd.f32 %v3785, %v3834
    %v3883 = vadd.f32 %v3786, %v3835
    %v3884 = vadd.f32 %v3787, %v3836
    %v3885 = vstv %s3397
    %v3886 = vmul.f32 %v3885, %v1802
    %v3887 = vmul.f32 %v3885, %v1805
    %v3888 = vmul.f32 %v3885, %v1808
    %v3889 = vmul.f32 %v3885, %v1811
    %v3890 = vmul.f32 %v3885, %v1814
    %v3891 = vmul.f32 %v3885, %v1817
    %v3892 = vmul.f32 %v3885, %v1820
    %v3893 = vmul.f32 %v3885, %v1823
    %v3894 = vmul.f32 %v3885, %v1826
    %v3895 = vmul.f32 %v3885, %v1829
    %v3896 = vmul.f32 %v3885, %v1832
    %v3897 = vmul.f32 %v3885, %v1835
    %v3898 = vmul.f32 %v3885, %v1838
    %v3899 = vmul.f32 %v3885, %v1841
    %v3900 = vmul.f32 %v3885, %v1844
    %v3901 = vmul.f32 %v3885, %v1847
    %v3902 = vmul.f32 %v3885, %v1850
    %v3903 = vmul.f32 %v3885, %v1853
    %v3904 = vmul.f32 %v3885, %v1856
    %v3905 = vmul.f32 %v3885, %v1859
    %v3906 = vmul.f32 %v3885, %v1862
    %v3907 = vmul.f32 %v3885, %v1865
    %v3908 = vmul.f32 %v3885, %v1868
    %v3909 = vmul.f32 %v3885, %v1871
    %v3910 = vmul.f32 %v3885, %v1874
    %v3911 = vmul.f32 %v3885, %v1877
    %v3912 = vmul.f32 %v3885, %v1880
    %v3913 = vmul.f32 %v3885, %v1883
    %v3914 = vmul.f32 %v3885, %v1886
    %v3915 = vmul.f32 %v3885, %v1889
    %v3916 = vmul.f32 %v3885, %v1892
    %v3917 = vmul.f32 %v3885, %v1895
    %v3918 = vmul.f32 %v3885, %v1898
    %v3919 = vmul.f32 %v3885, %v1901
    %v3920 = vmul.f32 %v3885, %v1904
    %v3921 = vmul.f32 %v3885, %v1907
    %v3922 = vmul.f32 %v3885, %v1910
    %v3923 = vmul.f32 %v3885, %v1913
    %v3924 = vmul.f32 %v3885, %v1916
    %v3925 = vmul.f32 %v3885, %v1919
    %v3926 = vmul.f32 %v3885, %v1922
    %v3927 = vmul.f32 %v3885, %v1925
    %v3928 = vmul.f32 %v3885, %v1928
    %v3929 = vmul.f32 %v3885, %v1931
    %v3930 = vmul.f32 %v3885, %v1934
    %v3931 = vmul.f32 %v3885, %v1937
    %v3932 = vmul.f32 %v3885, %v1940
    %v3933 = vmul.f32 %v3885, %v1943
    %v3934 = vadd.f32 %v3837, %v3886
    %v3935 = vadd.f32 %v3838, %v3887
    %v3936 = vadd.f32 %v3839, %v3888
    %v3937 = vadd.f32 %v3840, %v3889
    %v3938 = vadd.f32 %v3841, %v3890
    %v3939 = vadd.f32 %v3842, %v3891
    %v3940 = vadd.f32 %v3843, %v3892
    %v3941 = vadd.f32 %v3844, %v3893
    %v3942 = vadd.f32 %v3845, %v3894
    %v3943 = vadd.f32 %v3846, %v3895
    %v3944 = vadd.f32 %v3847, %v3896
    %v3945 = vadd.f32 %v3848, %v3897
    %v3946 = vadd.f32 %v3849, %v3898
    %v3947 = vadd.f32 %v3850, %v3899
    %v3948 = vadd.f32 %v3851, %v3900
    %v3949 = vadd.f32 %v3852, %v3901
    %v3950 = vadd.f32 %v3853, %v3902
    %v3951 = vadd.f32 %v3854, %v3903
    %v3952 = vadd.f32 %v3855, %v3904
    %v3953 = vadd.f32 %v3856, %v3905
    %v3954 = vadd.f32 %v3857, %v3906
    %v3955 = vadd.f32 %v3858, %v3907
    %v3956 = vadd.f32 %v3859, %v3908
    %v3957 = vadd.f32 %v3860, %v3909
    %v3958 = vadd.f32 %v3861, %v3910
    %v3959 = vadd.f32 %v3862, %v3911
    %v3960 = vadd.f32 %v3863, %v3912
    %v3961 = vadd.f32 %v3864, %v3913
    %v3962 = vadd.f32 %v3865, %v3914
    %v3963 = vadd.f32 %v3866, %v3915
    %v3964 = vadd.f32 %v3867, %v3916
    %v3965 = vadd.f32 %v3868, %v3917
    %v3966 = vadd.f32 %v3869, %v3918
    %v3967 = vadd.f32 %v3870, %v3919
    %v3968 = vadd.f32 %v3871, %v3920
    %v3969 = vadd.f32 %v3872, %v3921
    %v3970 = vadd.f32 %v3873, %v3922
    %v3971 = vadd.f32 %v3874, %v3923
    %v3972 = vadd.f32 %v3875, %v3924
    %v3973 = vadd.f32 %v3876, %v3925
    %v3974 = vadd.f32 %v3877, %v3926
    %v3975 = vadd.f32 %v3878, %v3927
    %v3976 = vadd.f32 %v3879, %v3928
    %v3977 = vadd.f32 %v3880, %v3929
    %v3978 = vadd.f32 %v3881, %v3930
    %v3979 = vadd.f32 %v3882, %v3931
    %v3980 = vadd.f32 %v3883, %v3932
    %v3981 = vadd.f32 %v3884, %v3933
    %3982 = vst [vmem:[#allocation14 + $0x8] sm:$0xff] %v3934
    %3983 = vst [vmem:[#allocation14 + $0x18] sm:$0xff] %v3935
    %3984 = vst [vmem:[#allocation14 + $0x28] sm:$0xff] %v3936
    %3985 = vst [vmem:[#allocation14 + $0x38] sm:$0xff] %v3937
    %3986 = vst [vmem:[#allocation14 + $0x48] sm:$0xff] %v3938
    %3987 = vst [vmem:[#allocation14 + $0x58] sm:$0xff] %v3939
    %3988 = vst [vmem:[#allocation14 + $0x68] sm:$0xff] %v3940
    %3989 = vst [vmem:[#allocation14 + $0x78] sm:$0xff] %v3941
    %3990 = vst [vmem:[#allocation14 + $0x88] sm:$0xff] %v3942
    %3991 = vst [vmem:[#allocation14 + $0x98] sm:$0xff] %v3943
    %3992 = vst [vmem:[#allocation14 + $0xa8] sm:$0xff] %v3944
    %3993 = vst [vmem:[#allocation14 + $0xb8] sm:$0xff] %v3945
    %3994 = vst [vmem:[#allocation14 + $0xc8] sm:$0xff] %v3946
    %3995 = vst [vmem:[#allocation14 + $0xd8] sm:$0xff] %v3947
    %3996 = vst [vmem:[#allocation14 + $0xe8] sm:$0xff] %v3948
    %3997 = vst [vmem:[#allocation14 + $0xf8] sm:$0xff] %v3949
    %3998 = vst [vmem:[#allocation14 + $0x108] sm:$0xff] %v3950
    %3999 = vst [vmem:[#allocation14 + $0x118] sm:$0xff] %v3951
    %4000 = vst [vmem:[#allocation14 + $0x128] sm:$0xff] %v3952
    %4001 = vst [vmem:[#allocation14 + $0x138] sm:$0xff] %v3953
    %4002 = vst [vmem:[#allocation14 + $0x148] sm:$0xff] %v3954
    %4003 = vst [vmem:[#allocation14 + $0x158] sm:$0xff] %v3955
    %4004 = vst [vmem:[#allocation14 + $0x168] sm:$0xff] %v3956
    %4005 = vst [vmem:[#allocation14 + $0x178] sm:$0xff] %v3957
    %4006 = vst [vmem:[#allocation14 + $0x188] sm:$0xff] %v3958
    %4007 = vst [vmem:[#allocation14 + $0x198] sm:$0xff] %v3959
    %4008 = vst [vmem:[#allocation14 + $0x1a8] sm:$0xff] %v3960
    %4009 = vst [vmem:[#allocation14 + $0x1b8] sm:$0xff] %v3961
    %4010 = vst [vmem:[#allocation14 + $0x1c8] sm:$0xff] %v3962
    %4011 = vst [vmem:[#allocation14 + $0x1d8] sm:$0xff] %v3963
    %4012 = vst [vmem:[#allocation14 + $0x1e8] sm:$0xff] %v3964
    %4013 = vst [vmem:[#allocation14 + $0x1f8] sm:$0xff] %v3965
    %4014 = vst [vmem:[#allocation14 + $0x208] sm:$0xff] %v3966
    %4015 = vst [vmem:[#allocation14 + $0x218] sm:$0xff] %v3967
    %4016 = vst [vmem:[#allocation14 + $0x228] sm:$0xff] %v3968
    %4017 = vst [vmem:[#allocation14 + $0x238] sm:$0xff] %v3969
    %4018 = vst [vmem:[#allocation14 + $0x248] sm:$0xff] %v3970
    %4019 = vst [vmem:[#allocation14 + $0x258] sm:$0xff] %v3971
    %4020 = vst [vmem:[#allocation14 + $0x268] sm:$0xff] %v3972
    %4021 = vst [vmem:[#allocation14 + $0x278] sm:$0xff] %v3973
    %4022 = vst [vmem:[#allocation14 + $0x288] sm:$0xff] %v3974
    %4023 = vst [vmem:[#allocation14 + $0x298] sm:$0xff] %v3975
    %4024 = vst [vmem:[#allocation14 + $0x2a8] sm:$0xff] %v3976
    %4025 = vst [vmem:[#allocation14 + $0x2b8] sm:$0xff] %v3977
    %4026 = vst [vmem:[#allocation14 + $0x2c8] sm:$0xff] %v3978
    %4027 = vst [vmem:[#allocation14 + $0x2d8] sm:$0xff] %v3979
    %4028 = vst [vmem:[#allocation14 + $0x2e8] sm:$0xff] %v3980
    %4029 = vst [vmem:[#allocation14 + $0x2f8] sm:$0xff] %v3981
    // Predicated region
    $region50: #{tpu_custom_call.1} parent=1 // pred_check
      _
    $region51: #{tpu_custom_call.1} parent=1 // pred_check_branch
      %4031 = sbr.rel (0) target = $region53
    $region52: #{tpu_custom_call.1} parent=1 // pred_region
      %4033 = vsyncadd [#allocation4], 0
      %s4034 = sshll.u32 [#allocation14], 4
      %s4035 = int_to_ptr.vmem [resolvable:$true] %s4034
      %s4036 = sshll.u32 %s6, 4
      %s4037 = int_to_ptr.hbm [resolvable:$true] %s4036
      %4042 = dma.vmem_to_hbm [thread:$0]  %s4035, 12288, %s4037, [#allocation4], 256, 256, 16
    $region53: #{tpu_custom_call.1} parent=1 // pred_fallthru
      _
    // Predicated region
    $region54: #{tpu_custom_call.1} parent=1 // pred_check
      _
    $region55: #{tpu_custom_call.1} parent=1 // pred_check_branch
      %4044 = sbr.rel (0) target = $region57
    $region56: #{tpu_custom_call.1} parent=1 // pred_region
      %4046 = dma.done [#allocation4], 12288
    $region57: #{tpu_custom_call.1} parent=1 // pred_fallthru
      _
    %4047 = vsyncpa [#allocation3], 1
    %4048 = vsyncpa [#allocation7], 1
    %4049 = vsyncpa [#allocation10], 1
    %4050 = vsyncpa [#allocation4], 1
    %4051 = vsyncpa [#allocation5], 1
    %4052 = vsyncpa [#allocation13], 1

</llo_original>
